<compile_context>
chip_gen: v6e
topology: v6e:2x2x1
jax: 0.10.0
libtpu: 0.0.40
codegen_flags: <defaults>
</compile_context>

<pallas_src>
import functools

import jax
import jax.numpy as jnp
from jax.experimental import pallas as pl
from jax.experimental.pallas import tpu as pltpu

EMB_DIM = 300
H1_DIM = 90
H2_DIM = 90
N_OUT = 3
H_PAD = 128   # lane-dense padding for the MLP hidden / output dims


def _round_up(x, m):
    return ((x + m - 1) // m) * m


def _nn_kernel(idx_ref,                      # SMEM (n_tiles*2*Bt*L,) int32 (scalar prefetch)
               w_emb_hbm,                    # HBM  (V, D_pad)   (pl.ANY -> manual DMA gather)
               w1h_ref, w1p_ref, b1_ref,     # VMEM (D_pad,128), (D_pad,128), (1,128)
               w2_ref, b2_ref,               # VMEM (128,128), (1,128)
               w3_ref, b3_ref,               # VMEM (128,128), (1,128)
               out_ref,                      # VMEM (Bt, 128)
               chunk_buf,                    # VMEM scratch (2, 2*Bt, D_pad): double buffer
               emb_buf,                      # VMEM scratch (2*Bt, D_pad): per-bag sums
               sem,                          # DMA semaphores (2,)
               *, batch_tile, seq_len):
    f32 = jnp.float32
    Bt, L = batch_tile, seq_len
    n_bags = 2 * Bt                          # [hypo bags ; prem bags] for this tile
    rows_per_chunk = n_bags                  # one chunk = one sequence position, all bags
    tile_base = pl.program_id(0) * (n_bags * L)

    def issue_chunk(c, slot):
        # Fully unrolled descriptor issue: keeps DMAs flowing through the single
        # vector-misc slot with no per-row loop overhead.
        chunk_base = tile_base + c * rows_per_chunk
        for b in range(rows_per_chunk):
            tok = idx_ref[chunk_base + b]
            pltpu.make_async_copy(
                w_emb_hbm.at[pl.ds(tok, 1), :],
                chunk_buf.at[slot, pl.ds(b, 1), :],
                sem.at[slot]).start()

    def wait_chunk(slot):
        # One wait per issued copy, each with an identically-sized descriptor
        # (row 0 of the table is always a valid source).  Robust regardless of
        # whether the DMA semaphore counts bytes or completions.
        # TODO(synk): collapse to one byte-counted wait per chunk once DMA-semaphore
        # byte semantics are confirmed on all target generations.
        for b in range(rows_per_chunk):
            pltpu.make_async_copy(
                w_emb_hbm.at[pl.ds(0, 1), :],
                chunk_buf.at[slot, pl.ds(b, 1), :],
                sem.at[slot]).wait()

    # ---- chunked, double-buffered gather + running mean-pool accumulation ----------
    emb_buf[...] = jnp.zeros_like(emb_buf)
    issue_chunk(0, 0)

    @pl.loop(0, L)
    def _(c):
        slot = c & 1
        wait_chunk(slot)

        @pl.when(c + 1 < L)
        def _():
            issue_chunk(c + 1, 1 - slot)     # prefetch next position while pooling this one

        emb_buf[...] += chunk_buf[slot]      # (2*Bt, D) element-wise accumulate (VPU)

    # TODO(synk): cross-tile prefetch of tile i+1's first chunk behind this tile's MLP
    # (largest win on v7x where the kernel is latency- rather than bandwidth-bound).

    # ---- EmbeddingBag(mode='mean') + MLP ('concat' folded into the first Linear) ----
    emb = emb_buf[...] * f32(1.0 / L)        # mean over the full padded row (lengths ignored)
    emb_h = emb[:Bt]                         # (Bt, D) hypo bags
    emb_p = emb[Bt:]                         # (Bt, D) prem bags

    h1 = (jnp.dot(emb_h, w1h_ref[...], preferred_element_type=f32)
          + jnp.dot(emb_p, w1p_ref[...], preferred_element_type=f32)
          + b1_ref[...])
    h1 = jnp.maximum(h1, 0.0)
    h2 = jnp.maximum(jnp.dot(h1, w2_ref[...], preferred_element_type=f32) + b2_ref[...],
                     0.0)
    out_ref[...] = jnp.dot(h2, w3_ref[...], preferred_element_type=f32) + b3_ref[...]


def init_params(key, vocab_size, emb_dim=EMB_DIM, h1=H1_DIM, h2=H2_DIM, n_out=N_OUT):
    """Deterministic synthetic parameters (shapes match the PyTorch module)."""
    ks = jax.random.split(key, 7)
    in1 = 2 * emb_dim  # interaction_type == 'concat'
    return {
        "w_emb": jax.random.normal(ks[0], (vocab_size, emb_dim), jnp.float32) * 0.1,
        "w1": jax.random.normal(ks[1], (in1, h1), jnp.float32) * (1.0 / jnp.sqrt(in1)),
        "b1": jax.random.normal(ks[2], (h1,), jnp.float32) * 0.01,
        "w2": jax.random.normal(ks[3], (h1, h2), jnp.float32) * (1.0 / jnp.sqrt(h1)),
        "b2": jax.random.normal(ks[4], (h2,), jnp.float32) * 0.01,
        "w3": jax.random.normal(ks[5], (h2, n_out), jnp.float32) * (1.0 / jnp.sqrt(h2)),
        "b3": jax.random.normal(ks[6], (n_out,), jnp.float32) * 0.01,
    }


def _pad2(w, r, c):
    out = jnp.zeros((r, c), jnp.float32)
    return out.at[:w.shape[0], :w.shape[1]].set(w.astype(jnp.float32))


def neural_network_forward(params, data_hypo, length_hypo, data_prem, length_prem,
                           interaction_type="concat"):
    # The module instance under translation was built with interaction_type='concat'.
    assert interaction_type == "concat"
    # nn.EmbeddingBag(mode='mean') on a 2-D index matrix (no offsets) averages over the
    # full padded row; the length tensors are unused by the PyTorch forward.  Keep it so.
    del length_hypo, length_prem

    B, L = data_hypo.shape
    w_emb = params["w_emb"].astype(jnp.float32)
    V, D = w_emb.shape
    n_out = params["w3"].shape[1]
    D_pad = _round_up(D, 128)                # 300 -> 384: lane-dense gather rows / MXU K

    # Batch tile: large for MXU M-dim utilization, a multiple of 8 (sublane tiling),
    # and >= 2 tiles whenever the batch allows so both v7x TensorCores are used.
    if B >= 256:
        Bt = 128
    elif B >= 16:
        Bt = _round_up(B, 16) // 2
    else:
        Bt = 8
    B_pad = _round_up(B, Bt)
    n_tiles = B_pad // Bt

    # Pad the batch with token-0 rows; padded outputs are sliced off below.
    def pad_batch(x):
        x = x.astype(jnp.int32)
        if B_pad == B:
            return x
        return jnp.concatenate([x, jnp.zeros((B_pad - B, L), jnp.int32)], axis=0)

    dh = pad_batch(data_hypo)
    dp = pad_batch(data_prem)

    # Flat token-id layout, tile-major and position-major within a tile:
    #   idx[tile, position, bag]  with bag = [hypo 0..Bt-1 ; prem 0..Bt-1].
    both = jnp.concatenate([dh.reshape(n_tiles, Bt, L), dp.reshape(n_tiles, Bt, L)],
                           axis=1)                       # (n_tiles, 2*Bt, L)
    idx = jnp.transpose(both, (0, 2, 1)).reshape(-1)     # (n_tiles * L * 2*Bt,)

    # Lane-dense embedding table: pad D to a multiple of 128 with zero columns.
    w_emb_p = jnp.pad(w_emb, ((0, 0), (0, D_pad - D)))
    # TODO(synk): store/gather the table in bf16 (halves gather bytes) once numerics are
    # validated against the f32 reference.

    # Zero-pad MLP weights to lane-dense 128 (exact: padded channels stay identically 0).
    w1, b1 = params["w1"], params["b1"]
    w2, b2 = params["w2"], params["b2"]
    w3, b3 = params["w3"], params["b3"]
    w1h = _pad2(w1[:D], D_pad, H_PAD)        # hypo half of the 'concat' first Linear
    w1p = _pad2(w1[D:], D_pad, H_PAD)        # prem half
    b1p = _pad2(b1.reshape(1, -1), 1, H_PAD)
    w2p = _pad2(w2, H_PAD, H_PAD)
    b2p = _pad2(b2.reshape(1, -1), 1, H_PAD)
    w3p = _pad2(w3, H_PAD, H_PAD)
    b3p = _pad2(b3.reshape(1, -1), 1, H_PAD)

    kernel = functools.partial(_nn_kernel, batch_tile=Bt, seq_len=L)

    cost = pl.CostEstimate(
        flops=(2 * B_pad * L * D_pad                                      # pooling adds
               + 2 * B_pad * (2 * D_pad * H_PAD + 2 * H_PAD * H_PAD)),    # MLP matmuls
        transcendentals=0,
        bytes_accessed=(2 * B_pad * L * D_pad * 4                         # gathered rows
                        + (2 * D_pad * H_PAD + 2 * H_PAD * H_PAD + 3 * H_PAD) * 4
                        + 2 * B_pad * L * 4 + B_pad * H_PAD * 4))

    def full(shape):
        # Constant block index -> fetched once and kept VMEM-resident across the grid.
        return pl.BlockSpec(shape, lambda i, idx_ref: (0,) * len(shape))

    out_pad = pl.pallas_call(
        kernel,
        out_shape=jax.ShapeDtypeStruct((B_pad, H_PAD), jnp.float32),
        grid_spec=pltpu.PrefetchScalarGridSpec(
            num_scalar_prefetch=1,
            grid=(n_tiles,),
            in_specs=[
                pl.BlockSpec(memory_space=pl.ANY),   # embedding table stays in HBM
                full((D_pad, H_PAD)), full((D_pad, H_PAD)), full((1, H_PAD)),
                full((H_PAD, H_PAD)), full((1, H_PAD)),
                full((H_PAD, H_PAD)), full((1, H_PAD)),
            ],
            out_specs=pl.BlockSpec((Bt, H_PAD), lambda i, idx_ref: (i, 0)),
            scratch_shapes=[
                pltpu.VMEM((2, 2 * Bt, D_pad), jnp.float32),   # double-buffered gather chunks
                pltpu.VMEM((2 * Bt, D_pad), jnp.float32),      # per-bag running sums
                pltpu.SemaphoreType.DMA((2,)),
            ]),
        compiler_params=pltpu.CompilerParams(
            dimension_semantics=("parallel",)),
        cost_estimate=cost,
    )(idx, w_emb_p, w1h, w1p, b1p, w2p, b2p, w3p, b3p)

    return out_pad[:B, :n_out]


def reference_forward(params, data_hypo, data_prem):
    """Pure-JAX reference mirroring the PyTorch forward (concat interaction)."""
    emb_h = jnp.take(params["w_emb"], data_hypo, axis=0).mean(axis=1)
    emb_p = jnp.take(params["w_emb"], data_prem, axis=0).mean(axis=1)
    x = jnp.concatenate([emb_h, emb_p], axis=1)
    h1 = jax.nn.relu(x @ params["w1"] + params["b1"])
    h2 = jax.nn.relu(h1 @ params["w2"] + params["b2"])
    return h2 @ params["w3"] + params["b3"]


if __name__ == "__main__":
    key = jax.random.PRNGKey(0)
    k_par, k_h, k_p, k_lh, k_lp = jax.random.split(key, 5)

    vocab_size = 50
    batch, seq = 20, 8   # exercises batch padding (20 -> 32) and 2 parallel grid tiles

    params = init_params(k_par, vocab_size)

    data_hypo = jax.random.randint(k_h, (batch, seq), 0, vocab_size, dtype=jnp.int32)
    data_prem = jax.random.randint(k_p, (batch, seq), 0, vocab_size, dtype=jnp.int32)
    length_hypo = jax.random.randint(k_lh, (batch,), 1, seq + 1, dtype=jnp.int32)
    length_prem = jax.random.randint(k_lp, (batch,), 1, seq + 1, dtype=jnp.int32)

    out = neural_network_forward(params, data_hypo, length_hypo,
                                 data_prem, length_prem, "concat")
    out = jax.block_until_ready(out)

    ref = reference_forward(params, data_hypo, data_prem)
    assert out.shape == (batch, N_OUT)
    assert jnp.allclose(out, ref, rtol=1e-3, atol=1e-3), (out, ref)

    print("KERNEL_OK")
</pallas_src>

<mosaic_0001>
module attributes {stable_mosaic.version = 11 : i64} {
  func.func @_nn_kernel(%arg0: i32, %arg1: memref<512xi32, #tpu.memory_space<smem>>, %arg2: memref<50x384xf32, #tpu.memory_space<any>>, %arg3: memref<384x128xf32, #tpu.memory_space<vmem>>, %arg4: memref<384x128xf32, #tpu.memory_space<vmem>>, %arg5: memref<1x128xf32, #tpu.memory_space<vmem>>, %arg6: memref<128x128xf32, #tpu.memory_space<vmem>>, %arg7: memref<1x128xf32, #tpu.memory_space<vmem>>, %arg8: memref<128x128xf32, #tpu.memory_space<vmem>>, %arg9: memref<1x128xf32, #tpu.memory_space<vmem>>, %arg10: memref<16x128xf32, #tpu.memory_space<vmem>>, %arg11: memref<2x32x384xf32, #tpu.memory_space<vmem>>, %arg12: memref<32x384xf32, #tpu.memory_space<vmem>>, %arg13: memref<2x!tpu.dma_semaphore, #tpu.memory_space<semaphore_mem>>) attributes {dimension_semantics = [#tpu.dimension_semantics<parallel>], iteration_bounds = array<i64: 2>, scalar_prefetch = 1 : i64, scratch_operands = 3 : i64, tpu.core_type = #tpu.core_type<tc>, window_params = [{}, {pipeline_mode = #tpu.pipeline_mode<synchronous>, transform_indices = @transform_1, window_bounds = array<i64: 384, 128>}, {pipeline_mode = #tpu.pipeline_mode<synchronous>, transform_indices = @transform_2, window_bounds = array<i64: 384, 128>}, {pipeline_mode = #tpu.pipeline_mode<synchronous>, transform_indices = @transform_3, window_bounds = array<i64: 1, 128>}, {pipeline_mode = #tpu.pipeline_mode<synchronous>, transform_indices = @transform_4, window_bounds = array<i64: 128, 128>}, {pipeline_mode = #tpu.pipeline_mode<synchronous>, transform_indices = @transform_5, window_bounds = array<i64: 1, 128>}, {pipeline_mode = #tpu.pipeline_mode<synchronous>, transform_indices = @transform_6, window_bounds = array<i64: 128, 128>}, {pipeline_mode = #tpu.pipeline_mode<synchronous>, transform_indices = @transform_7, window_bounds = array<i64: 1, 128>}, {transform_indices = @transform_8, window_bounds = array<i64: 16, 128>}]} {
    %c256_i32 = arith.constant 256 : i32
    %0 = arith.muli %arg0, %c256_i32 : i32
    %cst = arith.constant 0.000000e+00 : f32
    %1 = vector.broadcast %cst : f32 to vector<32x384xf32>
    %c0 = arith.constant 0 : index
    %c0_0 = arith.constant 0 : index
    %2 = vector.load %arg12[%c0, %c0_0] : memref<32x384xf32, #tpu.memory_space<vmem>>, vector<32x384xf32>
    tpu.vector_store %arg12[%c0, %c0_0], %1 {strides = array<i32>} : memref<32x384xf32, #tpu.memory_space<vmem>>, vector<32x384xf32>,
    %c0_i32 = arith.constant 0 : i32
    %3 = arith.addi %0, %c0_i32 : i32
    %c0_i32_1 = arith.constant 0 : i32
    %4 = arith.addi %3, %c0_i32_1 : i32
    %5 = arith.index_cast %4 : i32 to index
    %6 = memref.load %arg1[%5] : memref<512xi32, #tpu.memory_space<smem>>
    %c0_i32_2 = arith.constant 0 : i32
    %c0_i32_3 = arith.constant 0 : i32
    %c0_i32_4 = arith.constant 0 : i32
    %7 = tpu.memref_slice %arg2[%6, %c0_i32_4] : memref<50x384xf32, #tpu.memory_space<any>> -> memref<1x384xf32, #tpu.memory_space<any>>
    %c0_i32_5 = arith.constant 0 : i32
    %c0_i32_6 = arith.constant 0 : i32
    %8 = tpu.memref_slice %arg11[%c0_i32_2, %c0_i32_5, %c0_i32_6] : memref<2x32x384xf32, #tpu.memory_space<vmem>> -> memref<1x1x384xf32, #tpu.memory_space<vmem>>
    %9 = tpu.memref_squeeze %8 : memref<1x1x384xf32, #tpu.memory_space<vmem>> -> memref<1x384xf32, #tpu.memory_space<vmem>>
    %10 = tpu.memref_slice %arg13[%c0_i32_3] : memref<2x!tpu.dma_semaphore, #tpu.memory_space<semaphore_mem>> -> memref<1x!tpu.dma_semaphore, #tpu.memory_space<semaphore_mem>>
    %11 = tpu.memref_squeeze %10 : memref<1x!tpu.dma_semaphore, #tpu.memory_space<semaphore_mem>> -> memref<!tpu.dma_semaphore, #tpu.memory_space<semaphore_mem>>
    tpu.enqueue_dma source(%7 : memref<1x384xf32, #tpu.memory_space<any>>) target(%9 : memref<1x384xf32, #tpu.memory_space<vmem>>) target_semaphore(%11 : memref<!tpu.dma_semaphore, #tpu.memory_space<semaphore_mem>>)
    %c1_i32 = arith.constant 1 : i32
    %12 = arith.addi %3, %c1_i32 : i32
    %13 = arith.index_cast %12 : i32 to index
    %14 = memref.load %arg1[%13] : memref<512xi32, #tpu.memory_space<smem>>
    %c0_i32_7 = arith.constant 0 : i32
    %c0_i32_8 = arith.constant 0 : i32
    %c0_i32_9 = arith.constant 0 : i32
    %15 = tpu.memref_slice %arg2[%14, %c0_i32_9] : memref<50x384xf32, #tpu.memory_space<any>> -> memref<1x384xf32, #tpu.memory_space<any>>
    %c1_i32_10 = arith.constant 1 : i32
    %c0_i32_11 = arith.constant 0 : i32
    %16 = tpu.memref_slice %arg11[%c0_i32_7, %c1_i32_10, %c0_i32_11] : memref<2x32x384xf32, #tpu.memory_space<vmem>> -> memref<1x1x384xf32, #tpu.memory_space<vmem>>
    %17 = tpu.memref_squeeze %16 : memref<1x1x384xf32, #tpu.memory_space<vmem>> -> memref<1x384xf32, #tpu.memory_space<vmem>>
    %18 = tpu.memref_slice %arg13[%c0_i32_8] : memref<2x!tpu.dma_semaphore, #tpu.memory_space<semaphore_mem>> -> memref<1x!tpu.dma_semaphore, #tpu.memory_space<semaphore_mem>>
    %19 = tpu.memref_squeeze %18 : memref<1x!tpu.dma_semaphore, #tpu.memory_space<semaphore_mem>> -> memref<!tpu.dma_semaphore, #tpu.memory_space<semaphore_mem>>
    tpu.enqueue_dma source(%15 : memref<1x384xf32, #tpu.memory_space<any>>) target(%17 : memref<1x384xf32, #tpu.memory_space<vmem>>) target_semaphore(%19 : memref<!tpu.dma_semaphore, #tpu.memory_space<semaphore_mem>>)
    %c2_i32 = arith.constant 2 : i32
    %20 = arith.addi %3, %c2_i32 : i32
    %21 = arith.index_cast %20 : i32 to index
    %22 = memref.load %arg1[%21] : memref<512xi32, #tpu.memory_space<smem>>
    %c0_i32_12 = arith.constant 0 : i32
    %c0_i32_13 = arith.constant 0 : i32
    %c0_i32_14 = arith.constant 0 : i32
    %23 = tpu.memref_slice %arg2[%22, %c0_i32_14] : memref<50x384xf32, #tpu.memory_space<any>> -> memref<1x384xf32, #tpu.memory_space<any>>
    %c2_i32_15 = arith.constant 2 : i32
    %c0_i32_16 = arith.constant 0 : i32
    %24 = tpu.memref_slice %arg11[%c0_i32_12, %c2_i32_15, %c0_i32_16] : memref<2x32x384xf32, #tpu.memory_space<vmem>> -> memref<1x1x384xf32, #tpu.memory_space<vmem>>
    %25 = tpu.memref_squeeze %24 : memref<1x1x384xf32, #tpu.memory_space<vmem>> -> memref<1x384xf32, #tpu.memory_space<vmem>>
    %26 = tpu.memref_slice %arg13[%c0_i32_13] : memref<2x!tpu.dma_semaphore, #tpu.memory_space<semaphore_mem>> -> memref<1x!tpu.dma_semaphore, #tpu.memory_space<semaphore_mem>>
    %27 = tpu.memref_squeeze %26 : memref<1x!tpu.dma_semaphore, #tpu.memory_space<semaphore_mem>> -> memref<!tpu.dma_semaphore, #tpu.memory_space<semaphore_mem>>
    tpu.enqueue_dma source(%23 : memref<1x384xf32, #tpu.memory_space<any>>) target(%25 : memref<1x384xf32, #tpu.memory_space<vmem>>) target_semaphore(%27 : memref<!tpu.dma_semaphore, #tpu.memory_space<semaphore_mem>>)
    %c3_i32 = arith.constant 3 : i32
    %28 = arith.addi %3, %c3_i32 : i32
    %29 = arith.index_cast %28 : i32 to index
    %30 = memref.load %arg1[%29] : memref<512xi32, #tpu.memory_space<smem>>
    %c0_i32_17 = arith.constant 0 : i32
    %c0_i32_18 = arith.constant 0 : i32
    %c0_i32_19 = arith.constant 0 : i32
    %31 = tpu.memref_slice %arg2[%30, %c0_i32_19] : memref<50x384xf32, #tpu.memory_space<any>> -> memref<1x384xf32, #tpu.memory_space<any>>
    %c3_i32_20 = arith.constant 3 : i32
    %c0_i32_21 = arith.constant 0 : i32
    %32 = tpu.memref_slice %arg11[%c0_i32_17, %c3_i32_20, %c0_i32_21] : memref<2x32x384xf32, #tpu.memory_space<vmem>> -> memref<1x1x384xf32, #tpu.memory_space<vmem>>
    %33 = tpu.memref_squeeze %32 : memref<1x1x384xf32, #tpu.memory_space<vmem>> -> memref<1x384xf32, #tpu.memory_space<vmem>>
    %34 = tpu.memref_slice %arg13[%c0_i32_18] : memref<2x!tpu.dma_semaphore, #tpu.memory_space<semaphore_mem>> -> memref<1x!tpu.dma_semaphore, #tpu.memory_space<semaphore_mem>>
    %35 = tpu.memref_squeeze %34 : memref<1x!tpu.dma_semaphore, #tpu.memory_space<semaphore_mem>> -> memref<!tpu.dma_semaphore, #tpu.memory_space<semaphore_mem>>
    tpu.enqueue_dma source(%31 : memref<1x384xf32, #tpu.memory_space<any>>) target(%33 : memref<1x384xf32, #tpu.memory_space<vmem>>) target_semaphore(%35 : memref<!tpu.dma_semaphore, #tpu.memory_space<semaphore_mem>>)
    %c4_i32 = arith.constant 4 : i32
    %36 = arith.addi %3, %c4_i32 : i32
    %37 = arith.index_cast %36 : i32 to index
    %38 = memref.load %arg1[%37] : memref<512xi32, #tpu.memory_space<smem>>
    %c0_i32_22 = arith.constant 0 : i32
    %c0_i32_23 = arith.constant 0 : i32
    %c0_i32_24 = arith.constant 0 : i32
    %39 = tpu.memref_slice %arg2[%38, %c0_i32_24] : memref<50x384xf32, #tpu.memory_space<any>> -> memref<1x384xf32, #tpu.memory_space<any>>
    %c4_i32_25 = arith.constant 4 : i32
    %c0_i32_26 = arith.constant 0 : i32
    %40 = tpu.memref_slice %arg11[%c0_i32_22, %c4_i32_25, %c0_i32_26] : memref<2x32x384xf32, #tpu.memory_space<vmem>> -> memref<1x1x384xf32, #tpu.memory_space<vmem>>
    %41 = tpu.memref_squeeze %40 : memref<1x1x384xf32, #tpu.memory_space<vmem>> -> memref<1x384xf32, #tpu.memory_space<vmem>>
    %42 = tpu.memref_slice %arg13[%c0_i32_23] : memref<2x!tpu.dma_semaphore, #tpu.memory_space<semaphore_mem>> -> memref<1x!tpu.dma_semaphore, #tpu.memory_space<semaphore_mem>>
    %43 = tpu.memref_squeeze %42 : memref<1x!tpu.dma_semaphore, #tpu.memory_space<semaphore_mem>> -> memref<!tpu.dma_semaphore, #tpu.memory_space<semaphore_mem>>
    tpu.enqueue_dma source(%39 : memref<1x384xf32, #tpu.memory_space<any>>) target(%41 : memref<1x384xf32, #tpu.memory_space<vmem>>) target_semaphore(%43 : memref<!tpu.dma_semaphore, #tpu.memory_space<semaphore_mem>>)
    %c5_i32 = arith.constant 5 : i32
    %44 = arith.addi %3, %c5_i32 : i32
    %45 = arith.index_cast %44 : i32 to index
    %46 = memref.load %arg1[%45] : memref<512xi32, #tpu.memory_space<smem>>
    %c0_i32_27 = arith.constant 0 : i32
    %c0_i32_28 = arith.constant 0 : i32
    %c0_i32_29 = arith.constant 0 : i32
    %47 = tpu.memref_slice %arg2[%46, %c0_i32_29] : memref<50x384xf32, #tpu.memory_space<any>> -> memref<1x384xf32, #tpu.memory_space<any>>
    %c5_i32_30 = arith.constant 5 : i32
    %c0_i32_31 = arith.constant 0 : i32
    %48 = tpu.memref_slice %arg11[%c0_i32_27, %c5_i32_30, %c0_i32_31] : memref<2x32x384xf32, #tpu.memory_space<vmem>> -> memref<1x1x384xf32, #tpu.memory_space<vmem>>
    %49 = tpu.memref_squeeze %48 : memref<1x1x384xf32, #tpu.memory_space<vmem>> -> memref<1x384xf32, #tpu.memory_space<vmem>>
    %50 = tpu.memref_slice %arg13[%c0_i32_28] : memref<2x!tpu.dma_semaphore, #tpu.memory_space<semaphore_mem>> -> memref<1x!tpu.dma_semaphore, #tpu.memory_space<semaphore_mem>>
    %51 = tpu.memref_squeeze %50 : memref<1x!tpu.dma_semaphore, #tpu.memory_space<semaphore_mem>> -> memref<!tpu.dma_semaphore, #tpu.memory_space<semaphore_mem>>
    tpu.enqueue_dma source(%47 : memref<1x384xf32, #tpu.memory_space<any>>) target(%49 : memref<1x384xf32, #tpu.memory_space<vmem>>) target_semaphore(%51 : memref<!tpu.dma_semaphore, #tpu.memory_space<semaphore_mem>>)
    %c6_i32 = arith.constant 6 : i32
    %52 = arith.addi %3, %c6_i32 : i32
    %53 = arith.index_cast %52 : i32 to index
    %54 = memref.load %arg1[%53] : memref<512xi32, #tpu.memory_space<smem>>
    %c0_i32_32 = arith.constant 0 : i32
    %c0_i32_33 = arith.constant 0 : i32
    %c0_i32_34 = arith.constant 0 : i32
    %55 = tpu.memref_slice %arg2[%54, %c0_i32_34] : memref<50x384xf32, #tpu.memory_space<any>> -> memref<1x384xf32, #tpu.memory_space<any>>
    %c6_i32_35 = arith.constant 6 : i32
    %c0_i32_36 = arith.constant 0 : i32
    %56 = tpu.memref_slice %arg11[%c0_i32_32, %c6_i32_35, %c0_i32_36] : memref<2x32x384xf32, #tpu.memory_space<vmem>> -> memref<1x1x384xf32, #tpu.memory_space<vmem>>
    %57 = tpu.memref_squeeze %56 : memref<1x1x384xf32, #tpu.memory_space<vmem>> -> memref<1x384xf32, #tpu.memory_space<vmem>>
    %58 = tpu.memref_slice %arg13[%c0_i32_33] : memref<2x!tpu.dma_semaphore, #tpu.memory_space<semaphore_mem>> -> memref<1x!tpu.dma_semaphore, #tpu.memory_space<semaphore_mem>>
    %59 = tpu.memref_squeeze %58 : memref<1x!tpu.dma_semaphore, #tpu.memory_space<semaphore_mem>> -> memref<!tpu.dma_semaphore, #tpu.memory_space<semaphore_mem>>
    tpu.enqueue_dma source(%55 : memref<1x384xf32, #tpu.memory_space<any>>) target(%57 : memref<1x384xf32, #tpu.memory_space<vmem>>) target_semaphore(%59 : memref<!tpu.dma_semaphore, #tpu.memory_space<semaphore_mem>>)
    %c7_i32 = arith.constant 7 : i32
    %60 = arith.addi %3, %c7_i32 : i32
    %61 = arith.index_cast %60 : i32 to index
    %62 = memref.load %arg1[%61] : memref<512xi32, #tpu.memory_space<smem>>
    %c0_i32_37 = arith.constant 0 : i32
    %c0_i32_38 = arith.constant 0 : i32
    %c0_i32_39 = arith.constant 0 : i32
    %63 = tpu.memref_slice %arg2[%62, %c0_i32_39] : memref<50x384xf32, #tpu.memory_space<any>> -> memref<1x384xf32, #tpu.memory_space<any>>
    %c7_i32_40 = arith.constant 7 : i32
    %c0_i32_41 = arith.constant 0 : i32
    %64 = tpu.memref_slice %arg11[%c0_i32_37, %c7_i32_40, %c0_i32_41] : memref<2x32x384xf32, #tpu.memory_space<vmem>> -> memref<1x1x384xf32, #tpu.memory_space<vmem>>
    %65 = tpu.memref_squeeze %64 : memref<1x1x384xf32, #tpu.memory_space<vmem>> -> memref<1x384xf32, #tpu.memory_space<vmem>>
    %66 = tpu.memref_slice %arg13[%c0_i32_38] : memref<2x!tpu.dma_semaphore, #tpu.memory_space<semaphore_mem>> -> memref<1x!tpu.dma_semaphore, #tpu.memory_space<semaphore_mem>>
    %67 = tpu.memref_squeeze %66 : memref<1x!tpu.dma_semaphore, #tpu.memory_space<semaphore_mem>> -> memref<!tpu.dma_semaphore, #tpu.memory_space<semaphore_mem>>
    tpu.enqueue_dma source(%63 : memref<1x384xf32, #tpu.memory_space<any>>) target(%65 : memref<1x384xf32, #tpu.memory_space<vmem>>) target_semaphore(%67 : memref<!tpu.dma_semaphore, #tpu.memory_space<semaphore_mem>>)
    %c8_i32 = arith.constant 8 : i32
    %68 = arith.addi %3, %c8_i32 : i32
    %69 = arith.index_cast %68 : i32 to index
    %70 = memref.load %arg1[%69] : memref<512xi32, #tpu.memory_space<smem>>
    %c0_i32_42 = arith.constant 0 : i32
    %c0_i32_43 = arith.constant 0 : i32
    %c0_i32_44 = arith.constant 0 : i32
    %71 = tpu.memref_slice %arg2[%70, %c0_i32_44] : memref<50x384xf32, #tpu.memory_space<any>> -> memref<1x384xf32, #tpu.memory_space<any>>
    %c8_i32_45 = arith.constant 8 : i32
    %c0_i32_46 = arith.constant 0 : i32
    %72 = tpu.memref_slice %arg11[%c0_i32_42, %c8_i32_45, %c0_i32_46] : memref<2x32x384xf32, #tpu.memory_space<vmem>> -> memref<1x1x384xf32, #tpu.memory_space<vmem>>
    %73 = tpu.memref_squeeze %72 : memref<1x1x384xf32, #tpu.memory_space<vmem>> -> memref<1x384xf32, #tpu.memory_space<vmem>>
    %74 = tpu.memref_slice %arg13[%c0_i32_43] : memref<2x!tpu.dma_semaphore, #tpu.memory_space<semaphore_mem>> -> memref<1x!tpu.dma_semaphore, #tpu.memory_space<semaphore_mem>>
    %75 = tpu.memref_squeeze %74 : memref<1x!tpu.dma_semaphore, #tpu.memory_space<semaphore_mem>> -> memref<!tpu.dma_semaphore, #tpu.memory_space<semaphore_mem>>
    tpu.enqueue_dma source(%71 : memref<1x384xf32, #tpu.memory_space<any>>) target(%73 : memref<1x384xf32, #tpu.memory_space<vmem>>) target_semaphore(%75 : memref<!tpu.dma_semaphore, #tpu.memory_space<semaphore_mem>>)
    %c9_i32 = arith.constant 9 : i32
    %76 = arith.addi %3, %c9_i32 : i32
    %77 = arith.index_cast %76 : i32 to index
    %78 = memref.load %arg1[%77] : memref<512xi32, #tpu.memory_space<smem>>
    %c0_i32_47 = arith.constant 0 : i32
    %c0_i32_48 = arith.constant 0 : i32
    %c0_i32_49 = arith.constant 0 : i32
    %79 = tpu.memref_slice %arg2[%78, %c0_i32_49] : memref<50x384xf32, #tpu.memory_space<any>> -> memref<1x384xf32, #tpu.memory_space<any>>
    %c9_i32_50 = arith.constant 9 : i32
    %c0_i32_51 = arith.constant 0 : i32
    %80 = tpu.memref_slice %arg11[%c0_i32_47, %c9_i32_50, %c0_i32_51] : memref<2x32x384xf32, #tpu.memory_space<vmem>> -> memref<1x1x384xf32, #tpu.memory_space<vmem>>
    %81 = tpu.memref_squeeze %80 : memref<1x1x384xf32, #tpu.memory_space<vmem>> -> memref<1x384xf32, #tpu.memory_space<vmem>>
    %82 = tpu.memref_slice %arg13[%c0_i32_48] : memref<2x!tpu.dma_semaphore, #tpu.memory_space<semaphore_mem>> -> memref<1x!tpu.dma_semaphore, #tpu.memory_space<semaphore_mem>>
    %83 = tpu.memref_squeeze %82 : memref<1x!tpu.dma_semaphore, #tpu.memory_space<semaphore_mem>> -> memref<!tpu.dma_semaphore, #tpu.memory_space<semaphore_mem>>
    tpu.enqueue_dma source(%79 : memref<1x384xf32, #tpu.memory_space<any>>) target(%81 : memref<1x384xf32, #tpu.memory_space<vmem>>) target_semaphore(%83 : memref<!tpu.dma_semaphore, #tpu.memory_space<semaphore_mem>>)
    %c10_i32 = arith.constant 10 : i32
    %84 = arith.addi %3, %c10_i32 : i32
    %85 = arith.index_cast %84 : i32 to index
    %86 = memref.load %arg1[%85] : memref<512xi32, #tpu.memory_space<smem>>
    %c0_i32_52 = arith.constant 0 : i32
    %c0_i32_53 = arith.constant 0 : i32
    %c0_i32_54 = arith.constant 0 : i32
    %87 = tpu.memref_slice %arg2[%86, %c0_i32_54] : memref<50x384xf32, #tpu.memory_space<any>> -> memref<1x384xf32, #tpu.memory_space<any>>
    %c10_i32_55 = arith.constant 10 : i32
    %c0_i32_56 = arith.constant 0 : i32
    %88 = tpu.memref_slice %arg11[%c0_i32_52, %c10_i32_55, %c0_i32_56] : memref<2x32x384xf32, #tpu.memory_space<vmem>> -> memref<1x1x384xf32, #tpu.memory_space<vmem>>
    %89 = tpu.memref_squeeze %88 : memref<1x1x384xf32, #tpu.memory_space<vmem>> -> memref<1x384xf32, #tpu.memory_space<vmem>>
    %90 = tpu.memref_slice %arg13[%c0_i32_53] : memref<2x!tpu.dma_semaphore, #tpu.memory_space<semaphore_mem>> -> memref<1x!tpu.dma_semaphore, #tpu.memory_space<semaphore_mem>>
    %91 = tpu.memref_squeeze %90 : memref<1x!tpu.dma_semaphore, #tpu.memory_space<semaphore_mem>> -> memref<!tpu.dma_semaphore, #tpu.memory_space<semaphore_mem>>
    tpu.enqueue_dma source(%87 : memref<1x384xf32, #tpu.memory_space<any>>) target(%89 : memref<1x384xf32, #tpu.memory_space<vmem>>) target_semaphore(%91 : memref<!tpu.dma_semaphore, #tpu.memory_space<semaphore_mem>>)
    %c11_i32 = arith.constant 11 : i32
    %92 = arith.addi %3, %c11_i32 : i32
    %93 = arith.index_cast %92 : i32 to index
    %94 = memref.load %arg1[%93] : memref<512xi32, #tpu.memory_space<smem>>
    %c0_i32_57 = arith.constant 0 : i32
    %c0_i32_58 = arith.constant 0 : i32
    %c0_i32_59 = arith.constant 0 : i32
    %95 = tpu.memref_slice %arg2[%94, %c0_i32_59] : memref<50x384xf32, #tpu.memory_space<any>> -> memref<1x384xf32, #tpu.memory_space<any>>
    %c11_i32_60 = arith.constant 11 : i32
    %c0_i32_61 = arith.constant 0 : i32
    %96 = tpu.memref_slice %arg11[%c0_i32_57, %c11_i32_60, %c0_i32_61] : memref<2x32x384xf32, #tpu.memory_space<vmem>> -> memref<1x1x384xf32, #tpu.memory_space<vmem>>
    %97 = tpu.memref_squeeze %96 : memref<1x1x384xf32, #tpu.memory_space<vmem>> -> memref<1x384xf32, #tpu.memory_space<vmem>>
    %98 = tpu.memref_slice %arg13[%c0_i32_58] : memref<2x!tpu.dma_semaphore, #tpu.memory_space<semaphore_mem>> -> memref<1x!tpu.dma_semaphore, #tpu.memory_space<semaphore_mem>>
    %99 = tpu.memref_squeeze %98 : memref<1x!tpu.dma_semaphore, #tpu.memory_space<semaphore_mem>> -> memref<!tpu.dma_semaphore, #tpu.memory_space<semaphore_mem>>
    tpu.enqueue_dma source(%95 : memref<1x384xf32, #tpu.memory_space<any>>) target(%97 : memref<1x384xf32, #tpu.memory_space<vmem>>) target_semaphore(%99 : memref<!tpu.dma_semaphore, #tpu.memory_space<semaphore_mem>>)
    %c12_i32 = arith.constant 12 : i32
    %100 = arith.addi %3, %c12_i32 : i32
    %101 = arith.index_cast %100 : i32 to index
    %102 = memref.load %arg1[%101] : memref<512xi32, #tpu.memory_space<smem>>
    %c0_i32_62 = arith.constant 0 : i32
    %c0_i32_63 = arith.constant 0 : i32
    %c0_i32_64 = arith.constant 0 : i32
    %103 = tpu.memref_slice %arg2[%102, %c0_i32_64] : memref<50x384xf32, #tpu.memory_space<any>> -> memref<1x384xf32, #tpu.memory_space<any>>
    %c12_i32_65 = arith.constant 12 : i32
    %c0_i32_66 = arith.constant 0 : i32
    %104 = tpu.memref_slice %arg11[%c0_i32_62, %c12_i32_65, %c0_i32_66] : memref<2x32x384xf32, #tpu.memory_space<vmem>> -> memref<1x1x384xf32, #tpu.memory_space<vmem>>
    %105 = tpu.memref_squeeze %104 : memref<1x1x384xf32, #tpu.memory_space<vmem>> -> memref<1x384xf32, #tpu.memory_space<vmem>>
    %106 = tpu.memref_slice %arg13[%c0_i32_63] : memref<2x!tpu.dma_semaphore, #tpu.memory_space<semaphore_mem>> -> memref<1x!tpu.dma_semaphore, #tpu.memory_space<semaphore_mem>>
    %107 = tpu.memref_squeeze %106 : memref<1x!tpu.dma_semaphore, #tpu.memory_space<semaphore_mem>> -> memref<!tpu.dma_semaphore, #tpu.memory_space<semaphore_mem>>
    tpu.enqueue_dma source(%103 : memref<1x384xf32, #tpu.memory_space<any>>) target(%105 : memref<1x384xf32, #tpu.memory_space<vmem>>) target_semaphore(%107 : memref<!tpu.dma_semaphore, #tpu.memory_space<semaphore_mem>>)
    %c13_i32 = arith.constant 13 : i32
    %108 = arith.addi %3, %c13_i32 : i32
    %109 = arith.index_cast %108 : i32 to index
    %110 = memref.load %arg1[%109] : memref<512xi32, #tpu.memory_space<smem>>
    %c0_i32_67 = arith.constant 0 : i32
    %c0_i32_68 = arith.constant 0 : i32
    %c0_i32_69 = arith.constant 0 : i32
    %111 = tpu.memref_slice %arg2[%110, %c0_i32_69] : memref<50x384xf32, #tpu.memory_space<any>> -> memref<1x384xf32, #tpu.memory_space<any>>
    %c13_i32_70 = arith.constant 13 : i32
    %c0_i32_71 = arith.constant 0 : i32
    %112 = tpu.memref_slice %arg11[%c0_i32_67, %c13_i32_70, %c0_i32_71] : memref<2x32x384xf32, #tpu.memory_space<vmem>> -> memref<1x1x384xf32, #tpu.memory_space<vmem>>
    %113 = tpu.memref_squeeze %112 : memref<1x1x384xf32, #tpu.memory_space<vmem>> -> memref<1x384xf32, #tpu.memory_space<vmem>>
    %114 = tpu.memref_slice %arg13[%c0_i32_68] : memref<2x!tpu.dma_semaphore, #tpu.memory_space<semaphore_mem>> -> memref<1x!tpu.dma_semaphore, #tpu.memory_space<semaphore_mem>>
    %115 = tpu.memref_squeeze %114 : memref<1x!tpu.dma_semaphore, #tpu.memory_space<semaphore_mem>> -> memref<!tpu.dma_semaphore, #tpu.memory_space<semaphore_mem>>
    tpu.enqueue_dma source(%111 : memref<1x384xf32, #tpu.memory_space<any>>) target(%113 : memref<1x384xf32, #tpu.memory_space<vmem>>) target_semaphore(%115 : memref<!tpu.dma_semaphore, #tpu.memory_space<semaphore_mem>>)
    %c14_i32 = arith.constant 14 : i32
    %116 = arith.addi %3, %c14_i32 : i32
    %117 = arith.index_cast %116 : i32 to index
    %118 = memref.load %arg1[%117] : memref<512xi32, #tpu.memory_space<smem>>
    %c0_i32_72 = arith.constant 0 : i32
    %c0_i32_73 = arith.constant 0 : i32
    %c0_i32_74 = arith.constant 0 : i32
    %119 = tpu.memref_slice %arg2[%118, %c0_i32_74] : memref<50x384xf32, #tpu.memory_space<any>> -> memref<1x384xf32, #tpu.memory_space<any>>
    %c14_i32_75 = arith.constant 14 : i32
    %c0_i32_76 = arith.constant 0 : i32
    %120 = tpu.memref_slice %arg11[%c0_i32_72, %c14_i32_75, %c0_i32_76] : memref<2x32x384xf32, #tpu.memory_space<vmem>> -> memref<1x1x384xf32, #tpu.memory_space<vmem>>
    %121 = tpu.memref_squeeze %120 : memref<1x1x384xf32, #tpu.memory_space<vmem>> -> memref<1x384xf32, #tpu.memory_space<vmem>>
    %122 = tpu.memref_slice %arg13[%c0_i32_73] : memref<2x!tpu.dma_semaphore, #tpu.memory_space<semaphore_mem>> -> memref<1x!tpu.dma_semaphore, #tpu.memory_space<semaphore_mem>>
    %123 = tpu.memref_squeeze %122 : memref<1x!tpu.dma_semaphore, #tpu.memory_space<semaphore_mem>> -> memref<!tpu.dma_semaphore, #tpu.memory_space<semaphore_mem>>
    tpu.enqueue_dma source(%119 : memref<1x384xf32, #tpu.memory_space<any>>) target(%121 : memref<1x384xf32, #tpu.memory_space<vmem>>) target_semaphore(%123 : memref<!tpu.dma_semaphore, #tpu.memory_space<semaphore_mem>>)
    %c15_i32 = arith.constant 15 : i32
    %124 = arith.addi %3, %c15_i32 : i32
    %125 = arith.index_cast %124 : i32 to index
    %126 = memref.load %arg1[%125] : memref<512xi32, #tpu.memory_space<smem>>
    %c0_i32_77 = arith.constant 0 : i32
    %c0_i32_78 = arith.constant 0 : i32
    %c0_i32_79 = arith.constant 0 : i32
    %127 = tpu.memref_slice %arg2[%126, %c0_i32_79] : memref<50x384xf32, #tpu.memory_space<any>> -> memref<1x384xf32, #tpu.memory_space<any>>
    %c15_i32_80 = arith.constant 15 : i32
    %c0_i32_81 = arith.constant 0 : i32
    %128 = tpu.memref_slice %arg11[%c0_i32_77, %c15_i32_80, %c0_i32_81] : memref<2x32x384xf32, #tpu.memory_space<vmem>> -> memref<1x1x384xf32, #tpu.memory_space<vmem>>
    %129 = tpu.memref_squeeze %128 : memref<1x1x384xf32, #tpu.memory_space<vmem>> -> memref<1x384xf32, #tpu.memory_space<vmem>>
    %130 = tpu.memref_slice %arg13[%c0_i32_78] : memref<2x!tpu.dma_semaphore, #tpu.memory_space<semaphore_mem>> -> memref<1x!tpu.dma_semaphore, #tpu.memory_space<semaphore_mem>>
    %131 = tpu.memref_squeeze %130 : memref<1x!tpu.dma_semaphore, #tpu.memory_space<semaphore_mem>> -> memref<!tpu.dma_semaphore, #tpu.memory_space<semaphore_mem>>
    tpu.enqueue_dma source(%127 : memref<1x384xf32, #tpu.memory_space<any>>) target(%129 : memref<1x384xf32, #tpu.memory_space<vmem>>) target_semaphore(%131 : memref<!tpu.dma_semaphore, #tpu.memory_space<semaphore_mem>>)
    %c16_i32 = arith.constant 16 : i32
    %132 = arith.addi %3, %c16_i32 : i32
    %133 = arith.index_cast %132 : i32 to index
    %134 = memref.load %arg1[%133] : memref<512xi32, #tpu.memory_space<smem>>
    %c0_i32_82 = arith.constant 0 : i32
    %c0_i32_83 = arith.constant 0 : i32
    %c0_i32_84 = arith.constant 0 : i32
    %135 = tpu.memref_slice %arg2[%134, %c0_i32_84] : memref<50x384xf32, #tpu.memory_space<any>> -> memref<1x384xf32, #tpu.memory_space<any>>
    %c16_i32_85 = arith.constant 16 : i32
    %c0_i32_86 = arith.constant 0 : i32
    %136 = tpu.memref_slice %arg11[%c0_i32_82, %c16_i32_85, %c0_i32_86] : memref<2x32x384xf32, #tpu.memory_space<vmem>> -> memref<1x1x384xf32, #tpu.memory_space<vmem>>
    %137 = tpu.memref_squeeze %136 : memref<1x1x384xf32, #tpu.memory_space<vmem>> -> memref<1x384xf32, #tpu.memory_space<vmem>>
    %138 = tpu.memref_slice %arg13[%c0_i32_83] : memref<2x!tpu.dma_semaphore, #tpu.memory_space<semaphore_mem>> -> memref<1x!tpu.dma_semaphore, #tpu.memory_space<semaphore_mem>>
    %139 = tpu.memref_squeeze %138 : memref<1x!tpu.dma_semaphore, #tpu.memory_space<semaphore_mem>> -> memref<!tpu.dma_semaphore, #tpu.memory_space<semaphore_mem>>
    tpu.enqueue_dma source(%135 : memref<1x384xf32, #tpu.memory_space<any>>) target(%137 : memref<1x384xf32, #tpu.memory_space<vmem>>) target_semaphore(%139 : memref<!tpu.dma_semaphore, #tpu.memory_space<semaphore_mem>>)
    %c17_i32 = arith.constant 17 : i32
    %140 = arith.addi %3, %c17_i32 : i32
    %141 = arith.index_cast %140 : i32 to index
    %142 = memref.load %arg1[%141] : memref<512xi32, #tpu.memory_space<smem>>
    %c0_i32_87 = arith.constant 0 : i32
    %c0_i32_88 = arith.constant 0 : i32
    %c0_i32_89 = arith.constant 0 : i32
    %143 = tpu.memref_slice %arg2[%142, %c0_i32_89] : memref<50x384xf32, #tpu.memory_space<any>> -> memref<1x384xf32, #tpu.memory_space<any>>
    %c17_i32_90 = arith.constant 17 : i32
    %c0_i32_91 = arith.constant 0 : i32
    %144 = tpu.memref_slice %arg11[%c0_i32_87, %c17_i32_90, %c0_i32_91] : memref<2x32x384xf32, #tpu.memory_space<vmem>> -> memref<1x1x384xf32, #tpu.memory_space<vmem>>
    %145 = tpu.memref_squeeze %144 : memref<1x1x384xf32, #tpu.memory_space<vmem>> -> memref<1x384xf32, #tpu.memory_space<vmem>>
    %146 = tpu.memref_slice %arg13[%c0_i32_88] : memref<2x!tpu.dma_semaphore, #tpu.memory_space<semaphore_mem>> -> memref<1x!tpu.dma_semaphore, #tpu.memory_space<semaphore_mem>>
    %147 = tpu.memref_squeeze %146 : memref<1x!tpu.dma_semaphore, #tpu.memory_space<semaphore_mem>> -> memref<!tpu.dma_semaphore, #tpu.memory_space<semaphore_mem>>
    tpu.enqueue_dma source(%143 : memref<1x384xf32, #tpu.memory_space<any>>) target(%145 : memref<1x384xf32, #tpu.memory_space<vmem>>) target_semaphore(%147 : memref<!tpu.dma_semaphore, #tpu.memory_space<semaphore_mem>>)
    %c18_i32 = arith.constant 18 : i32
    %148 = arith.addi %3, %c18_i32 : i32
    %149 = arith.index_cast %148 : i32 to index
    %150 = memref.load %arg1[%149] : memref<512xi32, #tpu.memory_space<smem>>
    %c0_i32_92 = arith.constant 0 : i32
    %c0_i32_93 = arith.constant 0 : i32
    %c0_i32_94 = arith.constant 0 : i32
    %151 = tpu.memref_slice %arg2[%150, %c0_i32_94] : memref<50x384xf32, #tpu.memory_space<any>> -> memref<1x384xf32, #tpu.memory_space<any>>
    %c18_i32_95 = arith.constant 18 : i32
    %c0_i32_96 = arith.constant 0 : i32
    %152 = tpu.memref_slice %arg11[%c0_i32_92, %c18_i32_95, %c0_i32_96] : memref<2x32x384xf32, #tpu.memory_space<vmem>> -> memref<1x1x384xf32, #tpu.memory_space<vmem>>
    %153 = tpu.memref_squeeze %152 : memref<1x1x384xf32, #tpu.memory_space<vmem>> -> memref<1x384xf32, #tpu.memory_space<vmem>>
    %154 = tpu.memref_slice %arg13[%c0_i32_93] : memref<2x!tpu.dma_semaphore, #tpu.memory_space<semaphore_mem>> -> memref<1x!tpu.dma_semaphore, #tpu.memory_space<semaphore_mem>>
    %155 = tpu.memref_squeeze %154 : memref<1x!tpu.dma_semaphore, #tpu.memory_space<semaphore_mem>> -> memref<!tpu.dma_semaphore, #tpu.memory_space<semaphore_mem>>
    tpu.enqueue_dma source(%151 : memref<1x384xf32, #tpu.memory_space<any>>) target(%153 : memref<1x384xf32, #tpu.memory_space<vmem>>) target_semaphore(%155 : memref<!tpu.dma_semaphore, #tpu.memory_space<semaphore_mem>>)
    %c19_i32 = arith.constant 19 : i32
    %156 = arith.addi %3, %c19_i32 : i32
    %157 = arith.index_cast %156 : i32 to index
    %158 = memref.load %arg1[%157] : memref<512xi32, #tpu.memory_space<smem>>
    %c0_i32_97 = arith.constant 0 : i32
    %c0_i32_98 = arith.constant 0 : i32
    %c0_i32_99 = arith.constant 0 : i32
    %159 = tpu.memref_slice %arg2[%158, %c0_i32_99] : memref<50x384xf32, #tpu.memory_space<any>> -> memref<1x384xf32, #tpu.memory_space<any>>
    %c19_i32_100 = arith.constant 19 : i32
    %c0_i32_101 = arith.constant 0 : i32
    %160 = tpu.memref_slice %arg11[%c0_i32_97, %c19_i32_100, %c0_i32_101] : memref<2x32x384xf32, #tpu.memory_space<vmem>> -> memref<1x1x384xf32, #tpu.memory_space<vmem>>
    %161 = tpu.memref_squeeze %160 : memref<1x1x384xf32, #tpu.memory_space<vmem>> -> memref<1x384xf32, #tpu.memory_space<vmem>>
    %162 = tpu.memref_slice %arg13[%c0_i32_98] : memref<2x!tpu.dma_semaphore, #tpu.memory_space<semaphore_mem>> -> memref<1x!tpu.dma_semaphore, #tpu.memory_space<semaphore_mem>>
    %163 = tpu.memref_squeeze %162 : memref<1x!tpu.dma_semaphore, #tpu.memory_space<semaphore_mem>> -> memref<!tpu.dma_semaphore, #tpu.memory_space<semaphore_mem>>
    tpu.enqueue_dma source(%159 : memref<1x384xf32, #tpu.memory_space<any>>) target(%161 : memref<1x384xf32, #tpu.memory_space<vmem>>) target_semaphore(%163 : memref<!tpu.dma_semaphore, #tpu.memory_space<semaphore_mem>>)
    %c20_i32 = arith.constant 20 : i32
    %164 = arith.addi %3, %c20_i32 : i32
    %165 = arith.index_cast %164 : i32 to index
    %166 = memref.load %arg1[%165] : memref<512xi32, #tpu.memory_space<smem>>
    %c0_i32_102 = arith.constant 0 : i32
    %c0_i32_103 = arith.constant 0 : i32
    %c0_i32_104 = arith.constant 0 : i32
    %167 = tpu.memref_slice %arg2[%166, %c0_i32_104] : memref<50x384xf32, #tpu.memory_space<any>> -> memref<1x384xf32, #tpu.memory_space<any>>
    %c20_i32_105 = arith.constant 20 : i32
    %c0_i32_106 = arith.constant 0 : i32
    %168 = tpu.memref_slice %arg11[%c0_i32_102, %c20_i32_105, %c0_i32_106] : memref<2x32x384xf32, #tpu.memory_space<vmem>> -> memref<1x1x384xf32, #tpu.memory_space<vmem>>
    %169 = tpu.memref_squeeze %168 : memref<1x1x384xf32, #tpu.memory_space<vmem>> -> memref<1x384xf32, #tpu.memory_space<vmem>>
    %170 = tpu.memref_slice %arg13[%c0_i32_103] : memref<2x!tpu.dma_semaphore, #tpu.memory_space<semaphore_mem>> -> memref<1x!tpu.dma_semaphore, #tpu.memory_space<semaphore_mem>>
    %171 = tpu.memref_squeeze %170 : memref<1x!tpu.dma_semaphore, #tpu.memory_space<semaphore_mem>> -> memref<!tpu.dma_semaphore, #tpu.memory_space<semaphore_mem>>
    tpu.enqueue_dma source(%167 : memref<1x384xf32, #tpu.memory_space<any>>) target(%169 : memref<1x384xf32, #tpu.memory_space<vmem>>) target_semaphore(%171 : memref<!tpu.dma_semaphore, #tpu.memory_space<semaphore_mem>>)
    %c21_i32 = arith.constant 21 : i32
    %172 = arith.addi %3, %c21_i32 : i32
    %173 = arith.index_cast %172 : i32 to index
    %174 = memref.load %arg1[%173] : memref<512xi32, #tpu.memory_space<smem>>
    %c0_i32_107 = arith.constant 0 : i32
    %c0_i32_108 = arith.constant 0 : i32
    %c0_i32_109 = arith.constant 0 : i32
    %175 = tpu.memref_slice %arg2[%174, %c0_i32_109] : memref<50x384xf32, #tpu.memory_space<any>> -> memref<1x384xf32, #tpu.memory_space<any>>
    %c21_i32_110 = arith.constant 21 : i32
    %c0_i32_111 = arith.constant 0 : i32
    %176 = tpu.memref_slice %arg11[%c0_i32_107, %c21_i32_110, %c0_i32_111] : memref<2x32x384xf32, #tpu.memory_space<vmem>> -> memref<1x1x384xf32, #tpu.memory_space<vmem>>
    %177 = tpu.memref_squeeze %176 : memref<1x1x384xf32, #tpu.memory_space<vmem>> -> memref<1x384xf32, #tpu.memory_space<vmem>>
    %178 = tpu.memref_slice %arg13[%c0_i32_108] : memref<2x!tpu.dma_semaphore, #tpu.memory_space<semaphore_mem>> -> memref<1x!tpu.dma_semaphore, #tpu.memory_space<semaphore_mem>>
    %179 = tpu.memref_squeeze %178 : memref<1x!tpu.dma_semaphore, #tpu.memory_space<semaphore_mem>> -> memref<!tpu.dma_semaphore, #tpu.memory_space<semaphore_mem>>
    tpu.enqueue_dma source(%175 : memref<1x384xf32, #tpu.memory_space<any>>) target(%177 : memref<1x384xf32, #tpu.memory_space<vmem>>) target_semaphore(%179 : memref<!tpu.dma_semaphore, #tpu.memory_space<semaphore_mem>>)
    %c22_i32 = arith.constant 22 : i32
    %180 = arith.addi %3, %c22_i32 : i32
    %181 = arith.index_cast %180 : i32 to index
    %182 = memref.load %arg1[%181] : memref<512xi32, #tpu.memory_space<smem>>
    %c0_i32_112 = arith.constant 0 : i32
    %c0_i32_113 = arith.constant 0 : i32
    %c0_i32_114 = arith.constant 0 : i32
    %183 = tpu.memref_slice %arg2[%182, %c0_i32_114] : memref<50x384xf32, #tpu.memory_space<any>> -> memref<1x384xf32, #tpu.memory_space<any>>
    %c22_i32_115 = arith.constant 22 : i32
    %c0_i32_116 = arith.constant 0 : i32
    %184 = tpu.memref_slice %arg11[%c0_i32_112, %c22_i32_115, %c0_i32_116] : memref<2x32x384xf32, #tpu.memory_space<vmem>> -> memref<1x1x384xf32, #tpu.memory_space<vmem>>
    %185 = tpu.memref_squeeze %184 : memref<1x1x384xf32, #tpu.memory_space<vmem>> -> memref<1x384xf32, #tpu.memory_space<vmem>>
    %186 = tpu.memref_slice %arg13[%c0_i32_113] : memref<2x!tpu.dma_semaphore, #tpu.memory_space<semaphore_mem>> -> memref<1x!tpu.dma_semaphore, #tpu.memory_space<semaphore_mem>>
    %187 = tpu.memref_squeeze %186 : memref<1x!tpu.dma_semaphore, #tpu.memory_space<semaphore_mem>> -> memref<!tpu.dma_semaphore, #tpu.memory_space<semaphore_mem>>
    tpu.enqueue_dma source(%183 : memref<1x384xf32, #tpu.memory_space<any>>) target(%185 : memref<1x384xf32, #tpu.memory_space<vmem>>) target_semaphore(%187 : memref<!tpu.dma_semaphore, #tpu.memory_space<semaphore_mem>>)
    %c23_i32 = arith.constant 23 : i32
    %188 = arith.addi %3, %c23_i32 : i32
    %189 = arith.index_cast %188 : i32 to index
    %190 = memref.load %arg1[%189] : memref<512xi32, #tpu.memory_space<smem>>
    %c0_i32_117 = arith.constant 0 : i32
    %c0_i32_118 = arith.constant 0 : i32
    %c0_i32_119 = arith.constant 0 : i32
    %191 = tpu.memref_slice %arg2[%190, %c0_i32_119] : memref<50x384xf32, #tpu.memory_space<any>> -> memref<1x384xf32, #tpu.memory_space<any>>
    %c23_i32_120 = arith.constant 23 : i32
    %c0_i32_121 = arith.constant 0 : i32
    %192 = tpu.memref_slice %arg11[%c0_i32_117, %c23_i32_120, %c0_i32_121] : memref<2x32x384xf32, #tpu.memory_space<vmem>> -> memref<1x1x384xf32, #tpu.memory_space<vmem>>
    %193 = tpu.memref_squeeze %192 : memref<1x1x384xf32, #tpu.memory_space<vmem>> -> memref<1x384xf32, #tpu.memory_space<vmem>>
    %194 = tpu.memref_slice %arg13[%c0_i32_118] : memref<2x!tpu.dma_semaphore, #tpu.memory_space<semaphore_mem>> -> memref<1x!tpu.dma_semaphore, #tpu.memory_space<semaphore_mem>>
    %195 = tpu.memref_squeeze %194 : memref<1x!tpu.dma_semaphore, #tpu.memory_space<semaphore_mem>> -> memref<!tpu.dma_semaphore, #tpu.memory_space<semaphore_mem>>
    tpu.enqueue_dma source(%191 : memref<1x384xf32, #tpu.memory_space<any>>) target(%193 : memref<1x384xf32, #tpu.memory_space<vmem>>) target_semaphore(%195 : memref<!tpu.dma_semaphore, #tpu.memory_space<semaphore_mem>>)
    %c24_i32 = arith.constant 24 : i32
    %196 = arith.addi %3, %c24_i32 : i32
    %197 = arith.index_cast %196 : i32 to index
    %198 = memref.load %arg1[%197] : memref<512xi32, #tpu.memory_space<smem>>
    %c0_i32_122 = arith.constant 0 : i32
    %c0_i32_123 = arith.constant 0 : i32
    %c0_i32_124 = arith.constant 0 : i32
    %199 = tpu.memref_slice %arg2[%198, %c0_i32_124] : memref<50x384xf32, #tpu.memory_space<any>> -> memref<1x384xf32, #tpu.memory_space<any>>
    %c24_i32_125 = arith.constant 24 : i32
    %c0_i32_126 = arith.constant 0 : i32
    %200 = tpu.memref_slice %arg11[%c0_i32_122, %c24_i32_125, %c0_i32_126] : memref<2x32x384xf32, #tpu.memory_space<vmem>> -> memref<1x1x384xf32, #tpu.memory_space<vmem>>
    %201 = tpu.memref_squeeze %200 : memref<1x1x384xf32, #tpu.memory_space<vmem>> -> memref<1x384xf32, #tpu.memory_space<vmem>>
    %202 = tpu.memref_slice %arg13[%c0_i32_123] : memref<2x!tpu.dma_semaphore, #tpu.memory_space<semaphore_mem>> -> memref<1x!tpu.dma_semaphore, #tpu.memory_space<semaphore_mem>>
    %203 = tpu.memref_squeeze %202 : memref<1x!tpu.dma_semaphore, #tpu.memory_space<semaphore_mem>> -> memref<!tpu.dma_semaphore, #tpu.memory_space<semaphore_mem>>
    tpu.enqueue_dma source(%199 : memref<1x384xf32, #tpu.memory_space<any>>) target(%201 : memref<1x384xf32, #tpu.memory_space<vmem>>) target_semaphore(%203 : memref<!tpu.dma_semaphore, #tpu.memory_space<semaphore_mem>>)
    %c25_i32 = arith.constant 25 : i32
    %204 = arith.addi %3, %c25_i32 : i32
    %205 = arith.index_cast %204 : i32 to index
    %206 = memref.load %arg1[%205] : memref<512xi32, #tpu.memory_space<smem>>
    %c0_i32_127 = arith.constant 0 : i32
    %c0_i32_128 = arith.constant 0 : i32
    %c0_i32_129 = arith.constant 0 : i32
    %207 = tpu.memref_slice %arg2[%206, %c0_i32_129] : memref<50x384xf32, #tpu.memory_space<any>> -> memref<1x384xf32, #tpu.memory_space<any>>
    %c25_i32_130 = arith.constant 25 : i32
    %c0_i32_131 = arith.constant 0 : i32
    %208 = tpu.memref_slice %arg11[%c0_i32_127, %c25_i32_130, %c0_i32_131] : memref<2x32x384xf32, #tpu.memory_space<vmem>> -> memref<1x1x384xf32, #tpu.memory_space<vmem>>
    %209 = tpu.memref_squeeze %208 : memref<1x1x384xf32, #tpu.memory_space<vmem>> -> memref<1x384xf32, #tpu.memory_space<vmem>>
    %210 = tpu.memref_slice %arg13[%c0_i32_128] : memref<2x!tpu.dma_semaphore, #tpu.memory_space<semaphore_mem>> -> memref<1x!tpu.dma_semaphore, #tpu.memory_space<semaphore_mem>>
    %211 = tpu.memref_squeeze %210 : memref<1x!tpu.dma_semaphore, #tpu.memory_space<semaphore_mem>> -> memref<!tpu.dma_semaphore, #tpu.memory_space<semaphore_mem>>
    tpu.enqueue_dma source(%207 : memref<1x384xf32, #tpu.memory_space<any>>) target(%209 : memref<1x384xf32, #tpu.memory_space<vmem>>) target_semaphore(%211 : memref<!tpu.dma_semaphore, #tpu.memory_space<semaphore_mem>>)
    %c26_i32 = arith.constant 26 : i32
    %212 = arith.addi %3, %c26_i32 : i32
    %213 = arith.index_cast %212 : i32 to index
    %214 = memref.load %arg1[%213] : memref<512xi32, #tpu.memory_space<smem>>
    %c0_i32_132 = arith.constant 0 : i32
    %c0_i32_133 = arith.constant 0 : i32
    %c0_i32_134 = arith.constant 0 : i32
    %215 = tpu.memref_slice %arg2[%214, %c0_i32_134] : memref<50x384xf32, #tpu.memory_space<any>> -> memref<1x384xf32, #tpu.memory_space<any>>
    %c26_i32_135 = arith.constant 26 : i32
    %c0_i32_136 = arith.constant 0 : i32
    %216 = tpu.memref_slice %arg11[%c0_i32_132, %c26_i32_135, %c0_i32_136] : memref<2x32x384xf32, #tpu.memory_space<vmem>> -> memref<1x1x384xf32, #tpu.memory_space<vmem>>
    %217 = tpu.memref_squeeze %216 : memref<1x1x384xf32, #tpu.memory_space<vmem>> -> memref<1x384xf32, #tpu.memory_space<vmem>>
    %218 = tpu.memref_slice %arg13[%c0_i32_133] : memref<2x!tpu.dma_semaphore, #tpu.memory_space<semaphore_mem>> -> memref<1x!tpu.dma_semaphore, #tpu.memory_space<semaphore_mem>>
    %219 = tpu.memref_squeeze %218 : memref<1x!tpu.dma_semaphore, #tpu.memory_space<semaphore_mem>> -> memref<!tpu.dma_semaphore, #tpu.memory_space<semaphore_mem>>
    tpu.enqueue_dma source(%215 : memref<1x384xf32, #tpu.memory_space<any>>) target(%217 : memref<1x384xf32, #tpu.memory_space<vmem>>) target_semaphore(%219 : memref<!tpu.dma_semaphore, #tpu.memory_space<semaphore_mem>>)
    %c27_i32 = arith.constant 27 : i32
    %220 = arith.addi %3, %c27_i32 : i32
    %221 = arith.index_cast %220 : i32 to index
    %222 = memref.load %arg1[%221] : memref<512xi32, #tpu.memory_space<smem>>
    %c0_i32_137 = arith.constant 0 : i32
    %c0_i32_138 = arith.constant 0 : i32
    %c0_i32_139 = arith.constant 0 : i32
    %223 = tpu.memref_slice %arg2[%222, %c0_i32_139] : memref<50x384xf32, #tpu.memory_space<any>> -> memref<1x384xf32, #tpu.memory_space<any>>
    %c27_i32_140 = arith.constant 27 : i32
    %c0_i32_141 = arith.constant 0 : i32
    %224 = tpu.memref_slice %arg11[%c0_i32_137, %c27_i32_140, %c0_i32_141] : memref<2x32x384xf32, #tpu.memory_space<vmem>> -> memref<1x1x384xf32, #tpu.memory_space<vmem>>
    %225 = tpu.memref_squeeze %224 : memref<1x1x384xf32, #tpu.memory_space<vmem>> -> memref<1x384xf32, #tpu.memory_space<vmem>>
    %226 = tpu.memref_slice %arg13[%c0_i32_138] : memref<2x!tpu.dma_semaphore, #tpu.memory_space<semaphore_mem>> -> memref<1x!tpu.dma_semaphore, #tpu.memory_space<semaphore_mem>>
    %227 = tpu.memref_squeeze %226 : memref<1x!tpu.dma_semaphore, #tpu.memory_space<semaphore_mem>> -> memref<!tpu.dma_semaphore, #tpu.memory_space<semaphore_mem>>
    tpu.enqueue_dma source(%223 : memref<1x384xf32, #tpu.memory_space<any>>) target(%225 : memref<1x384xf32, #tpu.memory_space<vmem>>) target_semaphore(%227 : memref<!tpu.dma_semaphore, #tpu.memory_space<semaphore_mem>>)
    %c28_i32 = arith.constant 28 : i32
    %228 = arith.addi %3, %c28_i32 : i32
    %229 = arith.index_cast %228 : i32 to index
    %230 = memref.load %arg1[%229] : memref<512xi32, #tpu.memory_space<smem>>
    %c0_i32_142 = arith.constant 0 : i32
    %c0_i32_143 = arith.constant 0 : i32
    %c0_i32_144 = arith.constant 0 : i32
    %231 = tpu.memref_slice %arg2[%230, %c0_i32_144] : memref<50x384xf32, #tpu.memory_space<any>> -> memref<1x384xf32, #tpu.memory_space<any>>
    %c28_i32_145 = arith.constant 28 : i32
    %c0_i32_146 = arith.constant 0 : i32
    %232 = tpu.memref_slice %arg11[%c0_i32_142, %c28_i32_145, %c0_i32_146] : memref<2x32x384xf32, #tpu.memory_space<vmem>> -> memref<1x1x384xf32, #tpu.memory_space<vmem>>
    %233 = tpu.memref_squeeze %232 : memref<1x1x384xf32, #tpu.memory_space<vmem>> -> memref<1x384xf32, #tpu.memory_space<vmem>>
    %234 = tpu.memref_slice %arg13[%c0_i32_143] : memref<2x!tpu.dma_semaphore, #tpu.memory_space<semaphore_mem>> -> memref<1x!tpu.dma_semaphore, #tpu.memory_space<semaphore_mem>>
    %235 = tpu.memref_squeeze %234 : memref<1x!tpu.dma_semaphore, #tpu.memory_space<semaphore_mem>> -> memref<!tpu.dma_semaphore, #tpu.memory_space<semaphore_mem>>
    tpu.enqueue_dma source(%231 : memref<1x384xf32, #tpu.memory_space<any>>) target(%233 : memref<1x384xf32, #tpu.memory_space<vmem>>) target_semaphore(%235 : memref<!tpu.dma_semaphore, #tpu.memory_space<semaphore_mem>>)
    %c29_i32 = arith.constant 29 : i32
    %236 = arith.addi %3, %c29_i32 : i32
    %237 = arith.index_cast %236 : i32 to index
    %238 = memref.load %arg1[%237] : memref<512xi32, #tpu.memory_space<smem>>
    %c0_i32_147 = arith.constant 0 : i32
    %c0_i32_148 = arith.constant 0 : i32
    %c0_i32_149 = arith.constant 0 : i32
    %239 = tpu.memref_slice %arg2[%238, %c0_i32_149] : memref<50x384xf32, #tpu.memory_space<any>> -> memref<1x384xf32, #tpu.memory_space<any>>
    %c29_i32_150 = arith.constant 29 : i32
    %c0_i32_151 = arith.constant 0 : i32
    %240 = tpu.memref_slice %arg11[%c0_i32_147, %c29_i32_150, %c0_i32_151] : memref<2x32x384xf32, #tpu.memory_space<vmem>> -> memref<1x1x384xf32, #tpu.memory_space<vmem>>
    %241 = tpu.memref_squeeze %240 : memref<1x1x384xf32, #tpu.memory_space<vmem>> -> memref<1x384xf32, #tpu.memory_space<vmem>>
    %242 = tpu.memref_slice %arg13[%c0_i32_148] : memref<2x!tpu.dma_semaphore, #tpu.memory_space<semaphore_mem>> -> memref<1x!tpu.dma_semaphore, #tpu.memory_space<semaphore_mem>>
    %243 = tpu.memref_squeeze %242 : memref<1x!tpu.dma_semaphore, #tpu.memory_space<semaphore_mem>> -> memref<!tpu.dma_semaphore, #tpu.memory_space<semaphore_mem>>
    tpu.enqueue_dma source(%239 : memref<1x384xf32, #tpu.memory_space<any>>) target(%241 : memref<1x384xf32, #tpu.memory_space<vmem>>) target_semaphore(%243 : memref<!tpu.dma_semaphore, #tpu.memory_space<semaphore_mem>>)
    %c30_i32 = arith.constant 30 : i32
    %244 = arith.addi %3, %c30_i32 : i32
    %245 = arith.index_cast %244 : i32 to index
    %246 = memref.load %arg1[%245] : memref<512xi32, #tpu.memory_space<smem>>
    %c0_i32_152 = arith.constant 0 : i32
    %c0_i32_153 = arith.constant 0 : i32
    %c0_i32_154 = arith.constant 0 : i32
    %247 = tpu.memref_slice %arg2[%246, %c0_i32_154] : memref<50x384xf32, #tpu.memory_space<any>> -> memref<1x384xf32, #tpu.memory_space<any>>
    %c30_i32_155 = arith.constant 30 : i32
    %c0_i32_156 = arith.constant 0 : i32
    %248 = tpu.memref_slice %arg11[%c0_i32_152, %c30_i32_155, %c0_i32_156] : memref<2x32x384xf32, #tpu.memory_space<vmem>> -> memref<1x1x384xf32, #tpu.memory_space<vmem>>
    %249 = tpu.memref_squeeze %248 : memref<1x1x384xf32, #tpu.memory_space<vmem>> -> memref<1x384xf32, #tpu.memory_space<vmem>>
    %250 = tpu.memref_slice %arg13[%c0_i32_153] : memref<2x!tpu.dma_semaphore, #tpu.memory_space<semaphore_mem>> -> memref<1x!tpu.dma_semaphore, #tpu.memory_space<semaphore_mem>>
    %251 = tpu.memref_squeeze %250 : memref<1x!tpu.dma_semaphore, #tpu.memory_space<semaphore_mem>> -> memref<!tpu.dma_semaphore, #tpu.memory_space<semaphore_mem>>
    tpu.enqueue_dma source(%247 : memref<1x384xf32, #tpu.memory_space<any>>) target(%249 : memref<1x384xf32, #tpu.memory_space<vmem>>) target_semaphore(%251 : memref<!tpu.dma_semaphore, #tpu.memory_space<semaphore_mem>>)
    %c31_i32 = arith.constant 31 : i32
    %252 = arith.addi %3, %c31_i32 : i32
    %253 = arith.index_cast %252 : i32 to index
    %254 = memref.load %arg1[%253] : memref<512xi32, #tpu.memory_space<smem>>
    %c0_i32_157 = arith.constant 0 : i32
    %c0_i32_158 = arith.constant 0 : i32
    %c0_i32_159 = arith.constant 0 : i32
    %255 = tpu.memref_slice %arg2[%254, %c0_i32_159] : memref<50x384xf32, #tpu.memory_space<any>> -> memref<1x384xf32, #tpu.memory_space<any>>
    %c31_i32_160 = arith.constant 31 : i32
    %c0_i32_161 = arith.constant 0 : i32
    %256 = tpu.memref_slice %arg11[%c0_i32_157, %c31_i32_160, %c0_i32_161] : memref<2x32x384xf32, #tpu.memory_space<vmem>> -> memref<1x1x384xf32, #tpu.memory_space<vmem>>
    %257 = tpu.memref_squeeze %256 : memref<1x1x384xf32, #tpu.memory_space<vmem>> -> memref<1x384xf32, #tpu.memory_space<vmem>>
    %258 = tpu.memref_slice %arg13[%c0_i32_158] : memref<2x!tpu.dma_semaphore, #tpu.memory_space<semaphore_mem>> -> memref<1x!tpu.dma_semaphore, #tpu.memory_space<semaphore_mem>>
    %259 = tpu.memref_squeeze %258 : memref<1x!tpu.dma_semaphore, #tpu.memory_space<semaphore_mem>> -> memref<!tpu.dma_semaphore, #tpu.memory_space<semaphore_mem>>
    tpu.enqueue_dma source(%255 : memref<1x384xf32, #tpu.memory_space<any>>) target(%257 : memref<1x384xf32, #tpu.memory_space<vmem>>) target_semaphore(%259 : memref<!tpu.dma_semaphore, #tpu.memory_space<semaphore_mem>>)
    %c0_i32_162 = arith.constant 0 : i32
    %c8_i32_163 = arith.constant 8 : i32
    %260 = arith.addi %c0_i32_162, %c8_i32_163 : i32
    %c1_i32_164 = arith.constant 1 : i32
    scf.for %arg14 = %c0_i32_162 to %260 step %c1_i32_164  : i32 {
      %c1_i32_191 = arith.constant 1 : i32
      %289 = arith.muli %arg14, %c1_i32_191 : i32
      %c0_i32_192 = arith.constant 0 : i32
      %290 = arith.addi %c0_i32_192, %289 : i32
      %c1_i32_193 = arith.constant 1 : i32
      %291 = arith.andi %290, %c1_i32_193 : i32
      %c0_i32_194 = arith.constant 0 : i32
      %c0_i32_195 = arith.constant 0 : i32
      %292 = tpu.memref_slice %arg2[%c0_i32_194, %c0_i32_195] : memref<50x384xf32, #tpu.memory_space<any>> -> memref<1x384xf32, #tpu.memory_space<any>>
      %c0_i32_196 = arith.constant 0 : i32
      %c0_i32_197 = arith.constant 0 : i32
      %293 = tpu.memref_slice %arg11[%291, %c0_i32_196, %c0_i32_197] : memref<2x32x384xf32, #tpu.memory_space<vmem>> -> memref<1x1x384xf32, #tpu.memory_space<vmem>>
      %294 = tpu.memref_squeeze %293 : memref<1x1x384xf32, #tpu.memory_space<vmem>> -> memref<1x384xf32, #tpu.memory_space<vmem>>
      %295 = tpu.memref_slice %arg13[%291] : memref<2x!tpu.dma_semaphore, #tpu.memory_space<semaphore_mem>> -> memref<1x!tpu.dma_semaphore, #tpu.memory_space<semaphore_mem>>
      %296 = tpu.memref_squeeze %295 : memref<1x!tpu.dma_semaphore, #tpu.memory_space<semaphore_mem>> -> memref<!tpu.dma_semaphore, #tpu.memory_space<semaphore_mem>>
      tpu.wait_dma2 semaphore(%296 : memref<!tpu.dma_semaphore, #tpu.memory_space<semaphore_mem>>) src(%292 : memref<1x384xf32, #tpu.memory_space<any>>) dst(%294 : memref<1x384xf32, #tpu.memory_space<vmem>>)
      %c0_i32_198 = arith.constant 0 : i32
      %c0_i32_199 = arith.constant 0 : i32
      %297 = tpu.memref_slice %arg2[%c0_i32_198, %c0_i32_199] : memref<50x384xf32, #tpu.memory_space<any>> -> memref<1x384xf32, #tpu.memory_space<any>>
      %c1_i32_200 = arith.constant 1 : i32
      %c0_i32_201 = arith.constant 0 : i32
      %298 = tpu.memref_slice %arg11[%291, %c1_i32_200, %c0_i32_201] : memref<2x32x384xf32, #tpu.memory_space<vmem>> -> memref<1x1x384xf32, #tpu.memory_space<vmem>>
      %299 = tpu.memref_squeeze %298 : memref<1x1x384xf32, #tpu.memory_space<vmem>> -> memref<1x384xf32, #tpu.memory_space<vmem>>
      %300 = tpu.memref_slice %arg13[%291] : memref<2x!tpu.dma_semaphore, #tpu.memory_space<semaphore_mem>> -> memref<1x!tpu.dma_semaphore, #tpu.memory_space<semaphore_mem>>
      %301 = tpu.memref_squeeze %300 : memref<1x!tpu.dma_semaphore, #tpu.memory_space<semaphore_mem>> -> memref<!tpu.dma_semaphore, #tpu.memory_space<semaphore_mem>>
      tpu.wait_dma2 semaphore(%301 : memref<!tpu.dma_semaphore, #tpu.memory_space<semaphore_mem>>) src(%297 : memref<1x384xf32, #tpu.memory_space<any>>) dst(%299 : memref<1x384xf32, #tpu.memory_space<vmem>>)
      %c0_i32_202 = arith.constant 0 : i32
      %c0_i32_203 = arith.constant 0 : i32
      %302 = tpu.memref_slice %arg2[%c0_i32_202, %c0_i32_203] : memref<50x384xf32, #tpu.memory_space<any>> -> memref<1x384xf32, #tpu.memory_space<any>>
      %c2_i32_204 = arith.constant 2 : i32
      %c0_i32_205 = arith.constant 0 : i32
      %303 = tpu.memref_slice %arg11[%291, %c2_i32_204, %c0_i32_205] : memref<2x32x384xf32, #tpu.memory_space<vmem>> -> memref<1x1x384xf32, #tpu.memory_space<vmem>>
      %304 = tpu.memref_squeeze %303 : memref<1x1x384xf32, #tpu.memory_space<vmem>> -> memref<1x384xf32, #tpu.memory_space<vmem>>
      %305 = tpu.memref_slice %arg13[%291] : memref<2x!tpu.dma_semaphore, #tpu.memory_space<semaphore_mem>> -> memref<1x!tpu.dma_semaphore, #tpu.memory_space<semaphore_mem>>
      %306 = tpu.memref_squeeze %305 : memref<1x!tpu.dma_semaphore, #tpu.memory_space<semaphore_mem>> -> memref<!tpu.dma_semaphore, #tpu.memory_space<semaphore_mem>>
      tpu.wait_dma2 semaphore(%306 : memref<!tpu.dma_semaphore, #tpu.memory_space<semaphore_mem>>) src(%302 : memref<1x384xf32, #tpu.memory_space<any>>) dst(%304 : memref<1x384xf32, #tpu.memory_space<vmem>>)
      %c0_i32_206 = arith.constant 0 : i32
      %c0_i32_207 = arith.constant 0 : i32
      %307 = tpu.memref_slice %arg2[%c0_i32_206, %c0_i32_207] : memref<50x384xf32, #tpu.memory_space<any>> -> memref<1x384xf32, #tpu.memory_space<any>>
      %c3_i32_208 = arith.constant 3 : i32
      %c0_i32_209 = arith.constant 0 : i32
      %308 = tpu.memref_slice %arg11[%291, %c3_i32_208, %c0_i32_209] : memref<2x32x384xf32, #tpu.memory_space<vmem>> -> memref<1x1x384xf32, #tpu.memory_space<vmem>>
      %309 = tpu.memref_squeeze %308 : memref<1x1x384xf32, #tpu.memory_space<vmem>> -> memref<1x384xf32, #tpu.memory_space<vmem>>
      %310 = tpu.memref_slice %arg13[%291] : memref<2x!tpu.dma_semaphore, #tpu.memory_space<semaphore_mem>> -> memref<1x!tpu.dma_semaphore, #tpu.memory_space<semaphore_mem>>
      %311 = tpu.memref_squeeze %310 : memref<1x!tpu.dma_semaphore, #tpu.memory_space<semaphore_mem>> -> memref<!tpu.dma_semaphore, #tpu.memory_space<semaphore_mem>>
      tpu.wait_dma2 semaphore(%311 : memref<!tpu.dma_semaphore, #tpu.memory_space<semaphore_mem>>) src(%307 : memref<1x384xf32, #tpu.memory_space<any>>) dst(%309 : memref<1x384xf32, #tpu.memory_space<vmem>>)
      %c0_i32_210 = arith.constant 0 : i32
      %c0_i32_211 = arith.constant 0 : i32
      %312 = tpu.memref_slice %arg2[%c0_i32_210, %c0_i32_211] : memref<50x384xf32, #tpu.memory_space<any>> -> memref<1x384xf32, #tpu.memory_space<any>>
      %c4_i32_212 = arith.constant 4 : i32
      %c0_i32_213 = arith.constant 0 : i32
      %313 = tpu.memref_slice %arg11[%291, %c4_i32_212, %c0_i32_213] : memref<2x32x384xf32, #tpu.memory_space<vmem>> -> memref<1x1x384xf32, #tpu.memory_space<vmem>>
      %314 = tpu.memref_squeeze %313 : memref<1x1x384xf32, #tpu.memory_space<vmem>> -> memref<1x384xf32, #tpu.memory_space<vmem>>
      %315 = tpu.memref_slice %arg13[%291] : memref<2x!tpu.dma_semaphore, #tpu.memory_space<semaphore_mem>> -> memref<1x!tpu.dma_semaphore, #tpu.memory_space<semaphore_mem>>
      %316 = tpu.memref_squeeze %315 : memref<1x!tpu.dma_semaphore, #tpu.memory_space<semaphore_mem>> -> memref<!tpu.dma_semaphore, #tpu.memory_space<semaphore_mem>>
      tpu.wait_dma2 semaphore(%316 : memref<!tpu.dma_semaphore, #tpu.memory_space<semaphore_mem>>) src(%312 : memref<1x384xf32, #tpu.memory_space<any>>) dst(%314 : memref<1x384xf32, #tpu.memory_space<vmem>>)
      %c0_i32_214 = arith.constant 0 : i32
      %c0_i32_215 = arith.constant 0 : i32
      %317 = tpu.memref_slice %arg2[%c0_i32_214, %c0_i32_215] : memref<50x384xf32, #tpu.memory_space<any>> -> memref<1x384xf32, #tpu.memory_space<any>>
      %c5_i32_216 = arith.constant 5 : i32
      %c0_i32_217 = arith.constant 0 : i32
      %318 = tpu.memref_slice %arg11[%291, %c5_i32_216, %c0_i32_217] : memref<2x32x384xf32, #tpu.memory_space<vmem>> -> memref<1x1x384xf32, #tpu.memory_space<vmem>>
      %319 = tpu.memref_squeeze %318 : memref<1x1x384xf32, #tpu.memory_space<vmem>> -> memref<1x384xf32, #tpu.memory_space<vmem>>
      %320 = tpu.memref_slice %arg13[%291] : memref<2x!tpu.dma_semaphore, #tpu.memory_space<semaphore_mem>> -> memref<1x!tpu.dma_semaphore, #tpu.memory_space<semaphore_mem>>
      %321 = tpu.memref_squeeze %320 : memref<1x!tpu.dma_semaphore, #tpu.memory_space<semaphore_mem>> -> memref<!tpu.dma_semaphore, #tpu.memory_space<semaphore_mem>>
      tpu.wait_dma2 semaphore(%321 : memref<!tpu.dma_semaphore, #tpu.memory_space<semaphore_mem>>) src(%317 : memref<1x384xf32, #tpu.memory_space<any>>) dst(%319 : memref<1x384xf32, #tpu.memory_space<vmem>>)
      %c0_i32_218 = arith.constant 0 : i32
      %c0_i32_219 = arith.constant 0 : i32
      %322 = tpu.memref_slice %arg2[%c0_i32_218, %c0_i32_219] : memref<50x384xf32, #tpu.memory_space<any>> -> memref<1x384xf32, #tpu.memory_space<any>>
      %c6_i32_220 = arith.constant 6 : i32
      %c0_i32_221 = arith.constant 0 : i32
      %323 = tpu.memref_slice %arg11[%291, %c6_i32_220, %c0_i32_221] : memref<2x32x384xf32, #tpu.memory_space<vmem>> -> memref<1x1x384xf32, #tpu.memory_space<vmem>>
      %324 = tpu.memref_squeeze %323 : memref<1x1x384xf32, #tpu.memory_space<vmem>> -> memref<1x384xf32, #tpu.memory_space<vmem>>
      %325 = tpu.memref_slice %arg13[%291] : memref<2x!tpu.dma_semaphore, #tpu.memory_space<semaphore_mem>> -> memref<1x!tpu.dma_semaphore, #tpu.memory_space<semaphore_mem>>
      %326 = tpu.memref_squeeze %325 : memref<1x!tpu.dma_semaphore, #tpu.memory_space<semaphore_mem>> -> memref<!tpu.dma_semaphore, #tpu.memory_space<semaphore_mem>>
      tpu.wait_dma2 semaphore(%326 : memref<!tpu.dma_semaphore, #tpu.memory_space<semaphore_mem>>) src(%322 : memref<1x384xf32, #tpu.memory_space<any>>) dst(%324 : memref<1x384xf32, #tpu.memory_space<vmem>>)
      %c0_i32_222 = arith.constant 0 : i32
      %c0_i32_223 = arith.constant 0 : i32
      %327 = tpu.memref_slice %arg2[%c0_i32_222, %c0_i32_223] : memref<50x384xf32, #tpu.memory_space<any>> -> memref<1x384xf32, #tpu.memory_space<any>>
      %c7_i32_224 = arith.constant 7 : i32
      %c0_i32_225 = arith.constant 0 : i32
      %328 = tpu.memref_slice %arg11[%291, %c7_i32_224, %c0_i32_225] : memref<2x32x384xf32, #tpu.memory_space<vmem>> -> memref<1x1x384xf32, #tpu.memory_space<vmem>>
      %329 = tpu.memref_squeeze %328 : memref<1x1x384xf32, #tpu.memory_space<vmem>> -> memref<1x384xf32, #tpu.memory_space<vmem>>
      %330 = tpu.memref_slice %arg13[%291] : memref<2x!tpu.dma_semaphore, #tpu.memory_space<semaphore_mem>> -> memref<1x!tpu.dma_semaphore, #tpu.memory_space<semaphore_mem>>
      %331 = tpu.memref_squeeze %330 : memref<1x!tpu.dma_semaphore, #tpu.memory_space<semaphore_mem>> -> memref<!tpu.dma_semaphore, #tpu.memory_space<semaphore_mem>>
      tpu.wait_dma2 semaphore(%331 : memref<!tpu.dma_semaphore, #tpu.memory_space<semaphore_mem>>) src(%327 : memref<1x384xf32, #tpu.memory_space<any>>) dst(%329 : memref<1x384xf32, #tpu.memory_space<vmem>>)
      %c0_i32_226 = arith.constant 0 : i32
      %c0_i32_227 = arith.constant 0 : i32
      %332 = tpu.memref_slice %arg2[%c0_i32_226, %c0_i32_227] : memref<50x384xf32, #tpu.memory_space<any>> -> memref<1x384xf32, #tpu.memory_space<any>>
      %c8_i32_228 = arith.constant 8 : i32
      %c0_i32_229 = arith.constant 0 : i32
      %333 = tpu.memref_slice %arg11[%291, %c8_i32_228, %c0_i32_229] : memref<2x32x384xf32, #tpu.memory_space<vmem>> -> memref<1x1x384xf32, #tpu.memory_space<vmem>>
      %334 = tpu.memref_squeeze %333 : memref<1x1x384xf32, #tpu.memory_space<vmem>> -> memref<1x384xf32, #tpu.memory_space<vmem>>
      %335 = tpu.memref_slice %arg13[%291] : memref<2x!tpu.dma_semaphore, #tpu.memory_space<semaphore_mem>> -> memref<1x!tpu.dma_semaphore, #tpu.memory_space<semaphore_mem>>
      %336 = tpu.memref_squeeze %335 : memref<1x!tpu.dma_semaphore, #tpu.memory_space<semaphore_mem>> -> memref<!tpu.dma_semaphore, #tpu.memory_space<semaphore_mem>>
      tpu.wait_dma2 semaphore(%336 : memref<!tpu.dma_semaphore, #tpu.memory_space<semaphore_mem>>) src(%332 : memref<1x384xf32, #tpu.memory_space<any>>) dst(%334 : memref<1x384xf32, #tpu.memory_space<vmem>>)
      %c0_i32_230 = arith.constant 0 : i32
      %c0_i32_231 = arith.constant 0 : i32
      %337 = tpu.memref_slice %arg2[%c0_i32_230, %c0_i32_231] : memref<50x384xf32, #tpu.memory_space<any>> -> memref<1x384xf32, #tpu.memory_space<any>>
      %c9_i32_232 = arith.constant 9 : i32
      %c0_i32_233 = arith.constant 0 : i32
      %338 = tpu.memref_slice %arg11[%291, %c9_i32_232, %c0_i32_233] : memref<2x32x384xf32, #tpu.memory_space<vmem>> -> memref<1x1x384xf32, #tpu.memory_space<vmem>>
      %339 = tpu.memref_squeeze %338 : memref<1x1x384xf32, #tpu.memory_space<vmem>> -> memref<1x384xf32, #tpu.memory_space<vmem>>
      %340 = tpu.memref_slice %arg13[%291] : memref<2x!tpu.dma_semaphore, #tpu.memory_space<semaphore_mem>> -> memref<1x!tpu.dma_semaphore, #tpu.memory_space<semaphore_mem>>
      %341 = tpu.memref_squeeze %340 : memref<1x!tpu.dma_semaphore, #tpu.memory_space<semaphore_mem>> -> memref<!tpu.dma_semaphore, #tpu.memory_space<semaphore_mem>>
      tpu.wait_dma2 semaphore(%341 : memref<!tpu.dma_semaphore, #tpu.memory_space<semaphore_mem>>) src(%337 : memref<1x384xf32, #tpu.memory_space<any>>) dst(%339 : memref<1x384xf32, #tpu.memory_space<vmem>>)
      %c0_i32_234 = arith.constant 0 : i32
      %c0_i32_235 = arith.constant 0 : i32
      %342 = tpu.memref_slice %arg2[%c0_i32_234, %c0_i32_235] : memref<50x384xf32, #tpu.memory_space<any>> -> memref<1x384xf32, #tpu.memory_space<any>>
      %c10_i32_236 = arith.constant 10 : i32
      %c0_i32_237 = arith.constant 0 : i32
      %343 = tpu.memref_slice %arg11[%291, %c10_i32_236, %c0_i32_237] : memref<2x32x384xf32, #tpu.memory_space<vmem>> -> memref<1x1x384xf32, #tpu.memory_space<vmem>>
      %344 = tpu.memref_squeeze %343 : memref<1x1x384xf32, #tpu.memory_space<vmem>> -> memref<1x384xf32, #tpu.memory_space<vmem>>
      %345 = tpu.memref_slice %arg13[%291] : memref<2x!tpu.dma_semaphore, #tpu.memory_space<semaphore_mem>> -> memref<1x!tpu.dma_semaphore, #tpu.memory_space<semaphore_mem>>
      %346 = tpu.memref_squeeze %345 : memref<1x!tpu.dma_semaphore, #tpu.memory_space<semaphore_mem>> -> memref<!tpu.dma_semaphore, #tpu.memory_space<semaphore_mem>>
      tpu.wait_dma2 semaphore(%346 : memref<!tpu.dma_semaphore, #tpu.memory_space<semaphore_mem>>) src(%342 : memref<1x384xf32, #tpu.memory_space<any>>) dst(%344 : memref<1x384xf32, #tpu.memory_space<vmem>>)
      %c0_i32_238 = arith.constant 0 : i32
      %c0_i32_239 = arith.constant 0 : i32
      %347 = tpu.memref_slice %arg2[%c0_i32_238, %c0_i32_239] : memref<50x384xf32, #tpu.memory_space<any>> -> memref<1x384xf32, #tpu.memory_space<any>>
      %c11_i32_240 = arith.constant 11 : i32
      %c0_i32_241 = arith.constant 0 : i32
      %348 = tpu.memref_slice %arg11[%291, %c11_i32_240, %c0_i32_241] : memref<2x32x384xf32, #tpu.memory_space<vmem>> -> memref<1x1x384xf32, #tpu.memory_space<vmem>>
      %349 = tpu.memref_squeeze %348 : memref<1x1x384xf32, #tpu.memory_space<vmem>> -> memref<1x384xf32, #tpu.memory_space<vmem>>
      %350 = tpu.memref_slice %arg13[%291] : memref<2x!tpu.dma_semaphore, #tpu.memory_space<semaphore_mem>> -> memref<1x!tpu.dma_semaphore, #tpu.memory_space<semaphore_mem>>
      %351 = tpu.memref_squeeze %350 : memref<1x!tpu.dma_semaphore, #tpu.memory_space<semaphore_mem>> -> memref<!tpu.dma_semaphore, #tpu.memory_space<semaphore_mem>>
      tpu.wait_dma2 semaphore(%351 : memref<!tpu.dma_semaphore, #tpu.memory_space<semaphore_mem>>) src(%347 : memref<1x384xf32, #tpu.memory_space<any>>) dst(%349 : memref<1x384xf32, #tpu.memory_space<vmem>>)
      %c0_i32_242 = arith.constant 0 : i32
      %c0_i32_243 = arith.constant 0 : i32
      %352 = tpu.memref_slice %arg2[%c0_i32_242, %c0_i32_243] : memref<50x384xf32, #tpu.memory_space<any>> -> memref<1x384xf32, #tpu.memory_space<any>>
      %c12_i32_244 = arith.constant 12 : i32
      %c0_i32_245 = arith.constant 0 : i32
      %353 = tpu.memref_slice %arg11[%291, %c12_i32_244, %c0_i32_245] : memref<2x32x384xf32, #tpu.memory_space<vmem>> -> memref<1x1x384xf32, #tpu.memory_space<vmem>>
      %354 = tpu.memref_squeeze %353 : memref<1x1x384xf32, #tpu.memory_space<vmem>> -> memref<1x384xf32, #tpu.memory_space<vmem>>
      %355 = tpu.memref_slice %arg13[%291] : memref<2x!tpu.dma_semaphore, #tpu.memory_space<semaphore_mem>> -> memref<1x!tpu.dma_semaphore, #tpu.memory_space<semaphore_mem>>
      %356 = tpu.memref_squeeze %355 : memref<1x!tpu.dma_semaphore, #tpu.memory_space<semaphore_mem>> -> memref<!tpu.dma_semaphore, #tpu.memory_space<semaphore_mem>>
      tpu.wait_dma2 semaphore(%356 : memref<!tpu.dma_semaphore, #tpu.memory_space<semaphore_mem>>) src(%352 : memref<1x384xf32, #tpu.memory_space<any>>) dst(%354 : memref<1x384xf32, #tpu.memory_space<vmem>>)
      %c0_i32_246 = arith.constant 0 : i32
      %c0_i32_247 = arith.constant 0 : i32
      %357 = tpu.memref_slice %arg2[%c0_i32_246, %c0_i32_247] : memref<50x384xf32, #tpu.memory_space<any>> -> memref<1x384xf32, #tpu.memory_space<any>>
      %c13_i32_248 = arith.constant 13 : i32
      %c0_i32_249 = arith.constant 0 : i32
      %358 = tpu.memref_slice %arg11[%291, %c13_i32_248, %c0_i32_249] : memref<2x32x384xf32, #tpu.memory_space<vmem>> -> memref<1x1x384xf32, #tpu.memory_space<vmem>>
      %359 = tpu.memref_squeeze %358 : memref<1x1x384xf32, #tpu.memory_space<vmem>> -> memref<1x384xf32, #tpu.memory_space<vmem>>
      %360 = tpu.memref_slice %arg13[%291] : memref<2x!tpu.dma_semaphore, #tpu.memory_space<semaphore_mem>> -> memref<1x!tpu.dma_semaphore, #tpu.memory_space<semaphore_mem>>
      %361 = tpu.memref_squeeze %360 : memref<1x!tpu.dma_semaphore, #tpu.memory_space<semaphore_mem>> -> memref<!tpu.dma_semaphore, #tpu.memory_space<semaphore_mem>>
      tpu.wait_dma2 semaphore(%361 : memref<!tpu.dma_semaphore, #tpu.memory_space<semaphore_mem>>) src(%357 : memref<1x384xf32, #tpu.memory_space<any>>) dst(%359 : memref<1x384xf32, #tpu.memory_space<vmem>>)
      %c0_i32_250 = arith.constant 0 : i32
      %c0_i32_251 = arith.constant 0 : i32
      %362 = tpu.memref_slice %arg2[%c0_i32_250, %c0_i32_251] : memref<50x384xf32, #tpu.memory_space<any>> -> memref<1x384xf32, #tpu.memory_space<any>>
      %c14_i32_252 = arith.constant 14 : i32
      %c0_i32_253 = arith.constant 0 : i32
      %363 = tpu.memref_slice %arg11[%291, %c14_i32_252, %c0_i32_253] : memref<2x32x384xf32, #tpu.memory_space<vmem>> -> memref<1x1x384xf32, #tpu.memory_space<vmem>>
      %364 = tpu.memref_squeeze %363 : memref<1x1x384xf32, #tpu.memory_space<vmem>> -> memref<1x384xf32, #tpu.memory_space<vmem>>
      %365 = tpu.memref_slice %arg13[%291] : memref<2x!tpu.dma_semaphore, #tpu.memory_space<semaphore_mem>> -> memref<1x!tpu.dma_semaphore, #tpu.memory_space<semaphore_mem>>
      %366 = tpu.memref_squeeze %365 : memref<1x!tpu.dma_semaphore, #tpu.memory_space<semaphore_mem>> -> memref<!tpu.dma_semaphore, #tpu.memory_space<semaphore_mem>>
      tpu.wait_dma2 semaphore(%366 : memref<!tpu.dma_semaphore, #tpu.memory_space<semaphore_mem>>) src(%362 : memref<1x384xf32, #tpu.memory_space<any>>) dst(%364 : memref<1x384xf32, #tpu.memory_space<vmem>>)
      %c0_i32_254 = arith.constant 0 : i32
      %c0_i32_255 = arith.constant 0 : i32
      %367 = tpu.memref_slice %arg2[%c0_i32_254, %c0_i32_255] : memref<50x384xf32, #tpu.memory_space<any>> -> memref<1x384xf32, #tpu.memory_space<any>>
      %c15_i32_256 = arith.constant 15 : i32
      %c0_i32_257 = arith.constant 0 : i32
      %368 = tpu.memref_slice %arg11[%291, %c15_i32_256, %c0_i32_257] : memref<2x32x384xf32, #tpu.memory_space<vmem>> -> memref<1x1x384xf32, #tpu.memory_space<vmem>>
      %369 = tpu.memref_squeeze %368 : memref<1x1x384xf32, #tpu.memory_space<vmem>> -> memref<1x384xf32, #tpu.memory_space<vmem>>
      %370 = tpu.memref_slice %arg13[%291] : memref<2x!tpu.dma_semaphore, #tpu.memory_space<semaphore_mem>> -> memref<1x!tpu.dma_semaphore, #tpu.memory_space<semaphore_mem>>
      %371 = tpu.memref_squeeze %370 : memref<1x!tpu.dma_semaphore, #tpu.memory_space<semaphore_mem>> -> memref<!tpu.dma_semaphore, #tpu.memory_space<semaphore_mem>>
      tpu.wait_dma2 semaphore(%371 : memref<!tpu.dma_semaphore, #tpu.memory_space<semaphore_mem>>) src(%367 : memref<1x384xf32, #tpu.memory_space<any>>) dst(%369 : memref<1x384xf32, #tpu.memory_space<vmem>>)
      %c0_i32_258 = arith.constant 0 : i32
      %c0_i32_259 = arith.constant 0 : i32
      %372 = tpu.memref_slice %arg2[%c0_i32_258, %c0_i32_259] : memref<50x384xf32, #tpu.memory_space<any>> -> memref<1x384xf32, #tpu.memory_space<any>>
      %c16_i32_260 = arith.constant 16 : i32
      %c0_i32_261 = arith.constant 0 : i32
      %373 = tpu.memref_slice %arg11[%291, %c16_i32_260, %c0_i32_261] : memref<2x32x384xf32, #tpu.memory_space<vmem>> -> memref<1x1x384xf32, #tpu.memory_space<vmem>>
      %374 = tpu.memref_squeeze %373 : memref<1x1x384xf32, #tpu.memory_space<vmem>> -> memref<1x384xf32, #tpu.memory_space<vmem>>
      %375 = tpu.memref_slice %arg13[%291] : memref<2x!tpu.dma_semaphore, #tpu.memory_space<semaphore_mem>> -> memref<1x!tpu.dma_semaphore, #tpu.memory_space<semaphore_mem>>
      %376 = tpu.memref_squeeze %375 : memref<1x!tpu.dma_semaphore, #tpu.memory_space<semaphore_mem>> -> memref<!tpu.dma_semaphore, #tpu.memory_space<semaphore_mem>>
      tpu.wait_dma2 semaphore(%376 : memref<!tpu.dma_semaphore, #tpu.memory_space<semaphore_mem>>) src(%372 : memref<1x384xf32, #tpu.memory_space<any>>) dst(%374 : memref<1x384xf32, #tpu.memory_space<vmem>>)
      %c0_i32_262 = arith.constant 0 : i32
      %c0_i32_263 = arith.constant 0 : i32
      %377 = tpu.memref_slice %arg2[%c0_i32_262, %c0_i32_263] : memref<50x384xf32, #tpu.memory_space<any>> -> memref<1x384xf32, #tpu.memory_space<any>>
      %c17_i32_264 = arith.constant 17 : i32
      %c0_i32_265 = arith.constant 0 : i32
      %378 = tpu.memref_slice %arg11[%291, %c17_i32_264, %c0_i32_265] : memref<2x32x384xf32, #tpu.memory_space<vmem>> -> memref<1x1x384xf32, #tpu.memory_space<vmem>>
      %379 = tpu.memref_squeeze %378 : memref<1x1x384xf32, #tpu.memory_space<vmem>> -> memref<1x384xf32, #tpu.memory_space<vmem>>
      %380 = tpu.memref_slice %arg13[%291] : memref<2x!tpu.dma_semaphore, #tpu.memory_space<semaphore_mem>> -> memref<1x!tpu.dma_semaphore, #tpu.memory_space<semaphore_mem>>
      %381 = tpu.memref_squeeze %380 : memref<1x!tpu.dma_semaphore, #tpu.memory_space<semaphore_mem>> -> memref<!tpu.dma_semaphore, #tpu.memory_space<semaphore_mem>>
      tpu.wait_dma2 semaphore(%381 : memref<!tpu.dma_semaphore, #tpu.memory_space<semaphore_mem>>) src(%377 : memref<1x384xf32, #tpu.memory_space<any>>) dst(%379 : memref<1x384xf32, #tpu.memory_space<vmem>>)
      %c0_i32_266 = arith.constant 0 : i32
      %c0_i32_267 = arith.constant 0 : i32
      %382 = tpu.memref_slice %arg2[%c0_i32_266, %c0_i32_267] : memref<50x384xf32, #tpu.memory_space<any>> -> memref<1x384xf32, #tpu.memory_space<any>>
      %c18_i32_268 = arith.constant 18 : i32
      %c0_i32_269 = arith.constant 0 : i32
      %383 = tpu.memref_slice %arg11[%291, %c18_i32_268, %c0_i32_269] : memref<2x32x384xf32, #tpu.memory_space<vmem>> -> memref<1x1x384xf32, #tpu.memory_space<vmem>>
      %384 = tpu.memref_squeeze %383 : memref<1x1x384xf32, #tpu.memory_space<vmem>> -> memref<1x384xf32, #tpu.memory_space<vmem>>
      %385 = tpu.memref_slice %arg13[%291] : memref<2x!tpu.dma_semaphore, #tpu.memory_space<semaphore_mem>> -> memref<1x!tpu.dma_semaphore, #tpu.memory_space<semaphore_mem>>
      %386 = tpu.memref_squeeze %385 : memref<1x!tpu.dma_semaphore, #tpu.memory_space<semaphore_mem>> -> memref<!tpu.dma_semaphore, #tpu.memory_space<semaphore_mem>>
      tpu.wait_dma2 semaphore(%386 : memref<!tpu.dma_semaphore, #tpu.memory_space<semaphore_mem>>) src(%382 : memref<1x384xf32, #tpu.memory_space<any>>) dst(%384 : memref<1x384xf32, #tpu.memory_space<vmem>>)
      %c0_i32_270 = arith.constant 0 : i32
      %c0_i32_271 = arith.constant 0 : i32
      %387 = tpu.memref_slice %arg2[%c0_i32_270, %c0_i32_271] : memref<50x384xf32, #tpu.memory_space<any>> -> memref<1x384xf32, #tpu.memory_space<any>>
      %c19_i32_272 = arith.constant 19 : i32
      %c0_i32_273 = arith.constant 0 : i32
      %388 = tpu.memref_slice %arg11[%291, %c19_i32_272, %c0_i32_273] : memref<2x32x384xf32, #tpu.memory_space<vmem>> -> memref<1x1x384xf32, #tpu.memory_space<vmem>>
      %389 = tpu.memref_squeeze %388 : memref<1x1x384xf32, #tpu.memory_space<vmem>> -> memref<1x384xf32, #tpu.memory_space<vmem>>
      %390 = tpu.memref_slice %arg13[%291] : memref<2x!tpu.dma_semaphore, #tpu.memory_space<semaphore_mem>> -> memref<1x!tpu.dma_semaphore, #tpu.memory_space<semaphore_mem>>
      %391 = tpu.memref_squeeze %390 : memref<1x!tpu.dma_semaphore, #tpu.memory_space<semaphore_mem>> -> memref<!tpu.dma_semaphore, #tpu.memory_space<semaphore_mem>>
      tpu.wait_dma2 semaphore(%391 : memref<!tpu.dma_semaphore, #tpu.memory_space<semaphore_mem>>) src(%387 : memref<1x384xf32, #tpu.memory_space<any>>) dst(%389 : memref<1x384xf32, #tpu.memory_space<vmem>>)
      %c0_i32_274 = arith.constant 0 : i32
      %c0_i32_275 = arith.constant 0 : i32
      %392 = tpu.memref_slice %arg2[%c0_i32_274, %c0_i32_275] : memref<50x384xf32, #tpu.memory_space<any>> -> memref<1x384xf32, #tpu.memory_space<any>>
      %c20_i32_276 = arith.constant 20 : i32
      %c0_i32_277 = arith.constant 0 : i32
      %393 = tpu.memref_slice %arg11[%291, %c20_i32_276, %c0_i32_277] : memref<2x32x384xf32, #tpu.memory_space<vmem>> -> memref<1x1x384xf32, #tpu.memory_space<vmem>>
      %394 = tpu.memref_squeeze %393 : memref<1x1x384xf32, #tpu.memory_space<vmem>> -> memref<1x384xf32, #tpu.memory_space<vmem>>
      %395 = tpu.memref_slice %arg13[%291] : memref<2x!tpu.dma_semaphore, #tpu.memory_space<semaphore_mem>> -> memref<1x!tpu.dma_semaphore, #tpu.memory_space<semaphore_mem>>
      %396 = tpu.memref_squeeze %395 : memref<1x!tpu.dma_semaphore, #tpu.memory_space<semaphore_mem>> -> memref<!tpu.dma_semaphore, #tpu.memory_space<semaphore_mem>>
      tpu.wait_dma2 semaphore(%396 : memref<!tpu.dma_semaphore, #tpu.memory_space<semaphore_mem>>) src(%392 : memref<1x384xf32, #tpu.memory_space<any>>) dst(%394 : memref<1x384xf32, #tpu.memory_space<vmem>>)
      %c0_i32_278 = arith.constant 0 : i32
      %c0_i32_279 = arith.constant 0 : i32
      %397 = tpu.memref_slice %arg2[%c0_i32_278, %c0_i32_279] : memref<50x384xf32, #tpu.memory_space<any>> -> memref<1x384xf32, #tpu.memory_space<any>>
      %c21_i32_280 = arith.constant 21 : i32
      %c0_i32_281 = arith.constant 0 : i32
      %398 = tpu.memref_slice %arg11[%291, %c21_i32_280, %c0_i32_281] : memref<2x32x384xf32, #tpu.memory_space<vmem>> -> memref<1x1x384xf32, #tpu.memory_space<vmem>>
      %399 = tpu.memref_squeeze %398 : memref<1x1x384xf32, #tpu.memory_space<vmem>> -> memref<1x384xf32, #tpu.memory_space<vmem>>
      %400 = tpu.memref_slice %arg13[%291] : memref<2x!tpu.dma_semaphore, #tpu.memory_space<semaphore_mem>> -> memref<1x!tpu.dma_semaphore, #tpu.memory_space<semaphore_mem>>
      %401 = tpu.memref_squeeze %400 : memref<1x!tpu.dma_semaphore, #tpu.memory_space<semaphore_mem>> -> memref<!tpu.dma_semaphore, #tpu.memory_space<semaphore_mem>>
      tpu.wait_dma2 semaphore(%401 : memref<!tpu.dma_semaphore, #tpu.memory_space<semaphore_mem>>) src(%397 : memref<1x384xf32, #tpu.memory_space<any>>) dst(%399 : memref<1x384xf32, #tpu.memory_space<vmem>>)
      %c0_i32_282 = arith.constant 0 : i32
      %c0_i32_283 = arith.constant 0 : i32
      %402 = tpu.memref_slice %arg2[%c0_i32_282, %c0_i32_283] : memref<50x384xf32, #tpu.memory_space<any>> -> memref<1x384xf32, #tpu.memory_space<any>>
      %c22_i32_284 = arith.constant 22 : i32
      %c0_i32_285 = arith.constant 0 : i32
      %403 = tpu.memref_slice %arg11[%291, %c22_i32_284, %c0_i32_285] : memref<2x32x384xf32, #tpu.memory_space<vmem>> -> memref<1x1x384xf32, #tpu.memory_space<vmem>>
      %404 = tpu.memref_squeeze %403 : memref<1x1x384xf32, #tpu.memory_space<vmem>> -> memref<1x384xf32, #tpu.memory_space<vmem>>
      %405 = tpu.memref_slice %arg13[%291] : memref<2x!tpu.dma_semaphore, #tpu.memory_space<semaphore_mem>> -> memref<1x!tpu.dma_semaphore, #tpu.memory_space<semaphore_mem>>
      %406 = tpu.memref_squeeze %405 : memref<1x!tpu.dma_semaphore, #tpu.memory_space<semaphore_mem>> -> memref<!tpu.dma_semaphore, #tpu.memory_space<semaphore_mem>>
      tpu.wait_dma2 semaphore(%406 : memref<!tpu.dma_semaphore, #tpu.memory_space<semaphore_mem>>) src(%402 : memref<1x384xf32, #tpu.memory_space<any>>) dst(%404 : memref<1x384xf32, #tpu.memory_space<vmem>>)
      %c0_i32_286 = arith.constant 0 : i32
      %c0_i32_287 = arith.constant 0 : i32
      %407 = tpu.memref_slice %arg2[%c0_i32_286, %c0_i32_287] : memref<50x384xf32, #tpu.memory_space<any>> -> memref<1x384xf32, #tpu.memory_space<any>>
      %c23_i32_288 = arith.constant 23 : i32
      %c0_i32_289 = arith.constant 0 : i32
      %408 = tpu.memref_slice %arg11[%291, %c23_i32_288, %c0_i32_289] : memref<2x32x384xf32, #tpu.memory_space<vmem>> -> memref<1x1x384xf32, #tpu.memory_space<vmem>>
      %409 = tpu.memref_squeeze %408 : memref<1x1x384xf32, #tpu.memory_space<vmem>> -> memref<1x384xf32, #tpu.memory_space<vmem>>
      %410 = tpu.memref_slice %arg13[%291] : memref<2x!tpu.dma_semaphore, #tpu.memory_space<semaphore_mem>> -> memref<1x!tpu.dma_semaphore, #tpu.memory_space<semaphore_mem>>
      %411 = tpu.memref_squeeze %410 : memref<1x!tpu.dma_semaphore, #tpu.memory_space<semaphore_mem>> -> memref<!tpu.dma_semaphore, #tpu.memory_space<semaphore_mem>>
      tpu.wait_dma2 semaphore(%411 : memref<!tpu.dma_semaphore, #tpu.memory_space<semaphore_mem>>) src(%407 : memref<1x384xf32, #tpu.memory_space<any>>) dst(%409 : memref<1x384xf32, #tpu.memory_space<vmem>>)
      %c0_i32_290 = arith.constant 0 : i32
      %c0_i32_291 = arith.constant 0 : i32
      %412 = tpu.memref_slice %arg2[%c0_i32_290, %c0_i32_291] : memref<50x384xf32, #tpu.memory_space<any>> -> memref<1x384xf32, #tpu.memory_space<any>>
      %c24_i32_292 = arith.constant 24 : i32
      %c0_i32_293 = arith.constant 0 : i32
      %413 = tpu.memref_slice %arg11[%291, %c24_i32_292, %c0_i32_293] : memref<2x32x384xf32, #tpu.memory_space<vmem>> -> memref<1x1x384xf32, #tpu.memory_space<vmem>>
      %414 = tpu.memref_squeeze %413 : memref<1x1x384xf32, #tpu.memory_space<vmem>> -> memref<1x384xf32, #tpu.memory_space<vmem>>
      %415 = tpu.memref_slice %arg13[%291] : memref<2x!tpu.dma_semaphore, #tpu.memory_space<semaphore_mem>> -> memref<1x!tpu.dma_semaphore, #tpu.memory_space<semaphore_mem>>
      %416 = tpu.memref_squeeze %415 : memref<1x!tpu.dma_semaphore, #tpu.memory_space<semaphore_mem>> -> memref<!tpu.dma_semaphore, #tpu.memory_space<semaphore_mem>>
      tpu.wait_dma2 semaphore(%416 : memref<!tpu.dma_semaphore, #tpu.memory_space<semaphore_mem>>) src(%412 : memref<1x384xf32, #tpu.memory_space<any>>) dst(%414 : memref<1x384xf32, #tpu.memory_space<vmem>>)
      %c0_i32_294 = arith.constant 0 : i32
      %c0_i32_295 = arith.constant 0 : i32
      %417 = tpu.memref_slice %arg2[%c0_i32_294, %c0_i32_295] : memref<50x384xf32, #tpu.memory_space<any>> -> memref<1x384xf32, #tpu.memory_space<any>>
      %c25_i32_296 = arith.constant 25 : i32
      %c0_i32_297 = arith.constant 0 : i32
      %418 = tpu.memref_slice %arg11[%291, %c25_i32_296, %c0_i32_297] : memref<2x32x384xf32, #tpu.memory_space<vmem>> -> memref<1x1x384xf32, #tpu.memory_space<vmem>>
      %419 = tpu.memref_squeeze %418 : memref<1x1x384xf32, #tpu.memory_space<vmem>> -> memref<1x384xf32, #tpu.memory_space<vmem>>
      %420 = tpu.memref_slice %arg13[%291] : memref<2x!tpu.dma_semaphore, #tpu.memory_space<semaphore_mem>> -> memref<1x!tpu.dma_semaphore, #tpu.memory_space<semaphore_mem>>
      %421 = tpu.memref_squeeze %420 : memref<1x!tpu.dma_semaphore, #tpu.memory_space<semaphore_mem>> -> memref<!tpu.dma_semaphore, #tpu.memory_space<semaphore_mem>>
      tpu.wait_dma2 semaphore(%421 : memref<!tpu.dma_semaphore, #tpu.memory_space<semaphore_mem>>) src(%417 : memref<1x384xf32, #tpu.memory_space<any>>) dst(%419 : memref<1x384xf32, #tpu.memory_space<vmem>>)
      %c0_i32_298 = arith.constant 0 : i32
      %c0_i32_299 = arith.constant 0 : i32
      %422 = tpu.memref_slice %arg2[%c0_i32_298, %c0_i32_299] : memref<50x384xf32, #tpu.memory_space<any>> -> memref<1x384xf32, #tpu.memory_space<any>>
      %c26_i32_300 = arith.constant 26 : i32
      %c0_i32_301 = arith.constant 0 : i32
      %423 = tpu.memref_slice %arg11[%291, %c26_i32_300, %c0_i32_301] : memref<2x32x384xf32, #tpu.memory_space<vmem>> -> memref<1x1x384xf32, #tpu.memory_space<vmem>>
      %424 = tpu.memref_squeeze %423 : memref<1x1x384xf32, #tpu.memory_space<vmem>> -> memref<1x384xf32, #tpu.memory_space<vmem>>
      %425 = tpu.memref_slice %arg13[%291] : memref<2x!tpu.dma_semaphore, #tpu.memory_space<semaphore_mem>> -> memref<1x!tpu.dma_semaphore, #tpu.memory_space<semaphore_mem>>
      %426 = tpu.memref_squeeze %425 : memref<1x!tpu.dma_semaphore, #tpu.memory_space<semaphore_mem>> -> memref<!tpu.dma_semaphore, #tpu.memory_space<semaphore_mem>>
      tpu.wait_dma2 semaphore(%426 : memref<!tpu.dma_semaphore, #tpu.memory_space<semaphore_mem>>) src(%422 : memref<1x384xf32, #tpu.memory_space<any>>) dst(%424 : memref<1x384xf32, #tpu.memory_space<vmem>>)
      %c0_i32_302 = arith.constant 0 : i32
      %c0_i32_303 = arith.constant 0 : i32
      %427 = tpu.memref_slice %arg2[%c0_i32_302, %c0_i32_303] : memref<50x384xf32, #tpu.memory_space<any>> -> memref<1x384xf32, #tpu.memory_space<any>>
      %c27_i32_304 = arith.constant 27 : i32
      %c0_i32_305 = arith.constant 0 : i32
      %428 = tpu.memref_slice %arg11[%291, %c27_i32_304, %c0_i32_305] : memref<2x32x384xf32, #tpu.memory_space<vmem>> -> memref<1x1x384xf32, #tpu.memory_space<vmem>>
      %429 = tpu.memref_squeeze %428 : memref<1x1x384xf32, #tpu.memory_space<vmem>> -> memref<1x384xf32, #tpu.memory_space<vmem>>
      %430 = tpu.memref_slice %arg13[%291] : memref<2x!tpu.dma_semaphore, #tpu.memory_space<semaphore_mem>> -> memref<1x!tpu.dma_semaphore, #tpu.memory_space<semaphore_mem>>
      %431 = tpu.memref_squeeze %430 : memref<1x!tpu.dma_semaphore, #tpu.memory_space<semaphore_mem>> -> memref<!tpu.dma_semaphore, #tpu.memory_space<semaphore_mem>>
      tpu.wait_dma2 semaphore(%431 : memref<!tpu.dma_semaphore, #tpu.memory_space<semaphore_mem>>) src(%427 : memref<1x384xf32, #tpu.memory_space<any>>) dst(%429 : memref<1x384xf32, #tpu.memory_space<vmem>>)
      %c0_i32_306 = arith.constant 0 : i32
      %c0_i32_307 = arith.constant 0 : i32
      %432 = tpu.memref_slice %arg2[%c0_i32_306, %c0_i32_307] : memref<50x384xf32, #tpu.memory_space<any>> -> memref<1x384xf32, #tpu.memory_space<any>>
      %c28_i32_308 = arith.constant 28 : i32
      %c0_i32_309 = arith.constant 0 : i32
      %433 = tpu.memref_slice %arg11[%291, %c28_i32_308, %c0_i32_309] : memref<2x32x384xf32, #tpu.memory_space<vmem>> -> memref<1x1x384xf32, #tpu.memory_space<vmem>>
      %434 = tpu.memref_squeeze %433 : memref<1x1x384xf32, #tpu.memory_space<vmem>> -> memref<1x384xf32, #tpu.memory_space<vmem>>
      %435 = tpu.memref_slice %arg13[%291] : memref<2x!tpu.dma_semaphore, #tpu.memory_space<semaphore_mem>> -> memref<1x!tpu.dma_semaphore, #tpu.memory_space<semaphore_mem>>
      %436 = tpu.memref_squeeze %435 : memref<1x!tpu.dma_semaphore, #tpu.memory_space<semaphore_mem>> -> memref<!tpu.dma_semaphore, #tpu.memory_space<semaphore_mem>>
      tpu.wait_dma2 semaphore(%436 : memref<!tpu.dma_semaphore, #tpu.memory_space<semaphore_mem>>) src(%432 : memref<1x384xf32, #tpu.memory_space<any>>) dst(%434 : memref<1x384xf32, #tpu.memory_space<vmem>>)
      %c0_i32_310 = arith.constant 0 : i32
      %c0_i32_311 = arith.constant 0 : i32
      %437 = tpu.memref_slice %arg2[%c0_i32_310, %c0_i32_311] : memref<50x384xf32, #tpu.memory_space<any>> -> memref<1x384xf32, #tpu.memory_space<any>>
      %c29_i32_312 = arith.constant 29 : i32
      %c0_i32_313 = arith.constant 0 : i32
      %438 = tpu.memref_slice %arg11[%291, %c29_i32_312, %c0_i32_313] : memref<2x32x384xf32, #tpu.memory_space<vmem>> -> memref<1x1x384xf32, #tpu.memory_space<vmem>>
      %439 = tpu.memref_squeeze %438 : memref<1x1x384xf32, #tpu.memory_space<vmem>> -> memref<1x384xf32, #tpu.memory_space<vmem>>
      %440 = tpu.memref_slice %arg13[%291] : memref<2x!tpu.dma_semaphore, #tpu.memory_space<semaphore_mem>> -> memref<1x!tpu.dma_semaphore, #tpu.memory_space<semaphore_mem>>
      %441 = tpu.memref_squeeze %440 : memref<1x!tpu.dma_semaphore, #tpu.memory_space<semaphore_mem>> -> memref<!tpu.dma_semaphore, #tpu.memory_space<semaphore_mem>>
      tpu.wait_dma2 semaphore(%441 : memref<!tpu.dma_semaphore, #tpu.memory_space<semaphore_mem>>) src(%437 : memref<1x384xf32, #tpu.memory_space<any>>) dst(%439 : memref<1x384xf32, #tpu.memory_space<vmem>>)
      %c0_i32_314 = arith.constant 0 : i32
      %c0_i32_315 = arith.constant 0 : i32
      %442 = tpu.memref_slice %arg2[%c0_i32_314, %c0_i32_315] : memref<50x384xf32, #tpu.memory_space<any>> -> memref<1x384xf32, #tpu.memory_space<any>>
      %c30_i32_316 = arith.constant 30 : i32
      %c0_i32_317 = arith.constant 0 : i32
      %443 = tpu.memref_slice %arg11[%291, %c30_i32_316, %c0_i32_317] : memref<2x32x384xf32, #tpu.memory_space<vmem>> -> memref<1x1x384xf32, #tpu.memory_space<vmem>>
      %444 = tpu.memref_squeeze %443 : memref<1x1x384xf32, #tpu.memory_space<vmem>> -> memref<1x384xf32, #tpu.memory_space<vmem>>
      %445 = tpu.memref_slice %arg13[%291] : memref<2x!tpu.dma_semaphore, #tpu.memory_space<semaphore_mem>> -> memref<1x!tpu.dma_semaphore, #tpu.memory_space<semaphore_mem>>
      %446 = tpu.memref_squeeze %445 : memref<1x!tpu.dma_semaphore, #tpu.memory_space<semaphore_mem>> -> memref<!tpu.dma_semaphore, #tpu.memory_space<semaphore_mem>>
      tpu.wait_dma2 semaphore(%446 : memref<!tpu.dma_semaphore, #tpu.memory_space<semaphore_mem>>) src(%442 : memref<1x384xf32, #tpu.memory_space<any>>) dst(%444 : memref<1x384xf32, #tpu.memory_space<vmem>>)
      %c0_i32_318 = arith.constant 0 : i32
      %c0_i32_319 = arith.constant 0 : i32
      %447 = tpu.memref_slice %arg2[%c0_i32_318, %c0_i32_319] : memref<50x384xf32, #tpu.memory_space<any>> -> memref<1x384xf32, #tpu.memory_space<any>>
      %c31_i32_320 = arith.constant 31 : i32
      %c0_i32_321 = arith.constant 0 : i32
      %448 = tpu.memref_slice %arg11[%291, %c31_i32_320, %c0_i32_321] : memref<2x32x384xf32, #tpu.memory_space<vmem>> -> memref<1x1x384xf32, #tpu.memory_space<vmem>>
      %449 = tpu.memref_squeeze %448 : memref<1x1x384xf32, #tpu.memory_space<vmem>> -> memref<1x384xf32, #tpu.memory_space<vmem>>
      %450 = tpu.memref_slice %arg13[%291] : memref<2x!tpu.dma_semaphore, #tpu.memory_space<semaphore_mem>> -> memref<1x!tpu.dma_semaphore, #tpu.memory_space<semaphore_mem>>
      %451 = tpu.memref_squeeze %450 : memref<1x!tpu.dma_semaphore, #tpu.memory_space<semaphore_mem>> -> memref<!tpu.dma_semaphore, #tpu.memory_space<semaphore_mem>>
      tpu.wait_dma2 semaphore(%451 : memref<!tpu.dma_semaphore, #tpu.memory_space<semaphore_mem>>) src(%447 : memref<1x384xf32, #tpu.memory_space<any>>) dst(%449 : memref<1x384xf32, #tpu.memory_space<vmem>>)
      %c1_i32_322 = arith.constant 1 : i32
      %452 = arith.addi %290, %c1_i32_322 : i32
      %c8_i32_323 = arith.constant 8 : i32
      %453 = arith.cmpi slt, %452, %c8_i32_323 : i32
      %454 = arith.extui %453 : i1 to i32
      %c0_i32_324 = arith.constant 0 : i32
      %455 = arith.cmpi ne, %454, %c0_i32_324 : i32
      scf.if %455 {
        %c1_i32_331 = arith.constant 1 : i32
        %462 = arith.addi %290, %c1_i32_331 : i32
        %c1_i32_332 = arith.constant 1 : i32
        %463 = arith.subi %c1_i32_332, %291 : i32
        %c32_i32 = arith.constant 32 : i32
        %464 = arith.muli %462, %c32_i32 : i32
        %465 = arith.addi %0, %464 : i32
        %c0_i32_333 = arith.constant 0 : i32
        %466 = arith.addi %465, %c0_i32_333 : i32
        %467 = arith.index_cast %466 : i32 to index
        %468 = memref.load %arg1[%467] : memref<512xi32, #tpu.memory_space<smem>>
        %c0_i32_334 = arith.constant 0 : i32
        %469 = tpu.memref_slice %arg2[%468, %c0_i32_334] : memref<50x384xf32, #tpu.memory_space<any>> -> memref<1x384xf32, #tpu.memory_space<any>>
        %c0_i32_335 = arith.constant 0 : i32
        %c0_i32_336 = arith.constant 0 : i32
        %470 = tpu.memref_slice %arg11[%463, %c0_i32_335, %c0_i32_336] : memref<2x32x384xf32, #tpu.memory_space<vmem>> -> memref<1x1x384xf32, #tpu.memory_space<vmem>>
        %471 = tpu.memref_squeeze %470 : memref<1x1x384xf32, #tpu.memory_space<vmem>> -> memref<1x384xf32, #tpu.memory_space<vmem>>
        %472 = tpu.memref_slice %arg13[%463] : memref<2x!tpu.dma_semaphore, #tpu.memory_space<semaphore_mem>> -> memref<1x!tpu.dma_semaphore, #tpu.memory_space<semaphore_mem>>
        %473 = tpu.memref_squeeze %472 : memref<1x!tpu.dma_semaphore, #tpu.memory_space<semaphore_mem>> -> memref<!tpu.dma_semaphore, #tpu.memory_space<semaphore_mem>>
        tpu.enqueue_dma source(%469 : memref<1x384xf32, #tpu.memory_space<any>>) target(%471 : memref<1x384xf32, #tpu.memory_space<vmem>>) target_semaphore(%473 : memref<!tpu.dma_semaphore, #tpu.memory_space<semaphore_mem>>)
        %c1_i32_337 = arith.constant 1 : i32
        %474 = arith.addi %465, %c1_i32_337 : i32
        %475 = arith.index_cast %474 : i32 to index
        %476 = memref.load %arg1[%475] : memref<512xi32, #tpu.memory_space<smem>>
        %c0_i32_338 = arith.constant 0 : i32
        %477 = tpu.memref_slice %arg2[%476, %c0_i32_338] : memref<50x384xf32, #tpu.memory_space<any>> -> memref<1x384xf32, #tpu.memory_space<any>>
        %c1_i32_339 = arith.constant 1 : i32
        %c0_i32_340 = arith.constant 0 : i32
        %478 = tpu.memref_slice %arg11[%463, %c1_i32_339, %c0_i32_340] : memref<2x32x384xf32, #tpu.memory_space<vmem>> -> memref<1x1x384xf32, #tpu.memory_space<vmem>>
        %479 = tpu.memref_squeeze %478 : memref<1x1x384xf32, #tpu.memory_space<vmem>> -> memref<1x384xf32, #tpu.memory_space<vmem>>
        %480 = tpu.memref_slice %arg13[%463] : memref<2x!tpu.dma_semaphore, #tpu.memory_space<semaphore_mem>> -> memref<1x!tpu.dma_semaphore, #tpu.memory_space<semaphore_mem>>
        %481 = tpu.memref_squeeze %480 : memref<1x!tpu.dma_semaphore, #tpu.memory_space<semaphore_mem>> -> memref<!tpu.dma_semaphore, #tpu.memory_space<semaphore_mem>>
        tpu.enqueue_dma source(%477 : memref<1x384xf32, #tpu.memory_space<any>>) target(%479 : memref<1x384xf32, #tpu.memory_space<vmem>>) target_semaphore(%481 : memref<!tpu.dma_semaphore, #tpu.memory_space<semaphore_mem>>)
        %c2_i32_341 = arith.constant 2 : i32
        %482 = arith.addi %465, %c2_i32_341 : i32
        %483 = arith.index_cast %482 : i32 to index
        %484 = memref.load %arg1[%483] : memref<512xi32, #tpu.memory_space<smem>>
        %c0_i32_342 = arith.constant 0 : i32
        %485 = tpu.memref_slice %arg2[%484, %c0_i32_342] : memref<50x384xf32, #tpu.memory_space<any>> -> memref<1x384xf32, #tpu.memory_space<any>>
        %c2_i32_343 = arith.constant 2 : i32
        %c0_i32_344 = arith.constant 0 : i32
        %486 = tpu.memref_slice %arg11[%463, %c2_i32_343, %c0_i32_344] : memref<2x32x384xf32, #tpu.memory_space<vmem>> -> memref<1x1x384xf32, #tpu.memory_space<vmem>>
        %487 = tpu.memref_squeeze %486 : memref<1x1x384xf32, #tpu.memory_space<vmem>> -> memref<1x384xf32, #tpu.memory_space<vmem>>
        %488 = tpu.memref_slice %arg13[%463] : memref<2x!tpu.dma_semaphore, #tpu.memory_space<semaphore_mem>> -> memref<1x!tpu.dma_semaphore, #tpu.memory_space<semaphore_mem>>
        %489 = tpu.memref_squeeze %488 : memref<1x!tpu.dma_semaphore, #tpu.memory_space<semaphore_mem>> -> memref<!tpu.dma_semaphore, #tpu.memory_space<semaphore_mem>>
        tpu.enqueue_dma source(%485 : memref<1x384xf32, #tpu.memory_space<any>>) target(%487 : memref<1x384xf32, #tpu.memory_space<vmem>>) target_semaphore(%489 : memref<!tpu.dma_semaphore, #tpu.memory_space<semaphore_mem>>)
        %c3_i32_345 = arith.constant 3 : i32
        %490 = arith.addi %465, %c3_i32_345 : i32
        %491 = arith.index_cast %490 : i32 to index
        %492 = memref.load %arg1[%491] : memref<512xi32, #tpu.memory_space<smem>>
        %c0_i32_346 = arith.constant 0 : i32
        %493 = tpu.memref_slice %arg2[%492, %c0_i32_346] : memref<50x384xf32, #tpu.memory_space<any>> -> memref<1x384xf32, #tpu.memory_space<any>>
        %c3_i32_347 = arith.constant 3 : i32
        %c0_i32_348 = arith.constant 0 : i32
        %494 = tpu.memref_slice %arg11[%463, %c3_i32_347, %c0_i32_348] : memref<2x32x384xf32, #tpu.memory_space<vmem>> -> memref<1x1x384xf32, #tpu.memory_space<vmem>>
        %495 = tpu.memref_squeeze %494 : memref<1x1x384xf32, #tpu.memory_space<vmem>> -> memref<1x384xf32, #tpu.memory_space<vmem>>
        %496 = tpu.memref_slice %arg13[%463] : memref<2x!tpu.dma_semaphore, #tpu.memory_space<semaphore_mem>> -> memref<1x!tpu.dma_semaphore, #tpu.memory_space<semaphore_mem>>
        %497 = tpu.memref_squeeze %496 : memref<1x!tpu.dma_semaphore, #tpu.memory_space<semaphore_mem>> -> memref<!tpu.dma_semaphore, #tpu.memory_space<semaphore_mem>>
        tpu.enqueue_dma source(%493 : memref<1x384xf32, #tpu.memory_space<any>>) target(%495 : memref<1x384xf32, #tpu.memory_space<vmem>>) target_semaphore(%497 : memref<!tpu.dma_semaphore, #tpu.memory_space<semaphore_mem>>)
        %c4_i32_349 = arith.constant 4 : i32
        %498 = arith.addi %465, %c4_i32_349 : i32
        %499 = arith.index_cast %498 : i32 to index
        %500 = memref.load %arg1[%499] : memref<512xi32, #tpu.memory_space<smem>>
        %c0_i32_350 = arith.constant 0 : i32
        %501 = tpu.memref_slice %arg2[%500, %c0_i32_350] : memref<50x384xf32, #tpu.memory_space<any>> -> memref<1x384xf32, #tpu.memory_space<any>>
        %c4_i32_351 = arith.constant 4 : i32
        %c0_i32_352 = arith.constant 0 : i32
        %502 = tpu.memref_slice %arg11[%463, %c4_i32_351, %c0_i32_352] : memref<2x32x384xf32, #tpu.memory_space<vmem>> -> memref<1x1x384xf32, #tpu.memory_space<vmem>>
        %503 = tpu.memref_squeeze %502 : memref<1x1x384xf32, #tpu.memory_space<vmem>> -> memref<1x384xf32, #tpu.memory_space<vmem>>
        %504 = tpu.memref_slice %arg13[%463] : memref<2x!tpu.dma_semaphore, #tpu.memory_space<semaphore_mem>> -> memref<1x!tpu.dma_semaphore, #tpu.memory_space<semaphore_mem>>
        %505 = tpu.memref_squeeze %504 : memref<1x!tpu.dma_semaphore, #tpu.memory_space<semaphore_mem>> -> memref<!tpu.dma_semaphore, #tpu.memory_space<semaphore_mem>>
        tpu.enqueue_dma source(%501 : memref<1x384xf32, #tpu.memory_space<any>>) target(%503 : memref<1x384xf32, #tpu.memory_space<vmem>>) target_semaphore(%505 : memref<!tpu.dma_semaphore, #tpu.memory_space<semaphore_mem>>)
        %c5_i32_353 = arith.constant 5 : i32
        %506 = arith.addi %465, %c5_i32_353 : i32
        %507 = arith.index_cast %506 : i32 to index
        %508 = memref.load %arg1[%507] : memref<512xi32, #tpu.memory_space<smem>>
        %c0_i32_354 = arith.constant 0 : i32
        %509 = tpu.memref_slice %arg2[%508, %c0_i32_354] : memref<50x384xf32, #tpu.memory_space<any>> -> memref<1x384xf32, #tpu.memory_space<any>>
        %c5_i32_355 = arith.constant 5 : i32
        %c0_i32_356 = arith.constant 0 : i32
        %510 = tpu.memref_slice %arg11[%463, %c5_i32_355, %c0_i32_356] : memref<2x32x384xf32, #tpu.memory_space<vmem>> -> memref<1x1x384xf32, #tpu.memory_space<vmem>>
        %511 = tpu.memref_squeeze %510 : memref<1x1x384xf32, #tpu.memory_space<vmem>> -> memref<1x384xf32, #tpu.memory_space<vmem>>
        %512 = tpu.memref_slice %arg13[%463] : memref<2x!tpu.dma_semaphore, #tpu.memory_space<semaphore_mem>> -> memref<1x!tpu.dma_semaphore, #tpu.memory_space<semaphore_mem>>
        %513 = tpu.memref_squeeze %512 : memref<1x!tpu.dma_semaphore, #tpu.memory_space<semaphore_mem>> -> memref<!tpu.dma_semaphore, #tpu.memory_space<semaphore_mem>>
        tpu.enqueue_dma source(%509 : memref<1x384xf32, #tpu.memory_space<any>>) target(%511 : memref<1x384xf32, #tpu.memory_space<vmem>>) target_semaphore(%513 : memref<!tpu.dma_semaphore, #tpu.memory_space<semaphore_mem>>)
        %c6_i32_357 = arith.constant 6 : i32
        %514 = arith.addi %465, %c6_i32_357 : i32
        %515 = arith.index_cast %514 : i32 to index
        %516 = memref.load %arg1[%515] : memref<512xi32, #tpu.memory_space<smem>>
        %c0_i32_358 = arith.constant 0 : i32
        %517 = tpu.memref_slice %arg2[%516, %c0_i32_358] : memref<50x384xf32, #tpu.memory_space<any>> -> memref<1x384xf32, #tpu.memory_space<any>>
        %c6_i32_359 = arith.constant 6 : i32
        %c0_i32_360 = arith.constant 0 : i32
        %518 = tpu.memref_slice %arg11[%463, %c6_i32_359, %c0_i32_360] : memref<2x32x384xf32, #tpu.memory_space<vmem>> -> memref<1x1x384xf32, #tpu.memory_space<vmem>>
        %519 = tpu.memref_squeeze %518 : memref<1x1x384xf32, #tpu.memory_space<vmem>> -> memref<1x384xf32, #tpu.memory_space<vmem>>
        %520 = tpu.memref_slice %arg13[%463] : memref<2x!tpu.dma_semaphore, #tpu.memory_space<semaphore_mem>> -> memref<1x!tpu.dma_semaphore, #tpu.memory_space<semaphore_mem>>
        %521 = tpu.memref_squeeze %520 : memref<1x!tpu.dma_semaphore, #tpu.memory_space<semaphore_mem>> -> memref<!tpu.dma_semaphore, #tpu.memory_space<semaphore_mem>>
        tpu.enqueue_dma source(%517 : memref<1x384xf32, #tpu.memory_space<any>>) target(%519 : memref<1x384xf32, #tpu.memory_space<vmem>>) target_semaphore(%521 : memref<!tpu.dma_semaphore, #tpu.memory_space<semaphore_mem>>)
        %c7_i32_361 = arith.constant 7 : i32
        %522 = arith.addi %465, %c7_i32_361 : i32
        %523 = arith.index_cast %522 : i32 to index
        %524 = memref.load %arg1[%523] : memref<512xi32, #tpu.memory_space<smem>>
        %c0_i32_362 = arith.constant 0 : i32
        %525 = tpu.memref_slice %arg2[%524, %c0_i32_362] : memref<50x384xf32, #tpu.memory_space<any>> -> memref<1x384xf32, #tpu.memory_space<any>>
        %c7_i32_363 = arith.constant 7 : i32
        %c0_i32_364 = arith.constant 0 : i32
        %526 = tpu.memref_slice %arg11[%463, %c7_i32_363, %c0_i32_364] : memref<2x32x384xf32, #tpu.memory_space<vmem>> -> memref<1x1x384xf32, #tpu.memory_space<vmem>>
        %527 = tpu.memref_squeeze %526 : memref<1x1x384xf32, #tpu.memory_space<vmem>> -> memref<1x384xf32, #tpu.memory_space<vmem>>
        %528 = tpu.memref_slice %arg13[%463] : memref<2x!tpu.dma_semaphore, #tpu.memory_space<semaphore_mem>> -> memref<1x!tpu.dma_semaphore, #tpu.memory_space<semaphore_mem>>
        %529 = tpu.memref_squeeze %528 : memref<1x!tpu.dma_semaphore, #tpu.memory_space<semaphore_mem>> -> memref<!tpu.dma_semaphore, #tpu.memory_space<semaphore_mem>>
        tpu.enqueue_dma source(%525 : memref<1x384xf32, #tpu.memory_space<any>>) target(%527 : memref<1x384xf32, #tpu.memory_space<vmem>>) target_semaphore(%529 : memref<!tpu.dma_semaphore, #tpu.memory_space<semaphore_mem>>)
        %c8_i32_365 = arith.constant 8 : i32
        %530 = arith.addi %465, %c8_i32_365 : i32
        %531 = arith.index_cast %530 : i32 to index
        %532 = memref.load %arg1[%531] : memref<512xi32, #tpu.memory_space<smem>>
        %c0_i32_366 = arith.constant 0 : i32
        %533 = tpu.memref_slice %arg2[%532, %c0_i32_366] : memref<50x384xf32, #tpu.memory_space<any>> -> memref<1x384xf32, #tpu.memory_space<any>>
        %c8_i32_367 = arith.constant 8 : i32
        %c0_i32_368 = arith.constant 0 : i32
        %534 = tpu.memref_slice %arg11[%463, %c8_i32_367, %c0_i32_368] : memref<2x32x384xf32, #tpu.memory_space<vmem>> -> memref<1x1x384xf32, #tpu.memory_space<vmem>>
        %535 = tpu.memref_squeeze %534 : memref<1x1x384xf32, #tpu.memory_space<vmem>> -> memref<1x384xf32, #tpu.memory_space<vmem>>
        %536 = tpu.memref_slice %arg13[%463] : memref<2x!tpu.dma_semaphore, #tpu.memory_space<semaphore_mem>> -> memref<1x!tpu.dma_semaphore, #tpu.memory_space<semaphore_mem>>
        %537 = tpu.memref_squeeze %536 : memref<1x!tpu.dma_semaphore, #tpu.memory_space<semaphore_mem>> -> memref<!tpu.dma_semaphore, #tpu.memory_space<semaphore_mem>>
        tpu.enqueue_dma source(%533 : memref<1x384xf32, #tpu.memory_space<any>>) target(%535 : memref<1x384xf32, #tpu.memory_space<vmem>>) target_semaphore(%537 : memref<!tpu.dma_semaphore, #tpu.memory_space<semaphore_mem>>)
        %c9_i32_369 = arith.constant 9 : i32
        %538 = arith.addi %465, %c9_i32_369 : i32
        %539 = arith.index_cast %538 : i32 to index
        %540 = memref.load %arg1[%539] : memref<512xi32, #tpu.memory_space<smem>>
        %c0_i32_370 = arith.constant 0 : i32
        %541 = tpu.memref_slice %arg2[%540, %c0_i32_370] : memref<50x384xf32, #tpu.memory_space<any>> -> memref<1x384xf32, #tpu.memory_space<any>>
        %c9_i32_371 = arith.constant 9 : i32
        %c0_i32_372 = arith.constant 0 : i32
        %542 = tpu.memref_slice %arg11[%463, %c9_i32_371, %c0_i32_372] : memref<2x32x384xf32, #tpu.memory_space<vmem>> -> memref<1x1x384xf32, #tpu.memory_space<vmem>>
        %543 = tpu.memref_squeeze %542 : memref<1x1x384xf32, #tpu.memory_space<vmem>> -> memref<1x384xf32, #tpu.memory_space<vmem>>
        %544 = tpu.memref_slice %arg13[%463] : memref<2x!tpu.dma_semaphore, #tpu.memory_space<semaphore_mem>> -> memref<1x!tpu.dma_semaphore, #tpu.memory_space<semaphore_mem>>
        %545 = tpu.memref_squeeze %544 : memref<1x!tpu.dma_semaphore, #tpu.memory_space<semaphore_mem>> -> memref<!tpu.dma_semaphore, #tpu.memory_space<semaphore_mem>>
        tpu.enqueue_dma source(%541 : memref<1x384xf32, #tpu.memory_space<any>>) target(%543 : memref<1x384xf32, #tpu.memory_space<vmem>>) target_semaphore(%545 : memref<!tpu.dma_semaphore, #tpu.memory_space<semaphore_mem>>)
        %c10_i32_373 = arith.constant 10 : i32
        %546 = arith.addi %465, %c10_i32_373 : i32
        %547 = arith.index_cast %546 : i32 to index
        %548 = memref.load %arg1[%547] : memref<512xi32, #tpu.memory_space<smem>>
        %c0_i32_374 = arith.constant 0 : i32
        %549 = tpu.memref_slice %arg2[%548, %c0_i32_374] : memref<50x384xf32, #tpu.memory_space<any>> -> memref<1x384xf32, #tpu.memory_space<any>>
        %c10_i32_375 = arith.constant 10 : i32
        %c0_i32_376 = arith.constant 0 : i32
        %550 = tpu.memref_slice %arg11[%463, %c10_i32_375, %c0_i32_376] : memref<2x32x384xf32, #tpu.memory_space<vmem>> -> memref<1x1x384xf32, #tpu.memory_space<vmem>>
        %551 = tpu.memref_squeeze %550 : memref<1x1x384xf32, #tpu.memory_space<vmem>> -> memref<1x384xf32, #tpu.memory_space<vmem>>
        %552 = tpu.memref_slice %arg13[%463] : memref<2x!tpu.dma_semaphore, #tpu.memory_space<semaphore_mem>> -> memref<1x!tpu.dma_semaphore, #tpu.memory_space<semaphore_mem>>
        %553 = tpu.memref_squeeze %552 : memref<1x!tpu.dma_semaphore, #tpu.memory_space<semaphore_mem>> -> memref<!tpu.dma_semaphore, #tpu.memory_space<semaphore_mem>>
        tpu.enqueue_dma source(%549 : memref<1x384xf32, #tpu.memory_space<any>>) target(%551 : memref<1x384xf32, #tpu.memory_space<vmem>>) target_semaphore(%553 : memref<!tpu.dma_semaphore, #tpu.memory_space<semaphore_mem>>)
        %c11_i32_377 = arith.constant 11 : i32
        %554 = arith.addi %465, %c11_i32_377 : i32
        %555 = arith.index_cast %554 : i32 to index
        %556 = memref.load %arg1[%555] : memref<512xi32, #tpu.memory_space<smem>>
        %c0_i32_378 = arith.constant 0 : i32
        %557 = tpu.memref_slice %arg2[%556, %c0_i32_378] : memref<50x384xf32, #tpu.memory_space<any>> -> memref<1x384xf32, #tpu.memory_space<any>>
        %c11_i32_379 = arith.constant 11 : i32
        %c0_i32_380 = arith.constant 0 : i32
        %558 = tpu.memref_slice %arg11[%463, %c11_i32_379, %c0_i32_380] : memref<2x32x384xf32, #tpu.memory_space<vmem>> -> memref<1x1x384xf32, #tpu.memory_space<vmem>>
        %559 = tpu.memref_squeeze %558 : memref<1x1x384xf32, #tpu.memory_space<vmem>> -> memref<1x384xf32, #tpu.memory_space<vmem>>
        %560 = tpu.memref_slice %arg13[%463] : memref<2x!tpu.dma_semaphore, #tpu.memory_space<semaphore_mem>> -> memref<1x!tpu.dma_semaphore, #tpu.memory_space<semaphore_mem>>
        %561 = tpu.memref_squeeze %560 : memref<1x!tpu.dma_semaphore, #tpu.memory_space<semaphore_mem>> -> memref<!tpu.dma_semaphore, #tpu.memory_space<semaphore_mem>>
        tpu.enqueue_dma source(%557 : memref<1x384xf32, #tpu.memory_space<any>>) target(%559 : memref<1x384xf32, #tpu.memory_space<vmem>>) target_semaphore(%561 : memref<!tpu.dma_semaphore, #tpu.memory_space<semaphore_mem>>)
        %c12_i32_381 = arith.constant 12 : i32
        %562 = arith.addi %465, %c12_i32_381 : i32
        %563 = arith.index_cast %562 : i32 to index
        %564 = memref.load %arg1[%563] : memref<512xi32, #tpu.memory_space<smem>>
        %c0_i32_382 = arith.constant 0 : i32
        %565 = tpu.memref_slice %arg2[%564, %c0_i32_382] : memref<50x384xf32, #tpu.memory_space<any>> -> memref<1x384xf32, #tpu.memory_space<any>>
        %c12_i32_383 = arith.constant 12 : i32
        %c0_i32_384 = arith.constant 0 : i32
        %566 = tpu.memref_slice %arg11[%463, %c12_i32_383, %c0_i32_384] : memref<2x32x384xf32, #tpu.memory_space<vmem>> -> memref<1x1x384xf32, #tpu.memory_space<vmem>>
        %567 = tpu.memref_squeeze %566 : memref<1x1x384xf32, #tpu.memory_space<vmem>> -> memref<1x384xf32, #tpu.memory_space<vmem>>
        %568 = tpu.memref_slice %arg13[%463] : memref<2x!tpu.dma_semaphore, #tpu.memory_space<semaphore_mem>> -> memref<1x!tpu.dma_semaphore, #tpu.memory_space<semaphore_mem>>
        %569 = tpu.memref_squeeze %568 : memref<1x!tpu.dma_semaphore, #tpu.memory_space<semaphore_mem>> -> memref<!tpu.dma_semaphore, #tpu.memory_space<semaphore_mem>>
        tpu.enqueue_dma source(%565 : memref<1x384xf32, #tpu.memory_space<any>>) target(%567 : memref<1x384xf32, #tpu.memory_space<vmem>>) target_semaphore(%569 : memref<!tpu.dma_semaphore, #tpu.memory_space<semaphore_mem>>)
        %c13_i32_385 = arith.constant 13 : i32
        %570 = arith.addi %465, %c13_i32_385 : i32
        %571 = arith.index_cast %570 : i32 to index
        %572 = memref.load %arg1[%571] : memref<512xi32, #tpu.memory_space<smem>>
        %c0_i32_386 = arith.constant 0 : i32
        %573 = tpu.memref_slice %arg2[%572, %c0_i32_386] : memref<50x384xf32, #tpu.memory_space<any>> -> memref<1x384xf32, #tpu.memory_space<any>>
        %c13_i32_387 = arith.constant 13 : i32
        %c0_i32_388 = arith.constant 0 : i32
        %574 = tpu.memref_slice %arg11[%463, %c13_i32_387, %c0_i32_388] : memref<2x32x384xf32, #tpu.memory_space<vmem>> -> memref<1x1x384xf32, #tpu.memory_space<vmem>>
        %575 = tpu.memref_squeeze %574 : memref<1x1x384xf32, #tpu.memory_space<vmem>> -> memref<1x384xf32, #tpu.memory_space<vmem>>
        %576 = tpu.memref_slice %arg13[%463] : memref<2x!tpu.dma_semaphore, #tpu.memory_space<semaphore_mem>> -> memref<1x!tpu.dma_semaphore, #tpu.memory_space<semaphore_mem>>
        %577 = tpu.memref_squeeze %576 : memref<1x!tpu.dma_semaphore, #tpu.memory_space<semaphore_mem>> -> memref<!tpu.dma_semaphore, #tpu.memory_space<semaphore_mem>>
        tpu.enqueue_dma source(%573 : memref<1x384xf32, #tpu.memory_space<any>>) target(%575 : memref<1x384xf32, #tpu.memory_space<vmem>>) target_semaphore(%577 : memref<!tpu.dma_semaphore, #tpu.memory_space<semaphore_mem>>)
        %c14_i32_389 = arith.constant 14 : i32
        %578 = arith.addi %465, %c14_i32_389 : i32
        %579 = arith.index_cast %578 : i32 to index
        %580 = memref.load %arg1[%579] : memref<512xi32, #tpu.memory_space<smem>>
        %c0_i32_390 = arith.constant 0 : i32
        %581 = tpu.memref_slice %arg2[%580, %c0_i32_390] : memref<50x384xf32, #tpu.memory_space<any>> -> memref<1x384xf32, #tpu.memory_space<any>>
        %c14_i32_391 = arith.constant 14 : i32
        %c0_i32_392 = arith.constant 0 : i32
        %582 = tpu.memref_slice %arg11[%463, %c14_i32_391, %c0_i32_392] : memref<2x32x384xf32, #tpu.memory_space<vmem>> -> memref<1x1x384xf32, #tpu.memory_space<vmem>>
        %583 = tpu.memref_squeeze %582 : memref<1x1x384xf32, #tpu.memory_space<vmem>> -> memref<1x384xf32, #tpu.memory_space<vmem>>
        %584 = tpu.memref_slice %arg13[%463] : memref<2x!tpu.dma_semaphore, #tpu.memory_space<semaphore_mem>> -> memref<1x!tpu.dma_semaphore, #tpu.memory_space<semaphore_mem>>
        %585 = tpu.memref_squeeze %584 : memref<1x!tpu.dma_semaphore, #tpu.memory_space<semaphore_mem>> -> memref<!tpu.dma_semaphore, #tpu.memory_space<semaphore_mem>>
        tpu.enqueue_dma source(%581 : memref<1x384xf32, #tpu.memory_space<any>>) target(%583 : memref<1x384xf32, #tpu.memory_space<vmem>>) target_semaphore(%585 : memref<!tpu.dma_semaphore, #tpu.memory_space<semaphore_mem>>)
        %c15_i32_393 = arith.constant 15 : i32
        %586 = arith.addi %465, %c15_i32_393 : i32
        %587 = arith.index_cast %586 : i32 to index
        %588 = memref.load %arg1[%587] : memref<512xi32, #tpu.memory_space<smem>>
        %c0_i32_394 = arith.constant 0 : i32
        %589 = tpu.memref_slice %arg2[%588, %c0_i32_394] : memref<50x384xf32, #tpu.memory_space<any>> -> memref<1x384xf32, #tpu.memory_space<any>>
        %c15_i32_395 = arith.constant 15 : i32
        %c0_i32_396 = arith.constant 0 : i32
        %590 = tpu.memref_slice %arg11[%463, %c15_i32_395, %c0_i32_396] : memref<2x32x384xf32, #tpu.memory_space<vmem>> -> memref<1x1x384xf32, #tpu.memory_space<vmem>>
        %591 = tpu.memref_squeeze %590 : memref<1x1x384xf32, #tpu.memory_space<vmem>> -> memref<1x384xf32, #tpu.memory_space<vmem>>
        %592 = tpu.memref_slice %arg13[%463] : memref<2x!tpu.dma_semaphore, #tpu.memory_space<semaphore_mem>> -> memref<1x!tpu.dma_semaphore, #tpu.memory_space<semaphore_mem>>
        %593 = tpu.memref_squeeze %592 : memref<1x!tpu.dma_semaphore, #tpu.memory_space<semaphore_mem>> -> memref<!tpu.dma_semaphore, #tpu.memory_space<semaphore_mem>>
        tpu.enqueue_dma source(%589 : memref<1x384xf32, #tpu.memory_space<any>>) target(%591 : memref<1x384xf32, #tpu.memory_space<vmem>>) target_semaphore(%593 : memref<!tpu.dma_semaphore, #tpu.memory_space<semaphore_mem>>)
        %c16_i32_397 = arith.constant 16 : i32
        %594 = arith.addi %465, %c16_i32_397 : i32
        %595 = arith.index_cast %594 : i32 to index
        %596 = memref.load %arg1[%595] : memref<512xi32, #tpu.memory_space<smem>>
        %c0_i32_398 = arith.constant 0 : i32
        %597 = tpu.memref_slice %arg2[%596, %c0_i32_398] : memref<50x384xf32, #tpu.memory_space<any>> -> memref<1x384xf32, #tpu.memory_space<any>>
        %c16_i32_399 = arith.constant 16 : i32
        %c0_i32_400 = arith.constant 0 : i32
        %598 = tpu.memref_slice %arg11[%463, %c16_i32_399, %c0_i32_400] : memref<2x32x384xf32, #tpu.memory_space<vmem>> -> memref<1x1x384xf32, #tpu.memory_space<vmem>>
        %599 = tpu.memref_squeeze %598 : memref<1x1x384xf32, #tpu.memory_space<vmem>> -> memref<1x384xf32, #tpu.memory_space<vmem>>
        %600 = tpu.memref_slice %arg13[%463] : memref<2x!tpu.dma_semaphore, #tpu.memory_space<semaphore_mem>> -> memref<1x!tpu.dma_semaphore, #tpu.memory_space<semaphore_mem>>
        %601 = tpu.memref_squeeze %600 : memref<1x!tpu.dma_semaphore, #tpu.memory_space<semaphore_mem>> -> memref<!tpu.dma_semaphore, #tpu.memory_space<semaphore_mem>>
        tpu.enqueue_dma source(%597 : memref<1x384xf32, #tpu.memory_space<any>>) target(%599 : memref<1x384xf32, #tpu.memory_space<vmem>>) target_semaphore(%601 : memref<!tpu.dma_semaphore, #tpu.memory_space<semaphore_mem>>)
        %c17_i32_401 = arith.constant 17 : i32
        %602 = arith.addi %465, %c17_i32_401 : i32
        %603 = arith.index_cast %602 : i32 to index
        %604 = memref.load %arg1[%603] : memref<512xi32, #tpu.memory_space<smem>>
        %c0_i32_402 = arith.constant 0 : i32
        %605 = tpu.memref_slice %arg2[%604, %c0_i32_402] : memref<50x384xf32, #tpu.memory_space<any>> -> memref<1x384xf32, #tpu.memory_space<any>>
        %c17_i32_403 = arith.constant 17 : i32
        %c0_i32_404 = arith.constant 0 : i32
        %606 = tpu.memref_slice %arg11[%463, %c17_i32_403, %c0_i32_404] : memref<2x32x384xf32, #tpu.memory_space<vmem>> -> memref<1x1x384xf32, #tpu.memory_space<vmem>>
        %607 = tpu.memref_squeeze %606 : memref<1x1x384xf32, #tpu.memory_space<vmem>> -> memref<1x384xf32, #tpu.memory_space<vmem>>
        %608 = tpu.memref_slice %arg13[%463] : memref<2x!tpu.dma_semaphore, #tpu.memory_space<semaphore_mem>> -> memref<1x!tpu.dma_semaphore, #tpu.memory_space<semaphore_mem>>
        %609 = tpu.memref_squeeze %608 : memref<1x!tpu.dma_semaphore, #tpu.memory_space<semaphore_mem>> -> memref<!tpu.dma_semaphore, #tpu.memory_space<semaphore_mem>>
        tpu.enqueue_dma source(%605 : memref<1x384xf32, #tpu.memory_space<any>>) target(%607 : memref<1x384xf32, #tpu.memory_space<vmem>>) target_semaphore(%609 : memref<!tpu.dma_semaphore, #tpu.memory_space<semaphore_mem>>)
        %c18_i32_405 = arith.constant 18 : i32
        %610 = arith.addi %465, %c18_i32_405 : i32
        %611 = arith.index_cast %610 : i32 to index
        %612 = memref.load %arg1[%611] : memref<512xi32, #tpu.memory_space<smem>>
        %c0_i32_406 = arith.constant 0 : i32
        %613 = tpu.memref_slice %arg2[%612, %c0_i32_406] : memref<50x384xf32, #tpu.memory_space<any>> -> memref<1x384xf32, #tpu.memory_space<any>>
        %c18_i32_407 = arith.constant 18 : i32
        %c0_i32_408 = arith.constant 0 : i32
        %614 = tpu.memref_slice %arg11[%463, %c18_i32_407, %c0_i32_408] : memref<2x32x384xf32, #tpu.memory_space<vmem>> -> memref<1x1x384xf32, #tpu.memory_space<vmem>>
        %615 = tpu.memref_squeeze %614 : memref<1x1x384xf32, #tpu.memory_space<vmem>> -> memref<1x384xf32, #tpu.memory_space<vmem>>
        %616 = tpu.memref_slice %arg13[%463] : memref<2x!tpu.dma_semaphore, #tpu.memory_space<semaphore_mem>> -> memref<1x!tpu.dma_semaphore, #tpu.memory_space<semaphore_mem>>
        %617 = tpu.memref_squeeze %616 : memref<1x!tpu.dma_semaphore, #tpu.memory_space<semaphore_mem>> -> memref<!tpu.dma_semaphore, #tpu.memory_space<semaphore_mem>>
        tpu.enqueue_dma source(%613 : memref<1x384xf32, #tpu.memory_space<any>>) target(%615 : memref<1x384xf32, #tpu.memory_space<vmem>>) target_semaphore(%617 : memref<!tpu.dma_semaphore, #tpu.memory_space<semaphore_mem>>)
        %c19_i32_409 = arith.constant 19 : i32
        %618 = arith.addi %465, %c19_i32_409 : i32
        %619 = arith.index_cast %618 : i32 to index
        %620 = memref.load %arg1[%619] : memref<512xi32, #tpu.memory_space<smem>>
        %c0_i32_410 = arith.constant 0 : i32
        %621 = tpu.memref_slice %arg2[%620, %c0_i32_410] : memref<50x384xf32, #tpu.memory_space<any>> -> memref<1x384xf32, #tpu.memory_space<any>>
        %c19_i32_411 = arith.constant 19 : i32
        %c0_i32_412 = arith.constant 0 : i32
        %622 = tpu.memref_slice %arg11[%463, %c19_i32_411, %c0_i32_412] : memref<2x32x384xf32, #tpu.memory_space<vmem>> -> memref<1x1x384xf32, #tpu.memory_space<vmem>>
        %623 = tpu.memref_squeeze %622 : memref<1x1x384xf32, #tpu.memory_space<vmem>> -> memref<1x384xf32, #tpu.memory_space<vmem>>
        %624 = tpu.memref_slice %arg13[%463] : memref<2x!tpu.dma_semaphore, #tpu.memory_space<semaphore_mem>> -> memref<1x!tpu.dma_semaphore, #tpu.memory_space<semaphore_mem>>
        %625 = tpu.memref_squeeze %624 : memref<1x!tpu.dma_semaphore, #tpu.memory_space<semaphore_mem>> -> memref<!tpu.dma_semaphore, #tpu.memory_space<semaphore_mem>>
        tpu.enqueue_dma source(%621 : memref<1x384xf32, #tpu.memory_space<any>>) target(%623 : memref<1x384xf32, #tpu.memory_space<vmem>>) target_semaphore(%625 : memref<!tpu.dma_semaphore, #tpu.memory_space<semaphore_mem>>)
        %c20_i32_413 = arith.constant 20 : i32
        %626 = arith.addi %465, %c20_i32_413 : i32
        %627 = arith.index_cast %626 : i32 to index
        %628 = memref.load %arg1[%627] : memref<512xi32, #tpu.memory_space<smem>>
        %c0_i32_414 = arith.constant 0 : i32
        %629 = tpu.memref_slice %arg2[%628, %c0_i32_414] : memref<50x384xf32, #tpu.memory_space<any>> -> memref<1x384xf32, #tpu.memory_space<any>>
        %c20_i32_415 = arith.constant 20 : i32
        %c0_i32_416 = arith.constant 0 : i32
        %630 = tpu.memref_slice %arg11[%463, %c20_i32_415, %c0_i32_416] : memref<2x32x384xf32, #tpu.memory_space<vmem>> -> memref<1x1x384xf32, #tpu.memory_space<vmem>>
        %631 = tpu.memref_squeeze %630 : memref<1x1x384xf32, #tpu.memory_space<vmem>> -> memref<1x384xf32, #tpu.memory_space<vmem>>
        %632 = tpu.memref_slice %arg13[%463] : memref<2x!tpu.dma_semaphore, #tpu.memory_space<semaphore_mem>> -> memref<1x!tpu.dma_semaphore, #tpu.memory_space<semaphore_mem>>
        %633 = tpu.memref_squeeze %632 : memref<1x!tpu.dma_semaphore, #tpu.memory_space<semaphore_mem>> -> memref<!tpu.dma_semaphore, #tpu.memory_space<semaphore_mem>>
        tpu.enqueue_dma source(%629 : memref<1x384xf32, #tpu.memory_space<any>>) target(%631 : memref<1x384xf32, #tpu.memory_space<vmem>>) target_semaphore(%633 : memref<!tpu.dma_semaphore, #tpu.memory_space<semaphore_mem>>)
        %c21_i32_417 = arith.constant 21 : i32
        %634 = arith.addi %465, %c21_i32_417 : i32
        %635 = arith.index_cast %634 : i32 to index
        %636 = memref.load %arg1[%635] : memref<512xi32, #tpu.memory_space<smem>>
        %c0_i32_418 = arith.constant 0 : i32
        %637 = tpu.memref_slice %arg2[%636, %c0_i32_418] : memref<50x384xf32, #tpu.memory_space<any>> -> memref<1x384xf32, #tpu.memory_space<any>>
        %c21_i32_419 = arith.constant 21 : i32
        %c0_i32_420 = arith.constant 0 : i32
        %638 = tpu.memref_slice %arg11[%463, %c21_i32_419, %c0_i32_420] : memref<2x32x384xf32, #tpu.memory_space<vmem>> -> memref<1x1x384xf32, #tpu.memory_space<vmem>>
        %639 = tpu.memref_squeeze %638 : memref<1x1x384xf32, #tpu.memory_space<vmem>> -> memref<1x384xf32, #tpu.memory_space<vmem>>
        %640 = tpu.memref_slice %arg13[%463] : memref<2x!tpu.dma_semaphore, #tpu.memory_space<semaphore_mem>> -> memref<1x!tpu.dma_semaphore, #tpu.memory_space<semaphore_mem>>
        %641 = tpu.memref_squeeze %640 : memref<1x!tpu.dma_semaphore, #tpu.memory_space<semaphore_mem>> -> memref<!tpu.dma_semaphore, #tpu.memory_space<semaphore_mem>>
        tpu.enqueue_dma source(%637 : memref<1x384xf32, #tpu.memory_space<any>>) target(%639 : memref<1x384xf32, #tpu.memory_space<vmem>>) target_semaphore(%641 : memref<!tpu.dma_semaphore, #tpu.memory_space<semaphore_mem>>)
        %c22_i32_421 = arith.constant 22 : i32
        %642 = arith.addi %465, %c22_i32_421 : i32
        %643 = arith.index_cast %642 : i32 to index
        %644 = memref.load %arg1[%643] : memref<512xi32, #tpu.memory_space<smem>>
        %c0_i32_422 = arith.constant 0 : i32
        %645 = tpu.memref_slice %arg2[%644, %c0_i32_422] : memref<50x384xf32, #tpu.memory_space<any>> -> memref<1x384xf32, #tpu.memory_space<any>>
        %c22_i32_423 = arith.constant 22 : i32
        %c0_i32_424 = arith.constant 0 : i32
        %646 = tpu.memref_slice %arg11[%463, %c22_i32_423, %c0_i32_424] : memref<2x32x384xf32, #tpu.memory_space<vmem>> -> memref<1x1x384xf32, #tpu.memory_space<vmem>>
        %647 = tpu.memref_squeeze %646 : memref<1x1x384xf32, #tpu.memory_space<vmem>> -> memref<1x384xf32, #tpu.memory_space<vmem>>
        %648 = tpu.memref_slice %arg13[%463] : memref<2x!tpu.dma_semaphore, #tpu.memory_space<semaphore_mem>> -> memref<1x!tpu.dma_semaphore, #tpu.memory_space<semaphore_mem>>
        %649 = tpu.memref_squeeze %648 : memref<1x!tpu.dma_semaphore, #tpu.memory_space<semaphore_mem>> -> memref<!tpu.dma_semaphore, #tpu.memory_space<semaphore_mem>>
        tpu.enqueue_dma source(%645 : memref<1x384xf32, #tpu.memory_space<any>>) target(%647 : memref<1x384xf32, #tpu.memory_space<vmem>>) target_semaphore(%649 : memref<!tpu.dma_semaphore, #tpu.memory_space<semaphore_mem>>)
        %c23_i32_425 = arith.constant 23 : i32
        %650 = arith.addi %465, %c23_i32_425 : i32
        %651 = arith.index_cast %650 : i32 to index
        %652 = memref.load %arg1[%651] : memref<512xi32, #tpu.memory_space<smem>>
        %c0_i32_426 = arith.constant 0 : i32
        %653 = tpu.memref_slice %arg2[%652, %c0_i32_426] : memref<50x384xf32, #tpu.memory_space<any>> -> memref<1x384xf32, #tpu.memory_space<any>>
        %c23_i32_427 = arith.constant 23 : i32
        %c0_i32_428 = arith.constant 0 : i32
        %654 = tpu.memref_slice %arg11[%463, %c23_i32_427, %c0_i32_428] : memref<2x32x384xf32, #tpu.memory_space<vmem>> -> memref<1x1x384xf32, #tpu.memory_space<vmem>>
        %655 = tpu.memref_squeeze %654 : memref<1x1x384xf32, #tpu.memory_space<vmem>> -> memref<1x384xf32, #tpu.memory_space<vmem>>
        %656 = tpu.memref_slice %arg13[%463] : memref<2x!tpu.dma_semaphore, #tpu.memory_space<semaphore_mem>> -> memref<1x!tpu.dma_semaphore, #tpu.memory_space<semaphore_mem>>
        %657 = tpu.memref_squeeze %656 : memref<1x!tpu.dma_semaphore, #tpu.memory_space<semaphore_mem>> -> memref<!tpu.dma_semaphore, #tpu.memory_space<semaphore_mem>>
        tpu.enqueue_dma source(%653 : memref<1x384xf32, #tpu.memory_space<any>>) target(%655 : memref<1x384xf32, #tpu.memory_space<vmem>>) target_semaphore(%657 : memref<!tpu.dma_semaphore, #tpu.memory_space<semaphore_mem>>)
        %c24_i32_429 = arith.constant 24 : i32
        %658 = arith.addi %465, %c24_i32_429 : i32
        %659 = arith.index_cast %658 : i32 to index
        %660 = memref.load %arg1[%659] : memref<512xi32, #tpu.memory_space<smem>>
        %c0_i32_430 = arith.constant 0 : i32
        %661 = tpu.memref_slice %arg2[%660, %c0_i32_430] : memref<50x384xf32, #tpu.memory_space<any>> -> memref<1x384xf32, #tpu.memory_space<any>>
        %c24_i32_431 = arith.constant 24 : i32
        %c0_i32_432 = arith.constant 0 : i32
        %662 = tpu.memref_slice %arg11[%463, %c24_i32_431, %c0_i32_432] : memref<2x32x384xf32, #tpu.memory_space<vmem>> -> memref<1x1x384xf32, #tpu.memory_space<vmem>>
        %663 = tpu.memref_squeeze %662 : memref<1x1x384xf32, #tpu.memory_space<vmem>> -> memref<1x384xf32, #tpu.memory_space<vmem>>
        %664 = tpu.memref_slice %arg13[%463] : memref<2x!tpu.dma_semaphore, #tpu.memory_space<semaphore_mem>> -> memref<1x!tpu.dma_semaphore, #tpu.memory_space<semaphore_mem>>
        %665 = tpu.memref_squeeze %664 : memref<1x!tpu.dma_semaphore, #tpu.memory_space<semaphore_mem>> -> memref<!tpu.dma_semaphore, #tpu.memory_space<semaphore_mem>>
        tpu.enqueue_dma source(%661 : memref<1x384xf32, #tpu.memory_space<any>>) target(%663 : memref<1x384xf32, #tpu.memory_space<vmem>>) target_semaphore(%665 : memref<!tpu.dma_semaphore, #tpu.memory_space<semaphore_mem>>)
        %c25_i32_433 = arith.constant 25 : i32
        %666 = arith.addi %465, %c25_i32_433 : i32
        %667 = arith.index_cast %666 : i32 to index
        %668 = memref.load %arg1[%667] : memref<512xi32, #tpu.memory_space<smem>>
        %c0_i32_434 = arith.constant 0 : i32
        %669 = tpu.memref_slice %arg2[%668, %c0_i32_434] : memref<50x384xf32, #tpu.memory_space<any>> -> memref<1x384xf32, #tpu.memory_space<any>>
        %c25_i32_435 = arith.constant 25 : i32
        %c0_i32_436 = arith.constant 0 : i32
        %670 = tpu.memref_slice %arg11[%463, %c25_i32_435, %c0_i32_436] : memref<2x32x384xf32, #tpu.memory_space<vmem>> -> memref<1x1x384xf32, #tpu.memory_space<vmem>>
        %671 = tpu.memref_squeeze %670 : memref<1x1x384xf32, #tpu.memory_space<vmem>> -> memref<1x384xf32, #tpu.memory_space<vmem>>
        %672 = tpu.memref_slice %arg13[%463] : memref<2x!tpu.dma_semaphore, #tpu.memory_space<semaphore_mem>> -> memref<1x!tpu.dma_semaphore, #tpu.memory_space<semaphore_mem>>
        %673 = tpu.memref_squeeze %672 : memref<1x!tpu.dma_semaphore, #tpu.memory_space<semaphore_mem>> -> memref<!tpu.dma_semaphore, #tpu.memory_space<semaphore_mem>>
        tpu.enqueue_dma source(%669 : memref<1x384xf32, #tpu.memory_space<any>>) target(%671 : memref<1x384xf32, #tpu.memory_space<vmem>>) target_semaphore(%673 : memref<!tpu.dma_semaphore, #tpu.memory_space<semaphore_mem>>)
        %c26_i32_437 = arith.constant 26 : i32
        %674 = arith.addi %465, %c26_i32_437 : i32
        %675 = arith.index_cast %674 : i32 to index
        %676 = memref.load %arg1[%675] : memref<512xi32, #tpu.memory_space<smem>>
        %c0_i32_438 = arith.constant 0 : i32
        %677 = tpu.memref_slice %arg2[%676, %c0_i32_438] : memref<50x384xf32, #tpu.memory_space<any>> -> memref<1x384xf32, #tpu.memory_space<any>>
        %c26_i32_439 = arith.constant 26 : i32
        %c0_i32_440 = arith.constant 0 : i32
        %678 = tpu.memref_slice %arg11[%463, %c26_i32_439, %c0_i32_440] : memref<2x32x384xf32, #tpu.memory_space<vmem>> -> memref<1x1x384xf32, #tpu.memory_space<vmem>>
        %679 = tpu.memref_squeeze %678 : memref<1x1x384xf32, #tpu.memory_space<vmem>> -> memref<1x384xf32, #tpu.memory_space<vmem>>
        %680 = tpu.memref_slice %arg13[%463] : memref<2x!tpu.dma_semaphore, #tpu.memory_space<semaphore_mem>> -> memref<1x!tpu.dma_semaphore, #tpu.memory_space<semaphore_mem>>
        %681 = tpu.memref_squeeze %680 : memref<1x!tpu.dma_semaphore, #tpu.memory_space<semaphore_mem>> -> memref<!tpu.dma_semaphore, #tpu.memory_space<semaphore_mem>>
        tpu.enqueue_dma source(%677 : memref<1x384xf32, #tpu.memory_space<any>>) target(%679 : memref<1x384xf32, #tpu.memory_space<vmem>>) target_semaphore(%681 : memref<!tpu.dma_semaphore, #tpu.memory_space<semaphore_mem>>)
        %c27_i32_441 = arith.constant 27 : i32
        %682 = arith.addi %465, %c27_i32_441 : i32
        %683 = arith.index_cast %682 : i32 to index
        %684 = memref.load %arg1[%683] : memref<512xi32, #tpu.memory_space<smem>>
        %c0_i32_442 = arith.constant 0 : i32
        %685 = tpu.memref_slice %arg2[%684, %c0_i32_442] : memref<50x384xf32, #tpu.memory_space<any>> -> memref<1x384xf32, #tpu.memory_space<any>>
        %c27_i32_443 = arith.constant 27 : i32
        %c0_i32_444 = arith.constant 0 : i32
        %686 = tpu.memref_slice %arg11[%463, %c27_i32_443, %c0_i32_444] : memref<2x32x384xf32, #tpu.memory_space<vmem>> -> memref<1x1x384xf32, #tpu.memory_space<vmem>>
        %687 = tpu.memref_squeeze %686 : memref<1x1x384xf32, #tpu.memory_space<vmem>> -> memref<1x384xf32, #tpu.memory_space<vmem>>
        %688 = tpu.memref_slice %arg13[%463] : memref<2x!tpu.dma_semaphore, #tpu.memory_space<semaphore_mem>> -> memref<1x!tpu.dma_semaphore, #tpu.memory_space<semaphore_mem>>
        %689 = tpu.memref_squeeze %688 : memref<1x!tpu.dma_semaphore, #tpu.memory_space<semaphore_mem>> -> memref<!tpu.dma_semaphore, #tpu.memory_space<semaphore_mem>>
        tpu.enqueue_dma source(%685 : memref<1x384xf32, #tpu.memory_space<any>>) target(%687 : memref<1x384xf32, #tpu.memory_space<vmem>>) target_semaphore(%689 : memref<!tpu.dma_semaphore, #tpu.memory_space<semaphore_mem>>)
        %c28_i32_445 = arith.constant 28 : i32
        %690 = arith.addi %465, %c28_i32_445 : i32
        %691 = arith.index_cast %690 : i32 to index
        %692 = memref.load %arg1[%691] : memref<512xi32, #tpu.memory_space<smem>>
        %c0_i32_446 = arith.constant 0 : i32
        %693 = tpu.memref_slice %arg2[%692, %c0_i32_446] : memref<50x384xf32, #tpu.memory_space<any>> -> memref<1x384xf32, #tpu.memory_space<any>>
        %c28_i32_447 = arith.constant 28 : i32
        %c0_i32_448 = arith.constant 0 : i32
        %694 = tpu.memref_slice %arg11[%463, %c28_i32_447, %c0_i32_448] : memref<2x32x384xf32, #tpu.memory_space<vmem>> -> memref<1x1x384xf32, #tpu.memory_space<vmem>>
        %695 = tpu.memref_squeeze %694 : memref<1x1x384xf32, #tpu.memory_space<vmem>> -> memref<1x384xf32, #tpu.memory_space<vmem>>
        %696 = tpu.memref_slice %arg13[%463] : memref<2x!tpu.dma_semaphore, #tpu.memory_space<semaphore_mem>> -> memref<1x!tpu.dma_semaphore, #tpu.memory_space<semaphore_mem>>
        %697 = tpu.memref_squeeze %696 : memref<1x!tpu.dma_semaphore, #tpu.memory_space<semaphore_mem>> -> memref<!tpu.dma_semaphore, #tpu.memory_space<semaphore_mem>>
        tpu.enqueue_dma source(%693 : memref<1x384xf32, #tpu.memory_space<any>>) target(%695 : memref<1x384xf32, #tpu.memory_space<vmem>>) target_semaphore(%697 : memref<!tpu.dma_semaphore, #tpu.memory_space<semaphore_mem>>)
        %c29_i32_449 = arith.constant 29 : i32
        %698 = arith.addi %465, %c29_i32_449 : i32
        %699 = arith.index_cast %698 : i32 to index
        %700 = memref.load %arg1[%699] : memref<512xi32, #tpu.memory_space<smem>>
        %c0_i32_450 = arith.constant 0 : i32
        %701 = tpu.memref_slice %arg2[%700, %c0_i32_450] : memref<50x384xf32, #tpu.memory_space<any>> -> memref<1x384xf32, #tpu.memory_space<any>>
        %c29_i32_451 = arith.constant 29 : i32
        %c0_i32_452 = arith.constant 0 : i32
        %702 = tpu.memref_slice %arg11[%463, %c29_i32_451, %c0_i32_452] : memref<2x32x384xf32, #tpu.memory_space<vmem>> -> memref<1x1x384xf32, #tpu.memory_space<vmem>>
        %703 = tpu.memref_squeeze %702 : memref<1x1x384xf32, #tpu.memory_space<vmem>> -> memref<1x384xf32, #tpu.memory_space<vmem>>
        %704 = tpu.memref_slice %arg13[%463] : memref<2x!tpu.dma_semaphore, #tpu.memory_space<semaphore_mem>> -> memref<1x!tpu.dma_semaphore, #tpu.memory_space<semaphore_mem>>
        %705 = tpu.memref_squeeze %704 : memref<1x!tpu.dma_semaphore, #tpu.memory_space<semaphore_mem>> -> memref<!tpu.dma_semaphore, #tpu.memory_space<semaphore_mem>>
        tpu.enqueue_dma source(%701 : memref<1x384xf32, #tpu.memory_space<any>>) target(%703 : memref<1x384xf32, #tpu.memory_space<vmem>>) target_semaphore(%705 : memref<!tpu.dma_semaphore, #tpu.memory_space<semaphore_mem>>)
        %c30_i32_453 = arith.constant 30 : i32
        %706 = arith.addi %465, %c30_i32_453 : i32
        %707 = arith.index_cast %706 : i32 to index
        %708 = memref.load %arg1[%707] : memref<512xi32, #tpu.memory_space<smem>>
        %c0_i32_454 = arith.constant 0 : i32
        %709 = tpu.memref_slice %arg2[%708, %c0_i32_454] : memref<50x384xf32, #tpu.memory_space<any>> -> memref<1x384xf32, #tpu.memory_space<any>>
        %c30_i32_455 = arith.constant 30 : i32
        %c0_i32_456 = arith.constant 0 : i32
        %710 = tpu.memref_slice %arg11[%463, %c30_i32_455, %c0_i32_456] : memref<2x32x384xf32, #tpu.memory_space<vmem>> -> memref<1x1x384xf32, #tpu.memory_space<vmem>>
        %711 = tpu.memref_squeeze %710 : memref<1x1x384xf32, #tpu.memory_space<vmem>> -> memref<1x384xf32, #tpu.memory_space<vmem>>
        %712 = tpu.memref_slice %arg13[%463] : memref<2x!tpu.dma_semaphore, #tpu.memory_space<semaphore_mem>> -> memref<1x!tpu.dma_semaphore, #tpu.memory_space<semaphore_mem>>
        %713 = tpu.memref_squeeze %712 : memref<1x!tpu.dma_semaphore, #tpu.memory_space<semaphore_mem>> -> memref<!tpu.dma_semaphore, #tpu.memory_space<semaphore_mem>>
        tpu.enqueue_dma source(%709 : memref<1x384xf32, #tpu.memory_space<any>>) target(%711 : memref<1x384xf32, #tpu.memory_space<vmem>>) target_semaphore(%713 : memref<!tpu.dma_semaphore, #tpu.memory_space<semaphore_mem>>)
        %c31_i32_457 = arith.constant 31 : i32
        %714 = arith.addi %465, %c31_i32_457 : i32
        %715 = arith.index_cast %714 : i32 to index
        %716 = memref.load %arg1[%715] : memref<512xi32, #tpu.memory_space<smem>>
        %c0_i32_458 = arith.constant 0 : i32
        %717 = tpu.memref_slice %arg2[%716, %c0_i32_458] : memref<50x384xf32, #tpu.memory_space<any>> -> memref<1x384xf32, #tpu.memory_space<any>>
        %c31_i32_459 = arith.constant 31 : i32
        %c0_i32_460 = arith.constant 0 : i32
        %718 = tpu.memref_slice %arg11[%463, %c31_i32_459, %c0_i32_460] : memref<2x32x384xf32, #tpu.memory_space<vmem>> -> memref<1x1x384xf32, #tpu.memory_space<vmem>>
        %719 = tpu.memref_squeeze %718 : memref<1x1x384xf32, #tpu.memory_space<vmem>> -> memref<1x384xf32, #tpu.memory_space<vmem>>
        %720 = tpu.memref_slice %arg13[%463] : memref<2x!tpu.dma_semaphore, #tpu.memory_space<semaphore_mem>> -> memref<1x!tpu.dma_semaphore, #tpu.memory_space<semaphore_mem>>
        %721 = tpu.memref_squeeze %720 : memref<1x!tpu.dma_semaphore, #tpu.memory_space<semaphore_mem>> -> memref<!tpu.dma_semaphore, #tpu.memory_space<semaphore_mem>>
        tpu.enqueue_dma source(%717 : memref<1x384xf32, #tpu.memory_space<any>>) target(%719 : memref<1x384xf32, #tpu.memory_space<vmem>>) target_semaphore(%721 : memref<!tpu.dma_semaphore, #tpu.memory_space<semaphore_mem>>)
      } else {
      }
      %c0_325 = arith.constant 0 : index
      %c0_326 = arith.constant 0 : index
      %456 = vector.load %arg12[%c0_325, %c0_326] : memref<32x384xf32, #tpu.memory_space<vmem>>, vector<32x384xf32>
      %457 = arith.index_cast %291 : i32 to index
      %c0_327 = arith.constant 0 : index
      %c0_328 = arith.constant 0 : index
      %458 = vector.load %arg11[%457, %c0_327, %c0_328] : memref<2x32x384xf32, #tpu.memory_space<vmem>>, vector<1x32x384xf32>
      %459 = vector.shape_cast %458 : vector<1x32x384xf32> to vector<32x384xf32>
      %460 = arith.addf %456, %459 : vector<32x384xf32>
      %c0_329 = arith.constant 0 : index
      %c0_330 = arith.constant 0 : index
      %461 = vector.load %arg12[%c0_329, %c0_330] : memref<32x384xf32, #tpu.memory_space<vmem>>, vector<32x384xf32>
      tpu.vector_store %arg12[%c0_329, %c0_330], %460 {strides = array<i32>} : memref<32x384xf32, #tpu.memory_space<vmem>>, vector<32x384xf32>,
    }
    %c8_i32_165 = arith.constant 8 : i32
    %c0_166 = arith.constant 0 : index
    %c0_167 = arith.constant 0 : index
    %261 = vector.load %arg12[%c0_166, %c0_167] : memref<32x384xf32, #tpu.memory_space<vmem>>, vector<32x384xf32>
    %cst_168 = arith.constant 1.250000e-01 : f32
    %262 = vector.broadcast %cst_168 : f32 to vector<32x384xf32>
    %263 = arith.mulf %261, %262 : vector<32x384xf32>
    %264 = vector.extract_strided_slice %263 {offsets = [0, 0], sizes = [16, 384], strides = [1, 1]} : vector<32x384xf32> to vector<16x384xf32>
    %265 = vector.extract_strided_slice %263 {offsets = [16, 0], sizes = [16, 384], strides = [1, 1]} : vector<32x384xf32> to vector<16x384xf32>
    %c0_169 = arith.constant 0 : index
    %c0_170 = arith.constant 0 : index
    %266 = vector.load %arg3[%c0_169, %c0_170] : memref<384x128xf32, #tpu.memory_space<vmem>>, vector<384x128xf32>
    %cst_171 = arith.constant dense<0.000000e+00> : vector<16x128xf32>
    %267 = tpu.matmul %264, %266, %cst_171 {dimension_numbers = #tpu.dot_dimension_numbers<[1], [0], [0], [1], [0, 0, 1, 1], [], []>} : vector<16x384xf32>, vector<384x128xf32>, vector<16x128xf32> -> vector<16x128xf32>
    %c0_172 = arith.constant 0 : index
    %c0_173 = arith.constant 0 : index
    %268 = vector.load %arg4[%c0_172, %c0_173] : memref<384x128xf32, #tpu.memory_space<vmem>>, vector<384x128xf32>
    %cst_174 = arith.constant dense<0.000000e+00> : vector<16x128xf32>
    %269 = tpu.matmul %265, %268, %cst_174 {dimension_numbers = #tpu.dot_dimension_numbers<[1], [0], [0], [1], [0, 0, 1, 1], [], []>} : vector<16x384xf32>, vector<384x128xf32>, vector<16x128xf32> -> vector<16x128xf32>
    %270 = arith.addf %267, %269 : vector<16x128xf32>
    %c0_175 = arith.constant 0 : index
    %c0_176 = arith.constant 0 : index
    %271 = vector.load %arg5[%c0_175, %c0_176] : memref<1x128xf32, #tpu.memory_space<vmem>>, vector<1x128xf32>
    %272 = vector.broadcast %271 : vector<1x128xf32> to vector<16x128xf32>
    %273 = arith.addf %270, %272 : vector<16x128xf32>
    %cst_177 = arith.constant 0.000000e+00 : f32
    %274 = vector.broadcast %cst_177 : f32 to vector<16x128xf32>
    %275 = arith.maximumf %273, %274 : vector<16x128xf32>
    %c0_178 = arith.constant 0 : index
    %c0_179 = arith.constant 0 : index
    %276 = vector.load %arg6[%c0_178, %c0_179] : memref<128x128xf32, #tpu.memory_space<vmem>>, vector<128x128xf32>
    %cst_180 = arith.constant dense<0.000000e+00> : vector<16x128xf32>
    %277 = tpu.matmul %275, %276, %cst_180 {dimension_numbers = #tpu.dot_dimension_numbers<[1], [0], [0], [1], [0, 0, 1, 1], [], []>} : vector<16x128xf32>, vector<128x128xf32>, vector<16x128xf32> -> vector<16x128xf32>
    %c0_181 = arith.constant 0 : index
    %c0_182 = arith.constant 0 : index
    %278 = vector.load %arg7[%c0_181, %c0_182] : memref<1x128xf32, #tpu.memory_space<vmem>>, vector<1x128xf32>
    %279 = vector.broadcast %278 : vector<1x128xf32> to vector<16x128xf32>
    %280 = arith.addf %277, %279 : vector<16x128xf32>
    %cst_183 = arith.constant 0.000000e+00 : f32
    %281 = vector.broadcast %cst_183 : f32 to vector<16x128xf32>
    %282 = arith.maximumf %280, %281 : vector<16x128xf32>
    %c0_184 = arith.constant 0 : index
    %c0_185 = arith.constant 0 : index
    %283 = vector.load %arg8[%c0_184, %c0_185] : memref<128x128xf32, #tpu.memory_space<vmem>>, vector<128x128xf32>
    %cst_186 = arith.constant dense<0.000000e+00> : vector<16x128xf32>
    %284 = tpu.matmul %282, %283, %cst_186 {dimension_numbers = #tpu.dot_dimension_numbers<[1], [0], [0], [1], [0, 0, 1, 1], [], []>} : vector<16x128xf32>, vector<128x128xf32>, vector<16x128xf32> -> vector<16x128xf32>
    %c0_187 = arith.constant 0 : index
    %c0_188 = arith.constant 0 : index
    %285 = vector.load %arg9[%c0_187, %c0_188] : memref<1x128xf32, #tpu.memory_space<vmem>>, vector<1x128xf32>
    %286 = vector.broadcast %285 : vector<1x128xf32> to vector<16x128xf32>
    %287 = arith.addf %284, %286 : vector<16x128xf32>
    %c0_189 = arith.constant 0 : index
    %c0_190 = arith.constant 0 : index
    %288 = vector.load %arg10[%c0_189, %c0_190] : memref<16x128xf32, #tpu.memory_space<vmem>>, vector<16x128xf32>
    tpu.vector_store %arg10[%c0_189, %c0_190], %287 {strides = array<i32>} : memref<16x128xf32, #tpu.memory_space<vmem>>, vector<16x128xf32>,
    return
  }
  func.func @transform_1(%arg0: i32, %arg1: memref<512xi32, #tpu.memory_space<smem>>) -> (i32, i32) {
    %c0_i32 = arith.constant 0 : i32
    %c0_i32_0 = arith.constant 0 : i32
    %c0_i32_1 = arith.constant 0 : i32
    return %c0_i32, %c0_i32_0 : i32, i32
  }
  func.func @transform_2(%arg0: i32, %arg1: memref<512xi32, #tpu.memory_space<smem>>) -> (i32, i32) {
    %c0_i32 = arith.constant 0 : i32
    %c0_i32_0 = arith.constant 0 : i32
    %c0_i32_1 = arith.constant 0 : i32
    return %c0_i32, %c0_i32_0 : i32, i32
  }
  func.func @transform_3(%arg0: i32, %arg1: memref<512xi32, #tpu.memory_space<smem>>) -> (i32, i32) {
    %c0_i32 = arith.constant 0 : i32
    %c0_i32_0 = arith.constant 0 : i32
    %c0_i32_1 = arith.constant 0 : i32
    return %c0_i32, %c0_i32_0 : i32, i32
  }
  func.func @transform_4(%arg0: i32, %arg1: memref<512xi32, #tpu.memory_space<smem>>) -> (i32, i32) {
    %c0_i32 = arith.constant 0 : i32
    %c0_i32_0 = arith.constant 0 : i32
    %c0_i32_1 = arith.constant 0 : i32
    return %c0_i32, %c0_i32_0 : i32, i32
  }
  func.func @transform_5(%arg0: i32, %arg1: memref<512xi32, #tpu.memory_space<smem>>) -> (i32, i32) {
    %c0_i32 = arith.constant 0 : i32
    %c0_i32_0 = arith.constant 0 : i32
    %c0_i32_1 = arith.constant 0 : i32
    return %c0_i32, %c0_i32_0 : i32, i32
  }
  func.func @transform_6(%arg0: i32, %arg1: memref<512xi32, #tpu.memory_space<smem>>) -> (i32, i32) {
    %c0_i32 = arith.constant 0 : i32
    %c0_i32_0 = arith.constant 0 : i32
    %c0_i32_1 = arith.constant 0 : i32
    return %c0_i32, %c0_i32_0 : i32, i32
  }
  func.func @transform_7(%arg0: i32, %arg1: memref<512xi32, #tpu.memory_space<smem>>) -> (i32, i32) {
    %c0_i32 = arith.constant 0 : i32
    %c0_i32_0 = arith.constant 0 : i32
    %c0_i32_1 = arith.constant 0 : i32
    return %c0_i32, %c0_i32_0 : i32, i32
  }
  func.func @transform_8(%arg0: i32, %arg1: memref<512xi32, #tpu.memory_space<smem>>) -> (i32, i32) {
    %c0_i32 = arith.constant 0 : i32
    %c0_i32_0 = arith.constant 0 : i32
    return %arg0, %c0_i32 : i32, i32
  }
}

</mosaic_0001>

<llo_original>
// kernel: tpu_custom_call.1
$region0: #{tpu_custom_call.1}
  #allocation0 [shape = 'u32[]', space=smem, size = 0x4, offset = 0x4, fixed_abs, tag = 'smem constant byte address 0x4 - core index']
  #allocation1 [shape = 'u32[144,128]{1,0:T(1,128)}', space=vmem, size = 0x12000, scoped, tag = 'internal scratch']
  #allocation2 [shape = 'f32[2,32,384]{2,1,0:T(8,128)}', space=vmem, size = 0x18000, scoped, tag = 'scratch operand']
  #allocation3 [shape = 'f32[32,384]{1,0:T(8,128)}', space=vmem, size = 0xc000, scoped, tag = 'scratch operand']
  #allocation4 [shape = 's32[2]{0}', space=sflag, size = 0x8, scoped, tag = 'scratch operand']
  #allocation5 [shape = 's32[1]{0}', space=sflag, size = 0x4, scoped, tag = 'scoped memory for tpu_custom_call.1']
  #allocation6 [shape = 'u8[2048]{0}', space=smem, size = 0x800, scoped, tag = 'prefetched SMEM operand 0']
  #allocation16 [shape = 's32[]', space=sflag, size = 0x4, offset = 0, fixed_abs, tag = 'sflag constant byte address 0x0 - dummy sync flag']
  #allocation17 [shape = 's32[]', space=sflag, size = 0x4, offset = 0, fixed_abs, tag = 'sflag constant byte address 0x0 - dummy sync flag']
  #allocation18 [shape = 's32[]', space=sflag, size = 0x4, offset = 0, fixed_abs, tag = 'sflag constant byte address 0x0 - dummy sync flag']
  #allocation19 [shape = 's32[]', space=sflag, size = 0x4, offset = 0, fixed_abs, tag = 'sflag constant byte address 0x0 - dummy sync flag']
  #allocation20 [shape = 's32[]', space=sflag, size = 0x4, offset = 0, fixed_abs, tag = 'sflag constant byte address 0x0 - dummy sync flag']
  #allocation21 [shape = 's32[]', space=sflag, size = 0x4, offset = 0, fixed_abs, tag = 'sflag constant byte address 0x0 - dummy sync flag']
  #allocation22 [shape = 's32[]', space=sflag, size = 0x4, offset = 0, fixed_abs, tag = 'sflag constant byte address 0x0 - dummy sync flag']
  #allocation23 [shape = 's32[]', space=sflag, size = 0x4, offset = 0, fixed_abs, tag = 'sflag constant byte address 0x0 - dummy sync flag']
  #allocation24 [shape = 's32[]', space=sflag, size = 0x4, offset = 0, fixed_abs, tag = 'sflag constant byte address 0x0 - dummy sync flag']
  #allocation25 [shape = 's32[]', space=sflag, size = 0x4, offset = 0, fixed_abs, tag = 'sflag constant byte address 0x0 - dummy sync flag']
  #allocation26 [shape = 's32[]', space=sflag, size = 0x4, offset = 0, fixed_abs, tag = 'sflag constant byte address 0x0 - dummy sync flag']
  #allocation27 [shape = 's32[]', space=sflag, size = 0x4, offset = 0, fixed_abs, tag = 'sflag constant byte address 0x0 - dummy sync flag']
  #allocation28 [shape = 's32[]', space=sflag, size = 0x4, offset = 0, fixed_abs, tag = 'sflag constant byte address 0x0 - dummy sync flag']
  #allocation29 [shape = 's32[]', space=sflag, size = 0x4, offset = 0, fixed_abs, tag = 'sflag constant byte address 0x0 - dummy sync flag']
  #allocation30 [shape = 's32[]', space=sflag, size = 0x4, offset = 0, fixed_abs, tag = 'sflag constant byte address 0x0 - dummy sync flag']
  #allocation31 [shape = 's32[]', space=sflag, size = 0x4, offset = 0, fixed_abs, tag = 'sflag constant byte address 0x0 - dummy sync flag']
  #allocation32 [shape = 's32[]', space=sflag, size = 0x4, offset = 0, fixed_abs, tag = 'sflag constant byte address 0x0 - dummy sync flag']
  #allocation33 [shape = 's32[]', space=sflag, size = 0x4, offset = 0, fixed_abs, tag = 'sflag constant byte address 0x0 - dummy sync flag']
  #allocation34 [shape = 's32[]', space=sflag, size = 0x4, offset = 0, fixed_abs, tag = 'sflag constant byte address 0x0 - dummy sync flag']
  #allocation35 [shape = 's32[]', space=sflag, size = 0x4, offset = 0, fixed_abs, tag = 'sflag constant byte address 0x0 - dummy sync flag']
  #allocation36 [shape = 's32[]', space=sflag, size = 0x4, offset = 0, fixed_abs, tag = 'sflag constant byte address 0x0 - dummy sync flag']
  #allocation37 [shape = 's32[]', space=sflag, size = 0x4, offset = 0, fixed_abs, tag = 'sflag constant byte address 0x0 - dummy sync flag']
  #allocation38 [shape = 's32[]', space=sflag, size = 0x4, offset = 0, fixed_abs, tag = 'sflag constant byte address 0x0 - dummy sync flag']
  #allocation39 [shape = 's32[]', space=sflag, size = 0x4, offset = 0, fixed_abs, tag = 'sflag constant byte address 0x0 - dummy sync flag']
  #allocation40 [shape = 's32[]', space=sflag, size = 0x4, offset = 0, fixed_abs, tag = 'sflag constant byte address 0x0 - dummy sync flag']
  #allocation41 [shape = 's32[]', space=sflag, size = 0x4, offset = 0, fixed_abs, tag = 'sflag constant byte address 0x0 - dummy sync flag']
  #allocation42 [shape = 's32[]', space=sflag, size = 0x4, offset = 0, fixed_abs, tag = 'sflag constant byte address 0x0 - dummy sync flag']
  #allocation43 [shape = 's32[]', space=sflag, size = 0x4, offset = 0, fixed_abs, tag = 'sflag constant byte address 0x0 - dummy sync flag']
  #allocation44 [shape = 's32[]', space=sflag, size = 0x4, offset = 0, fixed_abs, tag = 'sflag constant byte address 0x0 - dummy sync flag']
  #allocation45 [shape = 's32[]', space=sflag, size = 0x4, offset = 0, fixed_abs, tag = 'sflag constant byte address 0x0 - dummy sync flag']
  #allocation46 [shape = 's32[]', space=sflag, size = 0x4, offset = 0, fixed_abs, tag = 'sflag constant byte address 0x0 - dummy sync flag']
  #allocation47 [shape = 's32[]', space=sflag, size = 0x4, offset = 0, fixed_abs, tag = 'sflag constant byte address 0x0 - dummy sync flag']
  #allocation48 [shape = 's32[]', space=sflag, size = 0x4, offset = 0, fixed_abs, tag = 'sflag constant byte address 0x0 - dummy sync flag']
  #allocation49 [shape = 's32[]', space=sflag, size = 0x4, offset = 0, fixed_abs, tag = 'sflag constant byte address 0x0 - dummy sync flag']
  #allocation50 [shape = 's32[]', space=sflag, size = 0x4, offset = 0, fixed_abs, tag = 'sflag constant byte address 0x0 - dummy sync flag']
  #allocation51 [shape = 's32[]', space=sflag, size = 0x4, offset = 0, fixed_abs, tag = 'sflag constant byte address 0x0 - dummy sync flag']
  #allocation52 [shape = 's32[]', space=sflag, size = 0x4, offset = 0, fixed_abs, tag = 'sflag constant byte address 0x0 - dummy sync flag']
  #allocation53 [shape = 's32[]', space=sflag, size = 0x4, offset = 0, fixed_abs, tag = 'sflag constant byte address 0x0 - dummy sync flag']
  #allocation54 [shape = 's32[]', space=sflag, size = 0x4, offset = 0, fixed_abs, tag = 'sflag constant byte address 0x0 - dummy sync flag']
  #allocation55 [shape = 's32[]', space=sflag, size = 0x4, offset = 0, fixed_abs, tag = 'sflag constant byte address 0x0 - dummy sync flag']
  #allocation56 [shape = 's32[]', space=sflag, size = 0x4, offset = 0, fixed_abs, tag = 'sflag constant byte address 0x0 - dummy sync flag']
  #allocation57 [shape = 's32[]', space=sflag, size = 0x4, offset = 0, fixed_abs, tag = 'sflag constant byte address 0x0 - dummy sync flag']
  #allocation58 [shape = 's32[]', space=sflag, size = 0x4, offset = 0, fixed_abs, tag = 'sflag constant byte address 0x0 - dummy sync flag']
  #allocation59 [shape = 's32[]', space=sflag, size = 0x4, offset = 0, fixed_abs, tag = 'sflag constant byte address 0x0 - dummy sync flag']
  #allocation60 [shape = 's32[]', space=sflag, size = 0x4, offset = 0, fixed_abs, tag = 'sflag constant byte address 0x0 - dummy sync flag']
  #allocation61 [shape = 's32[]', space=sflag, size = 0x4, offset = 0, fixed_abs, tag = 'sflag constant byte address 0x0 - dummy sync flag']
  #allocation62 [shape = 's32[]', space=sflag, size = 0x4, offset = 0, fixed_abs, tag = 'sflag constant byte address 0x0 - dummy sync flag']
  #allocation63 [shape = 's32[]', space=sflag, size = 0x4, offset = 0, fixed_abs, tag = 'sflag constant byte address 0x0 - dummy sync flag']
  #allocation64 [shape = 's32[]', space=sflag, size = 0x4, offset = 0, fixed_abs, tag = 'sflag constant byte address 0x0 - dummy sync flag']
  #allocation65 [shape = 's32[]', space=sflag, size = 0x4, offset = 0, fixed_abs, tag = 'sflag constant byte address 0x0 - dummy sync flag']
  #allocation66 [shape = 's32[]', space=sflag, size = 0x4, offset = 0, fixed_abs, tag = 'sflag constant byte address 0x0 - dummy sync flag']
  #allocation67 [shape = 's32[]', space=sflag, size = 0x4, offset = 0, fixed_abs, tag = 'sflag constant byte address 0x0 - dummy sync flag']
  #allocation68 [shape = 's32[]', space=sflag, size = 0x4, offset = 0, fixed_abs, tag = 'sflag constant byte address 0x0 - dummy sync flag']
  #allocation69 [shape = 's32[]', space=sflag, size = 0x4, offset = 0, fixed_abs, tag = 'sflag constant byte address 0x0 - dummy sync flag']
  #allocation70 [shape = 's32[]', space=sflag, size = 0x4, offset = 0, fixed_abs, tag = 'sflag constant byte address 0x0 - dummy sync flag']
  #allocation71 [shape = 's32[]', space=sflag, size = 0x4, offset = 0, fixed_abs, tag = 'sflag constant byte address 0x0 - dummy sync flag']
  #allocation72 [shape = 's32[]', space=sflag, size = 0x4, offset = 0, fixed_abs, tag = 'sflag constant byte address 0x0 - dummy sync flag']
  #allocation73 [shape = 's32[]', space=sflag, size = 0x4, offset = 0, fixed_abs, tag = 'sflag constant byte address 0x0 - dummy sync flag']
  #allocation74 [shape = 's32[]', space=sflag, size = 0x4, offset = 0, fixed_abs, tag = 'sflag constant byte address 0x0 - dummy sync flag']
  #allocation75 [shape = 's32[]', space=sflag, size = 0x4, offset = 0, fixed_abs, tag = 'sflag constant byte address 0x0 - dummy sync flag']
  #allocation76 [shape = 's32[]', space=sflag, size = 0x4, offset = 0, fixed_abs, tag = 'sflag constant byte address 0x0 - dummy sync flag']
  #allocation77 [shape = 's32[]', space=sflag, size = 0x4, offset = 0, fixed_abs, tag = 'sflag constant byte address 0x0 - dummy sync flag']
  #allocation78 [shape = 's32[]', space=sflag, size = 0x4, offset = 0, fixed_abs, tag = 'sflag constant byte address 0x0 - dummy sync flag']
  #allocation79 [shape = 's32[]', space=sflag, size = 0x4, offset = 0, fixed_abs, tag = 'sflag constant byte address 0x0 - dummy sync flag']
  %s0 = inlined_call_operand.hbm [shape: s32[512], index: 0, kind: input, shape index: {}]
  %s1 = inlined_call_operand.hbm [shape: f32[50,384], index: 1, kind: input, shape index: {}]
  %s2 = inlined_call_operand.hbm [shape: f32[384,128], index: 2, kind: input, shape index: {}]
  %s3 = inlined_call_operand.hbm [shape: f32[384,128], index: 3, kind: input, shape index: {}]
  %s4 = inlined_call_operand.vmem [shape: f32[1,128], index: 4, kind: input, shape index: {}]
  %s5 = inlined_call_operand.hbm [shape: f32[128,128], index: 5, kind: input, shape index: {}]
  %s6 = inlined_call_operand.vmem [shape: f32[1,128], index: 6, kind: input, shape index: {}]
  %s7 = inlined_call_operand.hbm [shape: f32[128,128], index: 7, kind: input, shape index: {}]
  %s8 = inlined_call_operand.vmem [shape: f32[1,128], index: 8, kind: input, shape index: {}]
  %s9 = inlined_call_operand.hbm [shape: f32[32,128], index: 9, kind: output, shape index: {}]
  %s10 = sld [smem:[#allocation0]]
  $region88: #{tpu_custom_call.1} parent=0
    _
  %s12 = ssub.s32 1, %s10
  %s13 = scalar_select 0, %s12, %s10
  %15 = dma.hbm_to_smem %s0, 64, [#allocation6], [#allocation5]
  %16 = dma.done [#allocation5], 64
  %17 = sfence
  $region1: #{tpu_custom_call.1} parent=0
    #allocation7 [shape = 'u8[196608]{0}', space=vmem, size = 0x30000, scoped, tag = 'input window, operand 2, single buffered']
    #allocation8 [shape = 's32[2]{0}', space=sflag, size = 0x8, scoped, tag = 'scoped memory for tpu_custom_call.1']
    #allocation9 [shape = 's32[2]{0}', space=sflag, size = 0x8, scoped, tag = 'scoped memory for tpu_custom_call.1']
    #allocation10 [shape = 'u8[196608]{0}', space=vmem, size = 0x30000, scoped, tag = 'input window, operand 3, single buffered']
    #allocation11 [shape = 's32[1]{0}', space=sflag, size = 0x4, scoped, tag = 'scoped memory for tpu_custom_call.1']
    #allocation12 [shape = 'u8[65536]{0}', space=vmem, size = 0x10000, scoped, tag = 'input window, operand 5, single buffered']
    #allocation13 [shape = 'u8[65536]{0}', space=vmem, size = 0x10000, scoped, tag = 'input window, operand 7, single buffered']
    #allocation14 [shape = 's32[1]{0}', space=sflag, size = 0x4, scoped, tag = 'scoped memory for tpu_custom_call.1']
    #allocation15 [shape = 'u8[16384]{0}', space=vmem, size = 0x4000, scoped, tag = 'output window, operand 0']
    %18 = vsyncpa [#allocation8], 0
    %19 = vsyncpa [#allocation11], 0
    %20 = vsyncpa [#allocation14], 0
    %21 = vsyncpa [#allocation9], 0
    %s22 = scalar_lea.sflag [#allocation9], 1
    %23 = vsyncpa %s22, 0
    loop: start=0, step=1, limit=4
    $region2: #{tpu_custom_call.1} parent=1 // loop_pre_header
      _
    $region3: #{tpu_custom_call.1} parent=1 // loop_header
      %s25 = sphi 0, %s29
      %p26 = scmp.ge.s32.totalorder %s25, 4
      %s33 = sphi 0, %s33
      %s35 = sphi 0, %s33
      %s36 = sphi 0, %s35
      %s50 = sphi 0, %s36
      %s54 = sphi 0, %s54
      %s56 = sphi 0, %s54
      %s57 = sphi 0, %s56
      %s71 = sphi 0, %s57
      %s75 = sphi 0, %s75
      %s77 = sphi 0, %s75
      %s78 = sphi 0, %s77
      %s92 = sphi 0, %s78
      %s96 = sphi 0, %s96
      %s98 = sphi 0, %s96
      %s99 = sphi 0, %s98
      %s113 = sphi 0, %s99
      %s117 = sphi 0, %s117
      %s119 = sphi 0, %s117
      %s120 = sphi 0, %s119
      %s134 = sphi 0, %s120
      %s138 = sphi 0, %s138
      %s140 = sphi 0, %s138
      %s141 = sphi 0, %s140
      %s155 = sphi 0, %s141
      %s159 = sphi 0, %s159
      %s161 = sphi 0, %s159
      %s162 = sphi 0, %s161
      %s176 = sphi 0, %s162
      %s182 = sphi 0, %s184
      %s185 = sphi 0, %s182
      %s186 = sphi 0, %s185
      %s202 = sphi 0, %s186
    $region4: #{tpu_custom_call.1} parent=1 // loop_header_branch
      %28 = sbr.rel (%p26) target = $region8
    $region5: #{tpu_custom_call.1} parent=1 // loop_body
      %s30 = ssub.s32 %s25, 1
      %s31 = ssub.s32 %s25, 2
      %s32 = sadd.s32 %s25, 1
      %s34 = sadd.s32 %s33, 1
      %p37 = scmp.eq.s32.totalorder %s25, 1
      %p38 = scmp.ne.s32.totalorder %s33, %s35
      %p39 = scmp.eq.s32.totalorder %s25, 0
      %p40 = por %p38, %p39
      %p41 = scmp.ne.s32.totalorder %s33, %s35
      %p42 = scmp.eq.s32.totalorder %s30, 1
      %p43 = por %p41, %p42
      %p44 = scmp.ne.s32.totalorder %s35, %s36
      %p45 = scmp.eq.s32.totalorder %s30, 0
      %p46 = por %p44, %p45
      %p47 = scmp.ne.s32.totalorder %s35, %s36
      %p48 = scmp.eq.s32.totalorder %s31, 1
      %p49 = por %p47, %p48
      %p51 = scmp.ne.s32.totalorder %s36, %s50
      %p52 = scmp.eq.s32.totalorder %s31, 0
      %p53 = por %p51, %p52
      %s55 = sadd.s32 %s54, 1
      %p58 = scmp.eq.s32.totalorder %s25, 1
      %p59 = scmp.ne.s32.totalorder %s54, %s56
      %p60 = scmp.eq.s32.totalorder %s25, 0
      %p61 = por %p59, %p60
      %p62 = scmp.ne.s32.totalorder %s54, %s56
      %p63 = scmp.eq.s32.totalorder %s30, 1
      %p64 = por %p62, %p63
      %p65 = scmp.ne.s32.totalorder %s56, %s57
      %p66 = scmp.eq.s32.totalorder %s30, 0
      %p67 = por %p65, %p66
      %p68 = scmp.ne.s32.totalorder %s56, %s57
      %p69 = scmp.eq.s32.totalorder %s31, 1
      %p70 = por %p68, %p69
      %p72 = scmp.ne.s32.totalorder %s57, %s71
      %p73 = scmp.eq.s32.totalorder %s31, 0
      %p74 = por %p72, %p73
      %s76 = sadd.s32 %s75, 1
      %p79 = scmp.eq.s32.totalorder %s25, 1
      %p80 = scmp.ne.s32.totalorder %s75, %s77
      %p81 = scmp.eq.s32.totalorder %s25, 0
      %p82 = por %p80, %p81
      %p83 = scmp.ne.s32.totalorder %s75, %s77
      %p84 = scmp.eq.s32.totalorder %s30, 1
      %p85 = por %p83, %p84
      %p86 = scmp.ne.s32.totalorder %s77, %s78
      %p87 = scmp.eq.s32.totalorder %s30, 0
      %p88 = por %p86, %p87
      %p89 = scmp.ne.s32.totalorder %s77, %s78
      %p90 = scmp.eq.s32.totalorder %s31, 1
      %p91 = por %p89, %p90
      %p93 = scmp.ne.s32.totalorder %s78, %s92
      %p94 = scmp.eq.s32.totalorder %s31, 0
      %p95 = por %p93, %p94
      %s97 = sadd.s32 %s96, 1
      %p100 = scmp.eq.s32.totalorder %s25, 1
      %p101 = scmp.ne.s32.totalorder %s96, %s98
      %p102 = scmp.eq.s32.totalorder %s25, 0
      %p103 = por %p101, %p102
      %p104 = scmp.ne.s32.totalorder %s96, %s98
      %p105 = scmp.eq.s32.totalorder %s30, 1
      %p106 = por %p104, %p105
      %p107 = scmp.ne.s32.totalorder %s98, %s99
      %p108 = scmp.eq.s32.totalorder %s30, 0
      %p109 = por %p107, %p108
      %p110 = scmp.ne.s32.totalorder %s98, %s99
      %p111 = scmp.eq.s32.totalorder %s31, 1
      %p112 = por %p110, %p111
      %p114 = scmp.ne.s32.totalorder %s99, %s113
      %p115 = scmp.eq.s32.totalorder %s31, 0
      %p116 = por %p114, %p115
      %s118 = sadd.s32 %s117, 1
      %p121 = scmp.eq.s32.totalorder %s25, 1
      %p122 = scmp.ne.s32.totalorder %s117, %s119
      %p123 = scmp.eq.s32.totalorder %s25, 0
      %p124 = por %p122, %p123
      %p125 = scmp.ne.s32.totalorder %s117, %s119
      %p126 = scmp.eq.s32.totalorder %s30, 1
      %p127 = por %p125, %p126
      %p128 = scmp.ne.s32.totalorder %s119, %s120
      %p129 = scmp.eq.s32.totalorder %s30, 0
      %p130 = por %p128, %p129
      %p131 = scmp.ne.s32.totalorder %s119, %s120
      %p132 = scmp.eq.s32.totalorder %s31, 1
      %p133 = por %p131, %p132
      %p135 = scmp.ne.s32.totalorder %s120, %s134
      %p136 = scmp.eq.s32.totalorder %s31, 0
      %p137 = por %p135, %p136
      %s139 = sadd.s32 %s138, 1
      %p142 = scmp.eq.s32.totalorder %s25, 1
      %p143 = scmp.ne.s32.totalorder %s138, %s140
      %p144 = scmp.eq.s32.totalorder %s25, 0
      %p145 = por %p143, %p144
      %p146 = scmp.ne.s32.totalorder %s138, %s140
      %p147 = scmp.eq.s32.totalorder %s30, 1
      %p148 = por %p146, %p147
      %p149 = scmp.ne.s32.totalorder %s140, %s141
      %p150 = scmp.eq.s32.totalorder %s30, 0
      %p151 = por %p149, %p150
      %p152 = scmp.ne.s32.totalorder %s140, %s141
      %p153 = scmp.eq.s32.totalorder %s31, 1
      %p154 = por %p152, %p153
      %p156 = scmp.ne.s32.totalorder %s141, %s155
      %p157 = scmp.eq.s32.totalorder %s31, 0
      %p158 = por %p156, %p157
      %s160 = sadd.s32 %s159, 1
      %p163 = scmp.eq.s32.totalorder %s25, 1
      %p164 = scmp.ne.s32.totalorder %s159, %s161
      %p165 = scmp.eq.s32.totalorder %s25, 0
      %p166 = por %p164, %p165
      %p167 = scmp.ne.s32.totalorder %s159, %s161
      %p168 = scmp.eq.s32.totalorder %s30, 1
      %p169 = por %p167, %p168
      %p170 = scmp.ne.s32.totalorder %s161, %s162
      %p171 = scmp.eq.s32.totalorder %s30, 0
      %p172 = por %p170, %p171
      %p173 = scmp.ne.s32.totalorder %s161, %s162
      %p174 = scmp.eq.s32.totalorder %s31, 1
      %p175 = por %p173, %p174
      %p177 = scmp.ne.s32.totalorder %s162, %s176
      %p178 = scmp.eq.s32.totalorder %s31, 0
      %p179 = por %p177, %p178
      %s180 = ssub.s32 %s25, %s32
      %p181 = scmp.eq.s32.totalorder %s180, 0
      %s183 = sadd.s32 %s182, 1
      %s184 = scalar_select %p181, %s182, %s183
      %p187 = pneg %p181
      %p188 = scmp.eq.s32.totalorder %s25, 1
      %p189 = por %p187, %p188
      %p190 = scmp.ne.s32.totalorder %s182, %s185
      %p191 = scmp.eq.s32.totalorder %s25, 0
      %p192 = por %p190, %p191
      %p193 = scmp.ne.s32.totalorder %s182, %s185
      %p194 = scmp.eq.s32.totalorder %s30, 1
      %p195 = por %p193, %p194
      %p196 = scmp.ne.s32.totalorder %s185, %s186
      %p197 = scmp.eq.s32.totalorder %s30, 0
      %p198 = por %p196, %p197
      %p199 = scmp.ne.s32.totalorder %s185, %s186
      %p200 = scmp.eq.s32.totalorder %s31, 1
      %p201 = por %p199, %p200
      %p203 = scmp.ne.s32.totalorder %s186, %s202
      %p204 = scmp.eq.s32.totalorder %s31, 0
      %p205 = por %p203, %p204
      %p206 = scmp.le.s32.totalorder 1, %s25
      %p207 = scmp.lt.s32.totalorder %s25, 3
      %p208 = pnand %p206, %p207
      %p209 = pneg %p208
      // Predicated region
      $region9: #{tpu_custom_call.1} parent=5 // pred_check
        _
      $region10: #{tpu_custom_call.1} parent=5 // pred_check_branch
        %211 = sbr.rel (%p208) target = $region12
      $region11: #{tpu_custom_call.1} parent=5 // pred_region
        %s212 = ssub.s32 %s25, 1
        // Predicated region
        $region13: #{tpu_custom_call.1} parent=11 // pred_check
          %p213 = pneg %p46
        $region14: #{tpu_custom_call.1} parent=11 // pred_check_branch
          %215 = sbr.rel (%p213) target = $region16
        $region15: #{tpu_custom_call.1} parent=11 // pred_region
          %s217 = ssub.s32 6144, 6144
          %218 = vsyncadd [#allocation8], %s217
          %s219 = sshll.u32 [#allocation7], 4
          %s220 = int_to_ptr.vmem [resolvable:$true] %s219
          %225 = dma.hbm_to_vmem [thread:$0]  %s2, 6144, %s220, [#allocation8], 128, 128, 8
        $region16: #{tpu_custom_call.1} parent=11 // pred_fallthru
          _
        // Predicated region
        $region17: #{tpu_custom_call.1} parent=11 // pred_check
          %p226 = pneg %p67
        $region18: #{tpu_custom_call.1} parent=11 // pred_check_branch
          %228 = sbr.rel (%p226) target = $region20
        $region19: #{tpu_custom_call.1} parent=11 // pred_region
          %s230 = ssub.s32 6144, 6144
          %231 = vsyncadd [#allocation11], %s230
          %s232 = sshll.u32 [#allocation10], 4
          %s233 = int_to_ptr.vmem [resolvable:$true] %s232
          %238 = dma.hbm_to_vmem [thread:$0]  %s3, 6144, %s233, [#allocation11], 128, 128, 8
        $region20: #{tpu_custom_call.1} parent=11 // pred_fallthru
          _
        // Predicated region
        $region21: #{tpu_custom_call.1} parent=11 // pred_check
          %p239 = pneg %p88
        $region22: #{tpu_custom_call.1} parent=11 // pred_check_branch
          %241 = sbr.rel (%p239) target = $region24
        $region23: #{tpu_custom_call.1} parent=11 // pred_region
          _
        $region24: #{tpu_custom_call.1} parent=11 // pred_fallthru
          _
        // Predicated region
        $region25: #{tpu_custom_call.1} parent=11 // pred_check
          %p242 = pneg %p109
        $region26: #{tpu_custom_call.1} parent=11 // pred_check_branch
          %244 = sbr.rel (%p242) target = $region28
        $region27: #{tpu_custom_call.1} parent=11 // pred_region
          %s246 = ssub.s32 2048, 2048
          %247 = vsyncadd [#allocation11], %s246
          %s248 = sshll.u32 [#allocation12], 4
          %s249 = int_to_ptr.vmem [resolvable:$true] %s248
          %254 = dma.hbm_to_vmem [thread:$0]  %s5, 2048, %s249, [#allocation11], 128, 128, 8
        $region28: #{tpu_custom_call.1} parent=11 // pred_fallthru
          _
        // Predicated region
        $region29: #{tpu_custom_call.1} parent=11 // pred_check
          %p255 = pneg %p130
        $region30: #{tpu_custom_call.1} parent=11 // pred_check_branch
          %257 = sbr.rel (%p255) target = $region32
        $region31: #{tpu_custom_call.1} parent=11 // pred_region
          _
        $region32: #{tpu_custom_call.1} parent=11 // pred_fallthru
          _
        // Predicated region
        $region33: #{tpu_custom_call.1} parent=11 // pred_check
          %p258 = pneg %p151
        $region34: #{tpu_custom_call.1} parent=11 // pred_check_branch
          %260 = sbr.rel (%p258) target = $region36
        $region35: #{tpu_custom_call.1} parent=11 // pred_region
          %s262 = ssub.s32 2048, 2048
          %263 = vsyncadd [#allocation14], %s262
          %s264 = sshll.u32 [#allocation13], 4
          %s265 = int_to_ptr.vmem [resolvable:$true] %s264
          %270 = dma.hbm_to_vmem [thread:$0]  %s7, 2048, %s265, [#allocation14], 128, 128, 8
        $region36: #{tpu_custom_call.1} parent=11 // pred_fallthru
          _
        // Predicated region
        $region37: #{tpu_custom_call.1} parent=11 // pred_check
          %p271 = pneg %p172
        $region38: #{tpu_custom_call.1} parent=11 // pred_check_branch
          %273 = sbr.rel (%p271) target = $region40
        $region39: #{tpu_custom_call.1} parent=11 // pred_region
          _
        $region40: #{tpu_custom_call.1} parent=11 // pred_fallthru
          _
      $region12: #{tpu_custom_call.1} parent=5 // pred_fallthru
        _
      %p274 = scmp.lt.s32.totalorder %s25, 2
      // Predicated region
      $region41: #{tpu_custom_call.1} parent=5 // pred_check
        %p275 = pneg %p274
      $region42: #{tpu_custom_call.1} parent=5 // pred_check_branch
        %277 = sbr.rel (%p275) target = $region44
      $region43: #{tpu_custom_call.1} parent=5 // pred_region
        _
      $region44: #{tpu_custom_call.1} parent=5 // pred_fallthru
        _
      %p278 = scmp.le.s32.totalorder 1, %s25
      %p279 = scmp.lt.s32.totalorder %s25, 3
      %p280 = pnand %p278, %p279
      %p281 = pneg %p280
      // Predicated region
      $region45: #{tpu_custom_call.1} parent=5 // pred_check
        _
      $region46: #{tpu_custom_call.1} parent=5 // pred_check_branch
        %283 = sbr.rel (%p280) target = $region48
      $region47: #{tpu_custom_call.1} parent=5 // pred_region
        %s284 = ssub.s32 %s25, 1
        // Predicated region
        $region49: #{tpu_custom_call.1} parent=47 // pred_check
          %p285 = pneg %p46
        $region50: #{tpu_custom_call.1} parent=47 // pred_check_branch
          %287 = sbr.rel (%p285) target = $region52
        $region51: #{tpu_custom_call.1} parent=47 // pred_region
          %288 = dma.done [#allocation8], 6144
        $region52: #{tpu_custom_call.1} parent=47 // pred_fallthru
          _
        // Predicated region
        $region53: #{tpu_custom_call.1} parent=47 // pred_check
          %p289 = pneg %p67
        $region54: #{tpu_custom_call.1} parent=47 // pred_check_branch
          %291 = sbr.rel (%p289) target = $region56
        $region55: #{tpu_custom_call.1} parent=47 // pred_region
          %292 = dma.done [#allocation11], 6144
        $region56: #{tpu_custom_call.1} parent=47 // pred_fallthru
          _
        // Predicated region
        $region57: #{tpu_custom_call.1} parent=47 // pred_check
          %p293 = pneg %p109
        $region58: #{tpu_custom_call.1} parent=47 // pred_check_branch
          %295 = sbr.rel (%p293) target = $region60
        $region59: #{tpu_custom_call.1} parent=47 // pred_region
          %296 = dma.done [#allocation11], 2048
        $region60: #{tpu_custom_call.1} parent=47 // pred_fallthru
          _
        // Predicated region
        $region61: #{tpu_custom_call.1} parent=47 // pred_check
          %p297 = pneg %p151
        $region62: #{tpu_custom_call.1} parent=47 // pred_check_branch
          %299 = sbr.rel (%p297) target = $region64
        $region63: #{tpu_custom_call.1} parent=47 // pred_region
          %300 = dma.done [#allocation14], 2048
        $region64: #{tpu_custom_call.1} parent=47 // pred_fallthru
          _
        %p301 = pneg %p46
        %p302 = pneg %p43
        %p303 = pneg %p67
        %p304 = pneg %p64
        %p305 = pneg %p88
        %p306 = pneg %p85
        %p307 = pneg %p109
        %p308 = pneg %p106
        %p309 = pneg %p130
        %p310 = pneg %p127
        %p311 = pneg %p151
        %p312 = pneg %p148
        %p313 = pneg %p172
        %p314 = pneg %p169
        %p315 = pneg %p198
        %p316 = pneg %p195
        %s317 = sand.u32 %s185, 1
        %s318 = scalar_lea.sflag [#allocation9], %s317
        %s319 = sand.u32 %s185, 1
        %s320 = smul.addr %s319, 16
        %s321 = scalar_lea.vmem [#allocation15], %s320
        %s322 = smul.u32 2, %s30
        %s323 = smul.u32 %s30, 256
        %324 = vst [vmem:[#allocation3] sm:$0xff] 0.0
        %325 = vst [vmem:[#allocation3 + $0x8] sm:$0xff] 0.0
        %326 = vst [vmem:[#allocation3 + $0x10] sm:$0xff] 0.0
        %327 = vst [vmem:[#allocation3 + $0x18] sm:$0xff] 0.0
        %328 = vst [vmem:[#allocation3 + $0x20] sm:$0xff] 0.0
        %329 = vst [vmem:[#allocation3 + $0x28] sm:$0xff] 0.0
        %330 = vst [vmem:[#allocation3 + $0x30] sm:$0xff] 0.0
        %331 = vst [vmem:[#allocation3 + $0x38] sm:$0xff] 0.0
        %332 = vst [vmem:[#allocation3 + $0x40] sm:$0xff] 0.0
        %333 = vst [vmem:[#allocation3 + $0x48] sm:$0xff] 0.0
        %334 = vst [vmem:[#allocation3 + $0x50] sm:$0xff] 0.0
        %335 = vst [vmem:[#allocation3 + $0x58] sm:$0xff] 0.0
        %s336 = sld [smem:[#allocation6 + %s323]]
        %s337 = sshrl.u32 %s336, 3
        %s338 = sand.u32 %s336, 7
        %s339 = smul.u32 %s337, 24
        %s340 = sadd.s32 %s338, %s339
        %s341 = smul.addr %s340, 16
        %s342 = scalar_lea.hbm %s1, %s341
        %s344 = sshll.u32 [#allocation2], 4
        %s345 = int_to_ptr.vmem [resolvable:$true] %s344
        %347 = dma.hbm_to_vmem [thread:$0]  %s342, 48, %s345, [#allocation4], 128, 128, 1
        %s348 = sadd.s32 %s323, 1
        %s349 = sld [smem:[#allocation6 + %s348]]
        %s350 = sshrl.u32 %s349, 3
        %s351 = sand.u32 %s349, 7
        %s352 = smul.u32 %s350, 24
        %s353 = sadd.s32 %s351, %s352
        %s354 = smul.addr %s353, 16
        %s355 = scalar_lea.hbm %s1, %s354
        %s356 = scalar_lea.vmem [#allocation2], 1
        %s358 = sshll.u32 %s356, 4
        %s359 = int_to_ptr.vmem [resolvable:$true] %s358
        %361 = dma.hbm_to_vmem [thread:$0]  %s355, 48, %s359, [#allocation4], 128, 128, 1
        %s362 = sadd.s32 %s323, 2
        %s363 = sld [smem:[#allocation6 + %s362]]
        %s364 = sshrl.u32 %s363, 3
        %s365 = sand.u32 %s363, 7
        %s366 = smul.u32 %s364, 24
        %s367 = sadd.s32 %s365, %s366
        %s368 = smul.addr %s367, 16
        %s369 = scalar_lea.hbm %s1, %s368
        %s370 = scalar_lea.vmem [#allocation2], 2
        %s372 = sshll.u32 %s370, 4
        %s373 = int_to_ptr.vmem [resolvable:$true] %s372
        %375 = dma.hbm_to_vmem [thread:$0]  %s369, 48, %s373, [#allocation4], 128, 128, 1
        %s376 = sadd.s32 %s323, 3
        %s377 = sld [smem:[#allocation6 + %s376]]
        %s378 = sshrl.u32 %s377, 3
        %s379 = sand.u32 %s377, 7
        %s380 = smul.u32 %s378, 24
        %s381 = sadd.s32 %s379, %s380
        %s382 = smul.addr %s381, 16
        %s383 = scalar_lea.hbm %s1, %s382
        %s384 = scalar_lea.vmem [#allocation2], 3
        %s386 = sshll.u32 %s384, 4
        %s387 = int_to_ptr.vmem [resolvable:$true] %s386
        %389 = dma.hbm_to_vmem [thread:$0]  %s383, 48, %s387, [#allocation4], 128, 128, 1
        %s390 = sadd.s32 %s323, 4
        %s391 = sld [smem:[#allocation6 + %s390]]
        %s392 = sshrl.u32 %s391, 3
        %s393 = sand.u32 %s391, 7
        %s394 = smul.u32 %s392, 24
        %s395 = sadd.s32 %s393, %s394
        %s396 = smul.addr %s395, 16
        %s397 = scalar_lea.hbm %s1, %s396
        %s398 = scalar_lea.vmem [#allocation2], 4
        %s400 = sshll.u32 %s398, 4
        %s401 = int_to_ptr.vmem [resolvable:$true] %s400
        %403 = dma.hbm_to_vmem [thread:$0]  %s397, 48, %s401, [#allocation4], 128, 128, 1
        %s404 = sadd.s32 %s323, 5
        %s405 = sld [smem:[#allocation6 + %s404]]
        %s406 = sshrl.u32 %s405, 3
        %s407 = sand.u32 %s405, 7
        %s408 = smul.u32 %s406, 24
        %s409 = sadd.s32 %s407, %s408
        %s410 = smul.addr %s409, 16
        %s411 = scalar_lea.hbm %s1, %s410
        %s412 = scalar_lea.vmem [#allocation2], 5
        %s414 = sshll.u32 %s412, 4
        %s415 = int_to_ptr.vmem [resolvable:$true] %s414
        %417 = dma.hbm_to_vmem [thread:$0]  %s411, 48, %s415, [#allocation4], 128, 128, 1
        %s418 = sadd.s32 %s323, 6
        %s419 = sld [smem:[#allocation6 + %s418]]
        %s420 = sshrl.u32 %s419, 3
        %s421 = sand.u32 %s419, 7
        %s422 = smul.u32 %s420, 24
        %s423 = sadd.s32 %s421, %s422
        %s424 = smul.addr %s423, 16
        %s425 = scalar_lea.hbm %s1, %s424
        %s426 = scalar_lea.vmem [#allocation2], 6
        %s428 = sshll.u32 %s426, 4
        %s429 = int_to_ptr.vmem [resolvable:$true] %s428
        %431 = dma.hbm_to_vmem [thread:$0]  %s425, 48, %s429, [#allocation4], 128, 128, 1
        %s432 = sadd.s32 %s323, 7
        %s433 = sld [smem:[#allocation6 + %s432]]
        %s434 = sshrl.u32 %s433, 3
        %s435 = sand.u32 %s433, 7
        %s436 = smul.u32 %s434, 24
        %s437 = sadd.s32 %s435, %s436
        %s438 = smul.addr %s437, 16
        %s439 = scalar_lea.hbm %s1, %s438
        %s440 = scalar_lea.vmem [#allocation2], 7
        %s442 = sshll.u32 %s440, 4
        %s443 = int_to_ptr.vmem [resolvable:$true] %s442
        %445 = dma.hbm_to_vmem [thread:$0]  %s439, 48, %s443, [#allocation4], 128, 128, 1
        %s446 = sadd.s32 %s323, 8
        %s447 = sld [smem:[#allocation6 + %s446]]
        %s448 = sshrl.u32 %s447, 3
        %s449 = sand.u32 %s447, 7
        %s450 = smul.u32 %s448, 24
        %s451 = sadd.s32 %s449, %s450
        %s452 = smul.addr %s451, 16
        %s453 = scalar_lea.hbm %s1, %s452
        %s454 = scalar_lea.vmem [#allocation2], 24
        %s456 = sshll.u32 %s454, 4
        %s457 = int_to_ptr.vmem [resolvable:$true] %s456
        %459 = dma.hbm_to_vmem [thread:$0]  %s453, 48, %s457, [#allocation4], 128, 128, 1
        %s460 = sadd.s32 %s323, 9
        %s461 = sld [smem:[#allocation6 + %s460]]
        %s462 = sshrl.u32 %s461, 3
        %s463 = sand.u32 %s461, 7
        %s464 = smul.u32 %s462, 24
        %s465 = sadd.s32 %s463, %s464
        %s466 = smul.addr %s465, 16
        %s467 = scalar_lea.hbm %s1, %s466
        %s468 = scalar_lea.vmem [#allocation2], 25
        %s470 = sshll.u32 %s468, 4
        %s471 = int_to_ptr.vmem [resolvable:$true] %s470
        %473 = dma.hbm_to_vmem [thread:$0]  %s467, 48, %s471, [#allocation4], 128, 128, 1
        %s474 = sadd.s32 %s323, 10
        %s475 = sld [smem:[#allocation6 + %s474]]
        %s476 = sshrl.u32 %s475, 3
        %s477 = sand.u32 %s475, 7
        %s478 = smul.u32 %s476, 24
        %s479 = sadd.s32 %s477, %s478
        %s480 = smul.addr %s479, 16
        %s481 = scalar_lea.hbm %s1, %s480
        %s482 = scalar_lea.vmem [#allocation2], 26
        %s484 = sshll.u32 %s482, 4
        %s485 = int_to_ptr.vmem [resolvable:$true] %s484
        %487 = dma.hbm_to_vmem [thread:$0]  %s481, 48, %s485, [#allocation4], 128, 128, 1
        %s488 = sadd.s32 %s323, 11
        %s489 = sld [smem:[#allocation6 + %s488]]
        %s490 = sshrl.u32 %s489, 3
        %s491 = sand.u32 %s489, 7
        %s492 = smul.u32 %s490, 24
        %s493 = sadd.s32 %s491, %s492
        %s494 = smul.addr %s493, 16
        %s495 = scalar_lea.hbm %s1, %s494
        %s496 = scalar_lea.vmem [#allocation2], 27
        %s498 = sshll.u32 %s496, 4
        %s499 = int_to_ptr.vmem [resolvable:$true] %s498
        %501 = dma.hbm_to_vmem [thread:$0]  %s495, 48, %s499, [#allocation4], 128, 128, 1
        %s502 = sadd.s32 %s323, 12
        %s503 = sld [smem:[#allocation6 + %s502]]
        %s504 = sshrl.u32 %s503, 3
        %s505 = sand.u32 %s503, 7
        %s506 = smul.u32 %s504, 24
        %s507 = sadd.s32 %s505, %s506
        %s508 = smul.addr %s507, 16
        %s509 = scalar_lea.hbm %s1, %s508
        %s510 = scalar_lea.vmem [#allocation2], 28
        %s512 = sshll.u32 %s510, 4
        %s513 = int_to_ptr.vmem [resolvable:$true] %s512
        %515 = dma.hbm_to_vmem [thread:$0]  %s509, 48, %s513, [#allocation4], 128, 128, 1
        %s516 = sadd.s32 %s323, 13
        %s517 = sld [smem:[#allocation6 + %s516]]
        %s518 = sshrl.u32 %s517, 3
        %s519 = sand.u32 %s517, 7
        %s520 = smul.u32 %s518, 24
        %s521 = sadd.s32 %s519, %s520
        %s522 = smul.addr %s521, 16
        %s523 = scalar_lea.hbm %s1, %s522
        %s524 = scalar_lea.vmem [#allocation2], 29
        %s526 = sshll.u32 %s524, 4
        %s527 = int_to_ptr.vmem [resolvable:$true] %s526
        %529 = dma.hbm_to_vmem [thread:$0]  %s523, 48, %s527, [#allocation4], 128, 128, 1
        %s530 = sadd.s32 %s323, 14
        %s531 = sld [smem:[#allocation6 + %s530]]
        %s532 = sshrl.u32 %s531, 3
        %s533 = sand.u32 %s531, 7
        %s534 = smul.u32 %s532, 24
        %s535 = sadd.s32 %s533, %s534
        %s536 = smul.addr %s535, 16
        %s537 = scalar_lea.hbm %s1, %s536
        %s538 = scalar_lea.vmem [#allocation2], 30
        %s540 = sshll.u32 %s538, 4
        %s541 = int_to_ptr.vmem [resolvable:$true] %s540
        %543 = dma.hbm_to_vmem [thread:$0]  %s537, 48, %s541, [#allocation4], 128, 128, 1
        %s544 = sadd.s32 %s323, 15
        %s545 = sld [smem:[#allocation6 + %s544]]
        %s546 = sshrl.u32 %s545, 3
        %s547 = sand.u32 %s545, 7
        %s548 = smul.u32 %s546, 24
        %s549 = sadd.s32 %s547, %s548
        %s550 = smul.addr %s549, 16
        %s551 = scalar_lea.hbm %s1, %s550
        %s552 = scalar_lea.vmem [#allocation2], 31
        %s554 = sshll.u32 %s552, 4
        %s555 = int_to_ptr.vmem [resolvable:$true] %s554
        %557 = dma.hbm_to_vmem [thread:$0]  %s551, 48, %s555, [#allocation4], 128, 128, 1
        %s558 = sadd.s32 %s323, 16
        %s559 = sld [smem:[#allocation6 + %s558]]
        %s560 = sshrl.u32 %s559, 3
        %s561 = sand.u32 %s559, 7
        %s562 = smul.u32 %s560, 24
        %s563 = sadd.s32 %s561, %s562
        %s564 = smul.addr %s563, 16
        %s565 = scalar_lea.hbm %s1, %s564
        %s566 = scalar_lea.vmem [#allocation2], 48
        %s568 = sshll.u32 %s566, 4
        %s569 = int_to_ptr.vmem [resolvable:$true] %s568
        %571 = dma.hbm_to_vmem [thread:$0]  %s565, 48, %s569, [#allocation4], 128, 128, 1
        %s572 = sadd.s32 %s323, 17
        %s573 = sld [smem:[#allocation6 + %s572]]
        %s574 = sshrl.u32 %s573, 3
        %s575 = sand.u32 %s573, 7
        %s576 = smul.u32 %s574, 24
        %s577 = sadd.s32 %s575, %s576
        %s578 = smul.addr %s577, 16
        %s579 = scalar_lea.hbm %s1, %s578
        %s580 = scalar_lea.vmem [#allocation2], 49
        %s582 = sshll.u32 %s580, 4
        %s583 = int_to_ptr.vmem [resolvable:$true] %s582
        %585 = dma.hbm_to_vmem [thread:$0]  %s579, 48, %s583, [#allocation4], 128, 128, 1
        %s586 = sadd.s32 %s323, 18
        %s587 = sld [smem:[#allocation6 + %s586]]
        %s588 = sshrl.u32 %s587, 3
        %s589 = sand.u32 %s587, 7
        %s590 = smul.u32 %s588, 24
        %s591 = sadd.s32 %s589, %s590
        %s592 = smul.addr %s591, 16
        %s593 = scalar_lea.hbm %s1, %s592
        %s594 = scalar_lea.vmem [#allocation2], 50
        %s596 = sshll.u32 %s594, 4
        %s597 = int_to_ptr.vmem [resolvable:$true] %s596
        %599 = dma.hbm_to_vmem [thread:$0]  %s593, 48, %s597, [#allocation4], 128, 128, 1
        %s600 = sadd.s32 %s323, 19
        %s601 = sld [smem:[#allocation6 + %s600]]
        %s602 = sshrl.u32 %s601, 3
        %s603 = sand.u32 %s601, 7
        %s604 = smul.u32 %s602, 24
        %s605 = sadd.s32 %s603, %s604
        %s606 = smul.addr %s605, 16
        %s607 = scalar_lea.hbm %s1, %s606
        %s608 = scalar_lea.vmem [#allocation2], 51
        %s610 = sshll.u32 %s608, 4
        %s611 = int_to_ptr.vmem [resolvable:$true] %s610
        %613 = dma.hbm_to_vmem [thread:$0]  %s607, 48, %s611, [#allocation4], 128, 128, 1
        %s614 = sadd.s32 %s323, 20
        %s615 = sld [smem:[#allocation6 + %s614]]
        %s616 = sshrl.u32 %s615, 3
        %s617 = sand.u32 %s615, 7
        %s618 = smul.u32 %s616, 24
        %s619 = sadd.s32 %s617, %s618
        %s620 = smul.addr %s619, 16
        %s621 = scalar_lea.hbm %s1, %s620
        %s622 = scalar_lea.vmem [#allocation2], 52
        %s624 = sshll.u32 %s622, 4
        %s625 = int_to_ptr.vmem [resolvable:$true] %s624
        %627 = dma.hbm_to_vmem [thread:$0]  %s621, 48, %s625, [#allocation4], 128, 128, 1
        %s628 = sadd.s32 %s323, 21
        %s629 = sld [smem:[#allocation6 + %s628]]
        %s630 = sshrl.u32 %s629, 3
        %s631 = sand.u32 %s629, 7
        %s632 = smul.u32 %s630, 24
        %s633 = sadd.s32 %s631, %s632
        %s634 = smul.addr %s633, 16
        %s635 = scalar_lea.hbm %s1, %s634
        %s636 = scalar_lea.vmem [#allocation2], 53
        %s638 = sshll.u32 %s636, 4
        %s639 = int_to_ptr.vmem [resolvable:$true] %s638
        %641 = dma.hbm_to_vmem [thread:$0]  %s635, 48, %s639, [#allocation4], 128, 128, 1
        %s642 = sadd.s32 %s323, 22
        %s643 = sld [smem:[#allocation6 + %s642]]
        %s644 = sshrl.u32 %s643, 3
        %s645 = sand.u32 %s643, 7
        %s646 = smul.u32 %s644, 24
        %s647 = sadd.s32 %s645, %s646
        %s648 = smul.addr %s647, 16
        %s649 = scalar_lea.hbm %s1, %s648
        %s650 = scalar_lea.vmem [#allocation2], 54
        %s652 = sshll.u32 %s650, 4
        %s653 = int_to_ptr.vmem [resolvable:$true] %s652
        %655 = dma.hbm_to_vmem [thread:$0]  %s649, 48, %s653, [#allocation4], 128, 128, 1
        %s656 = sadd.s32 %s323, 23
        %s657 = sld [smem:[#allocation6 + %s656]]
        %s658 = sshrl.u32 %s657, 3
        %s659 = sand.u32 %s657, 7
        %s660 = smul.u32 %s658, 24
        %s661 = sadd.s32 %s659, %s660
        %s662 = smul.addr %s661, 16
        %s663 = scalar_lea.hbm %s1, %s662
        %s664 = scalar_lea.vmem [#allocation2], 55
        %s666 = sshll.u32 %s664, 4
        %s667 = int_to_ptr.vmem [resolvable:$true] %s666
        %669 = dma.hbm_to_vmem [thread:$0]  %s663, 48, %s667, [#allocation4], 128, 128, 1
        %s670 = sadd.s32 %s323, 24
        %s671 = sld [smem:[#allocation6 + %s670]]
        %s672 = sshrl.u32 %s671, 3
        %s673 = sand.u32 %s671, 7
        %s674 = smul.u32 %s672, 24
        %s675 = sadd.s32 %s673, %s674
        %s676 = smul.addr %s675, 16
        %s677 = scalar_lea.hbm %s1, %s676
        %s678 = scalar_lea.vmem [#allocation2], 72
        %s680 = sshll.u32 %s678, 4
        %s681 = int_to_ptr.vmem [resolvable:$true] %s680
        %683 = dma.hbm_to_vmem [thread:$0]  %s677, 48, %s681, [#allocation4], 128, 128, 1
        %s684 = sadd.s32 %s323, 25
        %s685 = sld [smem:[#allocation6 + %s684]]
        %s686 = sshrl.u32 %s685, 3
        %s687 = sand.u32 %s685, 7
        %s688 = smul.u32 %s686, 24
        %s689 = sadd.s32 %s687, %s688
        %s690 = smul.addr %s689, 16
        %s691 = scalar_lea.hbm %s1, %s690
        %s692 = scalar_lea.vmem [#allocation2], 73
        %s694 = sshll.u32 %s692, 4
        %s695 = int_to_ptr.vmem [resolvable:$true] %s694
        %697 = dma.hbm_to_vmem [thread:$0]  %s691, 48, %s695, [#allocation4], 128, 128, 1
        %s698 = sadd.s32 %s323, 26
        %s699 = sld [smem:[#allocation6 + %s698]]
        %s700 = sshrl.u32 %s699, 3
        %s701 = sand.u32 %s699, 7
        %s702 = smul.u32 %s700, 24
        %s703 = sadd.s32 %s701, %s702
        %s704 = smul.addr %s703, 16
        %s705 = scalar_lea.hbm %s1, %s704
        %s706 = scalar_lea.vmem [#allocation2], 74
        %s708 = sshll.u32 %s706, 4
        %s709 = int_to_ptr.vmem [resolvable:$true] %s708
        %711 = dma.hbm_to_vmem [thread:$0]  %s705, 48, %s709, [#allocation4], 128, 128, 1
        %s712 = sadd.s32 %s323, 27
        %s713 = sld [smem:[#allocation6 + %s712]]
        %s714 = sshrl.u32 %s713, 3
        %s715 = sand.u32 %s713, 7
        %s716 = smul.u32 %s714, 24
        %s717 = sadd.s32 %s715, %s716
        %s718 = smul.addr %s717, 16
        %s719 = scalar_lea.hbm %s1, %s718
        %s720 = scalar_lea.vmem [#allocation2], 75
        %s722 = sshll.u32 %s720, 4
        %s723 = int_to_ptr.vmem [resolvable:$true] %s722
        %725 = dma.hbm_to_vmem [thread:$0]  %s719, 48, %s723, [#allocation4], 128, 128, 1
        %s726 = sadd.s32 %s323, 28
        %s727 = sld [smem:[#allocation6 + %s726]]
        %s728 = sshrl.u32 %s727, 3
        %s729 = sand.u32 %s727, 7
        %s730 = smul.u32 %s728, 24
        %s731 = sadd.s32 %s729, %s730
        %s732 = smul.addr %s731, 16
        %s733 = scalar_lea.hbm %s1, %s732
        %s734 = scalar_lea.vmem [#allocation2], 76
        %s736 = sshll.u32 %s734, 4
        %s737 = int_to_ptr.vmem [resolvable:$true] %s736
        %739 = dma.hbm_to_vmem [thread:$0]  %s733, 48, %s737, [#allocation4], 128, 128, 1
        %s740 = sadd.s32 %s323, 29
        %s741 = sld [smem:[#allocation6 + %s740]]
        %s742 = sshrl.u32 %s741, 3
        %s743 = sand.u32 %s741, 7
        %s744 = smul.u32 %s742, 24
        %s745 = sadd.s32 %s743, %s744
        %s746 = smul.addr %s745, 16
        %s747 = scalar_lea.hbm %s1, %s746
        %s748 = scalar_lea.vmem [#allocation2], 77
        %s750 = sshll.u32 %s748, 4
        %s751 = int_to_ptr.vmem [resolvable:$true] %s750
        %753 = dma.hbm_to_vmem [thread:$0]  %s747, 48, %s751, [#allocation4], 128, 128, 1
        %s754 = sadd.s32 %s323, 30
        %s755 = sld [smem:[#allocation6 + %s754]]
        %s756 = sshrl.u32 %s755, 3
        %s757 = sand.u32 %s755, 7
        %s758 = smul.u32 %s756, 24
        %s759 = sadd.s32 %s757, %s758
        %s760 = smul.addr %s759, 16
        %s761 = scalar_lea.hbm %s1, %s760
        %s762 = scalar_lea.vmem [#allocation2], 78
        %s764 = sshll.u32 %s762, 4
        %s765 = int_to_ptr.vmem [resolvable:$true] %s764
        %767 = dma.hbm_to_vmem [thread:$0]  %s761, 48, %s765, [#allocation4], 128, 128, 1
        %s768 = sadd.s32 %s323, 31
        %s769 = sld [smem:[#allocation6 + %s768]]
        %s770 = sshrl.u32 %s769, 3
        %s771 = sand.u32 %s769, 7
        %s772 = smul.u32 %s770, 24
        %s773 = sadd.s32 %s771, %s772
        %s774 = smul.addr %s773, 16
        %s775 = scalar_lea.hbm %s1, %s774
        %s776 = scalar_lea.vmem [#allocation2], 79
        %s778 = sshll.u32 %s776, 4
        %s779 = int_to_ptr.vmem [resolvable:$true] %s778
        %781 = dma.hbm_to_vmem [thread:$0]  %s775, 48, %s779, [#allocation4], 128, 128, 1
        loop: start=0, step=1, limit=8
        $region65: #{tpu_custom_call.1} parent=47 // loop_pre_header
          _
        $region66: #{tpu_custom_call.1} parent=47 // loop_header
          %s783 = sphi 0, %s787
          %p784 = scmp.ge.s32.totalorder %s783, 8
        $region67: #{tpu_custom_call.1} parent=47 // loop_header_branch
          %786 = sbr.rel (%p784) target = $region71
        $region68: #{tpu_custom_call.1} parent=47 // loop_body
          %s788 = sand.u32 %s783, 1
          %s789 = scalar_lea.sflag [#allocation4], %s788
          %s790 = smul.u32 1, 3
          %s791 = sshll.u32 %s790, 4
          %792 = dma.done %s789, %s791
          %s793 = sshll.u32 %s790, 4
          %794 = dma.done %s789, %s793
          %s795 = sshll.u32 %s790, 4
          %796 = dma.done %s789, %s795
          %s797 = sshll.u32 %s790, 4
          %798 = dma.done %s789, %s797
          %s799 = sshll.u32 %s790, 4
          %800 = dma.done %s789, %s799
          %s801 = sshll.u32 %s790, 4
          %802 = dma.done %s789, %s801
          %s803 = sshll.u32 %s790, 4
          %804 = dma.done %s789, %s803
          %s805 = sshll.u32 %s790, 4
          %806 = dma.done %s789, %s805
          %s807 = sshll.u32 %s790, 4
          %808 = dma.done %s789, %s807
          %s809 = sshll.u32 %s790, 4
          %810 = dma.done %s789, %s809
          %s811 = sshll.u32 %s790, 4
          %812 = dma.done %s789, %s811
          %s813 = sshll.u32 %s790, 4
          %814 = dma.done %s789, %s813
          %s815 = sshll.u32 %s790, 4
          %816 = dma.done %s789, %s815
          %s817 = sshll.u32 %s790, 4
          %818 = dma.done %s789, %s817
          %s819 = sshll.u32 %s790, 4
          %820 = dma.done %s789, %s819
          %s821 = sshll.u32 %s790, 4
          %822 = dma.done %s789, %s821
          %s823 = sshll.u32 %s790, 4
          %824 = dma.done %s789, %s823
          %s825 = sshll.u32 %s790, 4
          %826 = dma.done %s789, %s825
          %s827 = sshll.u32 %s790, 4
          %828 = dma.done %s789, %s827
          %s829 = sshll.u32 %s790, 4
          %830 = dma.done %s789, %s829
          %s831 = sshll.u32 %s790, 4
          %832 = dma.done %s789, %s831
          %s833 = sshll.u32 %s790, 4
          %834 = dma.done %s789, %s833
          %s835 = sshll.u32 %s790, 4
          %836 = dma.done %s789, %s835
          %s837 = sshll.u32 %s790, 4
          %838 = dma.done %s789, %s837
          %s839 = sshll.u32 %s790, 4
          %840 = dma.done %s789, %s839
          %s841 = sshll.u32 %s790, 4
          %842 = dma.done %s789, %s841
          %s843 = sshll.u32 %s790, 4
          %844 = dma.done %s789, %s843
          %s845 = sshll.u32 %s790, 4
          %846 = dma.done %s789, %s845
          %s847 = sshll.u32 %s790, 4
          %848 = dma.done %s789, %s847
          %s849 = sshll.u32 %s790, 4
          %850 = dma.done %s789, %s849
          %s851 = sshll.u32 %s790, 4
          %852 = dma.done %s789, %s851
          %s853 = sshll.u32 %s790, 4
          %854 = dma.done %s789, %s853
          %s855 = sadd.s32 %s783, 1
          %p856 = scmp.lt.s32.totalorder %s855, 8
          // Predicated region
          $region72: #{tpu_custom_call.1} parent=68 // pred_check
            %p857 = pneg %p856
          $region73: #{tpu_custom_call.1} parent=68 // pred_check_branch
            %859 = sbr.rel (%p857) target = $region75
          $region74: #{tpu_custom_call.1} parent=68 // pred_region
            %s860 = ssub.s32 1, %s788
            %s861 = smul.u32 %s855, 32
            %s862 = sadd.s32 %s323, %s861
            %s863 = sld [smem:[#allocation6 + %s862]]
            %s864 = sshrl.u32 %s863, 3
            %s865 = sand.u32 %s863, 7
            %s866 = smul.u32 %s864, 24
            %s867 = sadd.s32 %s865, %s866
            %s868 = smul.addr %s867, 16
            %s869 = scalar_lea.hbm %s1, %s868
            %s870 = smul.u32 %s860, 96
            %s871 = scalar_lea.vmem [#allocation2], %s870
            %s872 = scalar_lea.sflag [#allocation4], %s860
            %s874 = sshll.u32 %s871, 4
            %s875 = int_to_ptr.vmem [resolvable:$true] %s874
            %877 = dma.hbm_to_vmem [thread:$0]  %s869, 48, %s875, %s872, 128, 128, 1
            %s878 = sadd.s32 %s862, 1
            %s879 = sld [smem:[#allocation6 + %s878]]
            %s880 = sshrl.u32 %s879, 3
            %s881 = sand.u32 %s879, 7
            %s882 = smul.u32 %s880, 24
            %s883 = sadd.s32 %s881, %s882
            %s884 = smul.addr %s883, 16
            %s885 = scalar_lea.hbm %s1, %s884
            %s886 = sadd.s32 1, %s870
            %s887 = scalar_lea.vmem [#allocation2], %s886
            %s889 = sshll.u32 %s887, 4
            %s890 = int_to_ptr.vmem [resolvable:$true] %s889
            %892 = dma.hbm_to_vmem [thread:$0]  %s885, 48, %s890, %s872, 128, 128, 1
            %s893 = sadd.s32 %s862, 2
            %s894 = sld [smem:[#allocation6 + %s893]]
            %s895 = sshrl.u32 %s894, 3
            %s896 = sand.u32 %s894, 7
            %s897 = smul.u32 %s895, 24
            %s898 = sadd.s32 %s896, %s897
            %s899 = smul.addr %s898, 16
            %s900 = scalar_lea.hbm %s1, %s899
            %s901 = sadd.s32 2, %s870
            %s902 = scalar_lea.vmem [#allocation2], %s901
            %s904 = sshll.u32 %s902, 4
            %s905 = int_to_ptr.vmem [resolvable:$true] %s904
            %907 = dma.hbm_to_vmem [thread:$0]  %s900, 48, %s905, %s872, 128, 128, 1
            %s908 = sadd.s32 %s862, 3
            %s909 = sld [smem:[#allocation6 + %s908]]
            %s910 = sshrl.u32 %s909, 3
            %s911 = sand.u32 %s909, 7
            %s912 = smul.u32 %s910, 24
            %s913 = sadd.s32 %s911, %s912
            %s914 = smul.addr %s913, 16
            %s915 = scalar_lea.hbm %s1, %s914
            %s916 = sadd.s32 3, %s870
            %s917 = scalar_lea.vmem [#allocation2], %s916
            %s919 = sshll.u32 %s917, 4
            %s920 = int_to_ptr.vmem [resolvable:$true] %s919
            %922 = dma.hbm_to_vmem [thread:$0]  %s915, 48, %s920, %s872, 128, 128, 1
            %s923 = sadd.s32 %s862, 4
            %s924 = sld [smem:[#allocation6 + %s923]]
            %s925 = sshrl.u32 %s924, 3
            %s926 = sand.u32 %s924, 7
            %s927 = smul.u32 %s925, 24
            %s928 = sadd.s32 %s926, %s927
            %s929 = smul.addr %s928, 16
            %s930 = scalar_lea.hbm %s1, %s929
            %s931 = sadd.s32 4, %s870
            %s932 = scalar_lea.vmem [#allocation2], %s931
            %s934 = sshll.u32 %s932, 4
            %s935 = int_to_ptr.vmem [resolvable:$true] %s934
            %937 = dma.hbm_to_vmem [thread:$0]  %s930, 48, %s935, %s872, 128, 128, 1
            %s938 = sadd.s32 %s862, 5
            %s939 = sld [smem:[#allocation6 + %s938]]
            %s940 = sshrl.u32 %s939, 3
            %s941 = sand.u32 %s939, 7
            %s942 = smul.u32 %s940, 24
            %s943 = sadd.s32 %s941, %s942
            %s944 = smul.addr %s943, 16
            %s945 = scalar_lea.hbm %s1, %s944
            %s946 = sadd.s32 5, %s870
            %s947 = scalar_lea.vmem [#allocation2], %s946
            %s949 = sshll.u32 %s947, 4
            %s950 = int_to_ptr.vmem [resolvable:$true] %s949
            %952 = dma.hbm_to_vmem [thread:$0]  %s945, 48, %s950, %s872, 128, 128, 1
            %s953 = sadd.s32 %s862, 6
            %s954 = sld [smem:[#allocation6 + %s953]]
            %s955 = sshrl.u32 %s954, 3
            %s956 = sand.u32 %s954, 7
            %s957 = smul.u32 %s955, 24
            %s958 = sadd.s32 %s956, %s957
            %s959 = smul.addr %s958, 16
            %s960 = scalar_lea.hbm %s1, %s959
            %s961 = sadd.s32 6, %s870
            %s962 = scalar_lea.vmem [#allocation2], %s961
            %s964 = sshll.u32 %s962, 4
            %s965 = int_to_ptr.vmem [resolvable:$true] %s964
            %967 = dma.hbm_to_vmem [thread:$0]  %s960, 48, %s965, %s872, 128, 128, 1
            %s968 = sadd.s32 %s862, 7
            %s969 = sld [smem:[#allocation6 + %s968]]
            %s970 = sshrl.u32 %s969, 3
            %s971 = sand.u32 %s969, 7
            %s972 = smul.u32 %s970, 24
            %s973 = sadd.s32 %s971, %s972
            %s974 = smul.addr %s973, 16
            %s975 = scalar_lea.hbm %s1, %s974
            %s976 = sadd.s32 7, %s870
            %s977 = scalar_lea.vmem [#allocation2], %s976
            %s979 = sshll.u32 %s977, 4
            %s980 = int_to_ptr.vmem [resolvable:$true] %s979
            %982 = dma.hbm_to_vmem [thread:$0]  %s975, 48, %s980, %s872, 128, 128, 1
            %s983 = sadd.s32 %s862, 8
            %s984 = sld [smem:[#allocation6 + %s983]]
            %s985 = sshrl.u32 %s984, 3
            %s986 = sand.u32 %s984, 7
            %s987 = smul.u32 %s985, 24
            %s988 = sadd.s32 %s986, %s987
            %s989 = smul.addr %s988, 16
            %s990 = scalar_lea.hbm %s1, %s989
            %s991 = sadd.s32 24, %s870
            %s992 = scalar_lea.vmem [#allocation2], %s991
            %s994 = sshll.u32 %s992, 4
            %s995 = int_to_ptr.vmem [resolvable:$true] %s994
            %997 = dma.hbm_to_vmem [thread:$0]  %s990, 48, %s995, %s872, 128, 128, 1
            %s998 = sadd.s32 %s862, 9
            %s999 = sld [smem:[#allocation6 + %s998]]
            %s1000 = sshrl.u32 %s999, 3
            %s1001 = sand.u32 %s999, 7
            %s1002 = smul.u32 %s1000, 24
            %s1003 = sadd.s32 %s1001, %s1002
            %s1004 = smul.addr %s1003, 16
            %s1005 = scalar_lea.hbm %s1, %s1004
            %s1006 = sadd.s32 25, %s870
            %s1007 = scalar_lea.vmem [#allocation2], %s1006
            %s1009 = sshll.u32 %s1007, 4
            %s1010 = int_to_ptr.vmem [resolvable:$true] %s1009
            %1012 = dma.hbm_to_vmem [thread:$0]  %s1005, 48, %s1010, %s872, 128, 128, 1
            %s1013 = sadd.s32 %s862, 10
            %s1014 = sld [smem:[#allocation6 + %s1013]]
            %s1015 = sshrl.u32 %s1014, 3
            %s1016 = sand.u32 %s1014, 7
            %s1017 = smul.u32 %s1015, 24
            %s1018 = sadd.s32 %s1016, %s1017
            %s1019 = smul.addr %s1018, 16
            %s1020 = scalar_lea.hbm %s1, %s1019
            %s1021 = sadd.s32 26, %s870
            %s1022 = scalar_lea.vmem [#allocation2], %s1021
            %s1024 = sshll.u32 %s1022, 4
            %s1025 = int_to_ptr.vmem [resolvable:$true] %s1024
            %1027 = dma.hbm_to_vmem [thread:$0]  %s1020, 48, %s1025, %s872, 128, 128, 1
            %s1028 = sadd.s32 %s862, 11
            %s1029 = sld [smem:[#allocation6 + %s1028]]
            %s1030 = sshrl.u32 %s1029, 3
            %s1031 = sand.u32 %s1029, 7
            %s1032 = smul.u32 %s1030, 24
            %s1033 = sadd.s32 %s1031, %s1032
            %s1034 = smul.addr %s1033, 16
            %s1035 = scalar_lea.hbm %s1, %s1034
            %s1036 = sadd.s32 27, %s870
            %s1037 = scalar_lea.vmem [#allocation2], %s1036
            %s1039 = sshll.u32 %s1037, 4
            %s1040 = int_to_ptr.vmem [resolvable:$true] %s1039
            %1042 = dma.hbm_to_vmem [thread:$0]  %s1035, 48, %s1040, %s872, 128, 128, 1
            %s1043 = sadd.s32 %s862, 12
            %s1044 = sld [smem:[#allocation6 + %s1043]]
            %s1045 = sshrl.u32 %s1044, 3
            %s1046 = sand.u32 %s1044, 7
            %s1047 = smul.u32 %s1045, 24
            %s1048 = sadd.s32 %s1046, %s1047
            %s1049 = smul.addr %s1048, 16
            %s1050 = scalar_lea.hbm %s1, %s1049
            %s1051 = sadd.s32 28, %s870
            %s1052 = scalar_lea.vmem [#allocation2], %s1051
            %s1054 = sshll.u32 %s1052, 4
            %s1055 = int_to_ptr.vmem [resolvable:$true] %s1054
            %1057 = dma.hbm_to_vmem [thread:$0]  %s1050, 48, %s1055, %s872, 128, 128, 1
            %s1058 = sadd.s32 %s862, 13
            %s1059 = sld [smem:[#allocation6 + %s1058]]
            %s1060 = sshrl.u32 %s1059, 3
            %s1061 = sand.u32 %s1059, 7
            %s1062 = smul.u32 %s1060, 24
            %s1063 = sadd.s32 %s1061, %s1062
            %s1064 = smul.addr %s1063, 16
            %s1065 = scalar_lea.hbm %s1, %s1064
            %s1066 = sadd.s32 29, %s870
            %s1067 = scalar_lea.vmem [#allocation2], %s1066
            %s1069 = sshll.u32 %s1067, 4
            %s1070 = int_to_ptr.vmem [resolvable:$true] %s1069
            %1072 = dma.hbm_to_vmem [thread:$0]  %s1065, 48, %s1070, %s872, 128, 128, 1
            %s1073 = sadd.s32 %s862, 14
            %s1074 = sld [smem:[#allocation6 + %s1073]]
            %s1075 = sshrl.u32 %s1074, 3
            %s1076 = sand.u32 %s1074, 7
            %s1077 = smul.u32 %s1075, 24
            %s1078 = sadd.s32 %s1076, %s1077
            %s1079 = smul.addr %s1078, 16
            %s1080 = scalar_lea.hbm %s1, %s1079
            %s1081 = sadd.s32 30, %s870
            %s1082 = scalar_lea.vmem [#allocation2], %s1081
            %s1084 = sshll.u32 %s1082, 4
            %s1085 = int_to_ptr.vmem [resolvable:$true] %s1084
            %1087 = dma.hbm_to_vmem [thread:$0]  %s1080, 48, %s1085, %s872, 128, 128, 1
            %s1088 = sadd.s32 %s862, 15
            %s1089 = sld [smem:[#allocation6 + %s1088]]
            %s1090 = sshrl.u32 %s1089, 3
            %s1091 = sand.u32 %s1089, 7
            %s1092 = smul.u32 %s1090, 24
            %s1093 = sadd.s32 %s1091, %s1092
            %s1094 = smul.addr %s1093, 16
            %s1095 = scalar_lea.hbm %s1, %s1094
            %s1096 = sadd.s32 31, %s870
            %s1097 = scalar_lea.vmem [#allocation2], %s1096
            %s1099 = sshll.u32 %s1097, 4
            %s1100 = int_to_ptr.vmem [resolvable:$true] %s1099
            %1102 = dma.hbm_to_vmem [thread:$0]  %s1095, 48, %s1100, %s872, 128, 128, 1
            %s1103 = sadd.s32 %s862, 16
            %s1104 = sld [smem:[#allocation6 + %s1103]]
            %s1105 = sshrl.u32 %s1104, 3
            %s1106 = sand.u32 %s1104, 7
            %s1107 = smul.u32 %s1105, 24
            %s1108 = sadd.s32 %s1106, %s1107
            %s1109 = smul.addr %s1108, 16
            %s1110 = scalar_lea.hbm %s1, %s1109
            %s1111 = sadd.s32 48, %s870
            %s1112 = scalar_lea.vmem [#allocation2], %s1111
            %s1114 = sshll.u32 %s1112, 4
            %s1115 = int_to_ptr.vmem [resolvable:$true] %s1114
            %1117 = dma.hbm_to_vmem [thread:$0]  %s1110, 48, %s1115, %s872, 128, 128, 1
            %s1118 = sadd.s32 %s862, 17
            %s1119 = sld [smem:[#allocation6 + %s1118]]
            %s1120 = sshrl.u32 %s1119, 3
            %s1121 = sand.u32 %s1119, 7
            %s1122 = smul.u32 %s1120, 24
            %s1123 = sadd.s32 %s1121, %s1122
            %s1124 = smul.addr %s1123, 16
            %s1125 = scalar_lea.hbm %s1, %s1124
            %s1126 = sadd.s32 49, %s870
            %s1127 = scalar_lea.vmem [#allocation2], %s1126
            %s1129 = sshll.u32 %s1127, 4
            %s1130 = int_to_ptr.vmem [resolvable:$true] %s1129
            %1132 = dma.hbm_to_vmem [thread:$0]  %s1125, 48, %s1130, %s872, 128, 128, 1
            %s1133 = sadd.s32 %s862, 18
            %s1134 = sld [smem:[#allocation6 + %s1133]]
            %s1135 = sshrl.u32 %s1134, 3
            %s1136 = sand.u32 %s1134, 7
            %s1137 = smul.u32 %s1135, 24
            %s1138 = sadd.s32 %s1136, %s1137
            %s1139 = smul.addr %s1138, 16
            %s1140 = scalar_lea.hbm %s1, %s1139
            %s1141 = sadd.s32 50, %s870
            %s1142 = scalar_lea.vmem [#allocation2], %s1141
            %s1144 = sshll.u32 %s1142, 4
            %s1145 = int_to_ptr.vmem [resolvable:$true] %s1144
            %1147 = dma.hbm_to_vmem [thread:$0]  %s1140, 48, %s1145, %s872, 128, 128, 1
            %s1148 = sadd.s32 %s862, 19
            %s1149 = sld [smem:[#allocation6 + %s1148]]
            %s1150 = sshrl.u32 %s1149, 3
            %s1151 = sand.u32 %s1149, 7
            %s1152 = smul.u32 %s1150, 24
            %s1153 = sadd.s32 %s1151, %s1152
            %s1154 = smul.addr %s1153, 16
            %s1155 = scalar_lea.hbm %s1, %s1154
            %s1156 = sadd.s32 51, %s870
            %s1157 = scalar_lea.vmem [#allocation2], %s1156
            %s1159 = sshll.u32 %s1157, 4
            %s1160 = int_to_ptr.vmem [resolvable:$true] %s1159
            %1162 = dma.hbm_to_vmem [thread:$0]  %s1155, 48, %s1160, %s872, 128, 128, 1
            %s1163 = sadd.s32 %s862, 20
            %s1164 = sld [smem:[#allocation6 + %s1163]]
            %s1165 = sshrl.u32 %s1164, 3
            %s1166 = sand.u32 %s1164, 7
            %s1167 = smul.u32 %s1165, 24
            %s1168 = sadd.s32 %s1166, %s1167
            %s1169 = smul.addr %s1168, 16
            %s1170 = scalar_lea.hbm %s1, %s1169
            %s1171 = sadd.s32 52, %s870
            %s1172 = scalar_lea.vmem [#allocation2], %s1171
            %s1174 = sshll.u32 %s1172, 4
            %s1175 = int_to_ptr.vmem [resolvable:$true] %s1174
            %1177 = dma.hbm_to_vmem [thread:$0]  %s1170, 48, %s1175, %s872, 128, 128, 1
            %s1178 = sadd.s32 %s862, 21
            %s1179 = sld [smem:[#allocation6 + %s1178]]
            %s1180 = sshrl.u32 %s1179, 3
            %s1181 = sand.u32 %s1179, 7
            %s1182 = smul.u32 %s1180, 24
            %s1183 = sadd.s32 %s1181, %s1182
            %s1184 = smul.addr %s1183, 16
            %s1185 = scalar_lea.hbm %s1, %s1184
            %s1186 = sadd.s32 53, %s870
            %s1187 = scalar_lea.vmem [#allocation2], %s1186
            %s1189 = sshll.u32 %s1187, 4
            %s1190 = int_to_ptr.vmem [resolvable:$true] %s1189
            %1192 = dma.hbm_to_vmem [thread:$0]  %s1185, 48, %s1190, %s872, 128, 128, 1
            %s1193 = sadd.s32 %s862, 22
            %s1194 = sld [smem:[#allocation6 + %s1193]]
            %s1195 = sshrl.u32 %s1194, 3
            %s1196 = sand.u32 %s1194, 7
            %s1197 = smul.u32 %s1195, 24
            %s1198 = sadd.s32 %s1196, %s1197
            %s1199 = smul.addr %s1198, 16
            %s1200 = scalar_lea.hbm %s1, %s1199
            %s1201 = sadd.s32 54, %s870
            %s1202 = scalar_lea.vmem [#allocation2], %s1201
            %s1204 = sshll.u32 %s1202, 4
            %s1205 = int_to_ptr.vmem [resolvable:$true] %s1204
            %1207 = dma.hbm_to_vmem [thread:$0]  %s1200, 48, %s1205, %s872, 128, 128, 1
            %s1208 = sadd.s32 %s862, 23
            %s1209 = sld [smem:[#allocation6 + %s1208]]
            %s1210 = sshrl.u32 %s1209, 3
            %s1211 = sand.u32 %s1209, 7
            %s1212 = smul.u32 %s1210, 24
            %s1213 = sadd.s32 %s1211, %s1212
            %s1214 = smul.addr %s1213, 16
            %s1215 = scalar_lea.hbm %s1, %s1214
            %s1216 = sadd.s32 55, %s870
            %s1217 = scalar_lea.vmem [#allocation2], %s1216
            %s1219 = sshll.u32 %s1217, 4
            %s1220 = int_to_ptr.vmem [resolvable:$true] %s1219
            %1222 = dma.hbm_to_vmem [thread:$0]  %s1215, 48, %s1220, %s872, 128, 128, 1
            %s1223 = sadd.s32 %s862, 24
            %s1224 = sld [smem:[#allocation6 + %s1223]]
            %s1225 = sshrl.u32 %s1224, 3
            %s1226 = sand.u32 %s1224, 7
            %s1227 = smul.u32 %s1225, 24
            %s1228 = sadd.s32 %s1226, %s1227
            %s1229 = smul.addr %s1228, 16
            %s1230 = scalar_lea.hbm %s1, %s1229
            %s1231 = sadd.s32 72, %s870
            %s1232 = scalar_lea.vmem [#allocation2], %s1231
            %s1234 = sshll.u32 %s1232, 4
            %s1235 = int_to_ptr.vmem [resolvable:$true] %s1234
            %1237 = dma.hbm_to_vmem [thread:$0]  %s1230, 48, %s1235, %s872, 128, 128, 1
            %s1238 = sadd.s32 %s862, 25
            %s1239 = sld [smem:[#allocation6 + %s1238]]
            %s1240 = sshrl.u32 %s1239, 3
            %s1241 = sand.u32 %s1239, 7
            %s1242 = smul.u32 %s1240, 24
            %s1243 = sadd.s32 %s1241, %s1242
            %s1244 = smul.addr %s1243, 16
            %s1245 = scalar_lea.hbm %s1, %s1244
            %s1246 = sadd.s32 73, %s870
            %s1247 = scalar_lea.vmem [#allocation2], %s1246
            %s1249 = sshll.u32 %s1247, 4
            %s1250 = int_to_ptr.vmem [resolvable:$true] %s1249
            %1252 = dma.hbm_to_vmem [thread:$0]  %s1245, 48, %s1250, %s872, 128, 128, 1
            %s1253 = sadd.s32 %s862, 26
            %s1254 = sld [smem:[#allocation6 + %s1253]]
            %s1255 = sshrl.u32 %s1254, 3
            %s1256 = sand.u32 %s1254, 7
            %s1257 = smul.u32 %s1255, 24
            %s1258 = sadd.s32 %s1256, %s1257
            %s1259 = smul.addr %s1258, 16
            %s1260 = scalar_lea.hbm %s1, %s1259
            %s1261 = sadd.s32 74, %s870
            %s1262 = scalar_lea.vmem [#allocation2], %s1261
            %s1264 = sshll.u32 %s1262, 4
            %s1265 = int_to_ptr.vmem [resolvable:$true] %s1264
            %1267 = dma.hbm_to_vmem [thread:$0]  %s1260, 48, %s1265, %s872, 128, 128, 1
            %s1268 = sadd.s32 %s862, 27
            %s1269 = sld [smem:[#allocation6 + %s1268]]
            %s1270 = sshrl.u32 %s1269, 3
            %s1271 = sand.u32 %s1269, 7
            %s1272 = smul.u32 %s1270, 24
            %s1273 = sadd.s32 %s1271, %s1272
            %s1274 = smul.addr %s1273, 16
            %s1275 = scalar_lea.hbm %s1, %s1274
            %s1276 = sadd.s32 75, %s870
            %s1277 = scalar_lea.vmem [#allocation2], %s1276
            %s1279 = sshll.u32 %s1277, 4
            %s1280 = int_to_ptr.vmem [resolvable:$true] %s1279
            %1282 = dma.hbm_to_vmem [thread:$0]  %s1275, 48, %s1280, %s872, 128, 128, 1
            %s1283 = sadd.s32 %s862, 28
            %s1284 = sld [smem:[#allocation6 + %s1283]]
            %s1285 = sshrl.u32 %s1284, 3
            %s1286 = sand.u32 %s1284, 7
            %s1287 = smul.u32 %s1285, 24
            %s1288 = sadd.s32 %s1286, %s1287
            %s1289 = smul.addr %s1288, 16
            %s1290 = scalar_lea.hbm %s1, %s1289
            %s1291 = sadd.s32 76, %s870
            %s1292 = scalar_lea.vmem [#allocation2], %s1291
            %s1294 = sshll.u32 %s1292, 4
            %s1295 = int_to_ptr.vmem [resolvable:$true] %s1294
            %1297 = dma.hbm_to_vmem [thread:$0]  %s1290, 48, %s1295, %s872, 128, 128, 1
            %s1298 = sadd.s32 %s862, 29
            %s1299 = sld [smem:[#allocation6 + %s1298]]
            %s1300 = sshrl.u32 %s1299, 3
            %s1301 = sand.u32 %s1299, 7
            %s1302 = smul.u32 %s1300, 24
            %s1303 = sadd.s32 %s1301, %s1302
            %s1304 = smul.addr %s1303, 16
            %s1305 = scalar_lea.hbm %s1, %s1304
            %s1306 = sadd.s32 77, %s870
            %s1307 = scalar_lea.vmem [#allocation2], %s1306
            %s1309 = sshll.u32 %s1307, 4
            %s1310 = int_to_ptr.vmem [resolvable:$true] %s1309
            %1312 = dma.hbm_to_vmem [thread:$0]  %s1305, 48, %s1310, %s872, 128, 128, 1
            %s1313 = sadd.s32 %s862, 30
            %s1314 = sld [smem:[#allocation6 + %s1313]]
            %s1315 = sshrl.u32 %s1314, 3
            %s1316 = sand.u32 %s1314, 7
            %s1317 = smul.u32 %s1315, 24
            %s1318 = sadd.s32 %s1316, %s1317
            %s1319 = smul.addr %s1318, 16
            %s1320 = scalar_lea.hbm %s1, %s1319
            %s1321 = sadd.s32 78, %s870
            %s1322 = scalar_lea.vmem [#allocation2], %s1321
            %s1324 = sshll.u32 %s1322, 4
            %s1325 = int_to_ptr.vmem [resolvable:$true] %s1324
            %1327 = dma.hbm_to_vmem [thread:$0]  %s1320, 48, %s1325, %s872, 128, 128, 1
            %s1328 = sadd.s32 %s862, 31
            %s1329 = sld [smem:[#allocation6 + %s1328]]
            %s1330 = sshrl.u32 %s1329, 3
            %s1331 = sand.u32 %s1329, 7
            %s1332 = smul.u32 %s1330, 24
            %s1333 = sadd.s32 %s1331, %s1332
            %s1334 = smul.addr %s1333, 16
            %s1335 = scalar_lea.hbm %s1, %s1334
            %s1336 = sadd.s32 79, %s870
            %s1337 = scalar_lea.vmem [#allocation2], %s1336
            %s1339 = sshll.u32 %s1337, 4
            %s1340 = int_to_ptr.vmem [resolvable:$true] %s1339
            %1342 = dma.hbm_to_vmem [thread:$0]  %s1335, 48, %s1340, %s872, 128, 128, 1
          $region75: #{tpu_custom_call.1} parent=68 // pred_fallthru
            _
          %v1343 = vld [vmem:[#allocation3] sm:$0xff]
          %v1344 = vld [vmem:[#allocation3 + $0x8] sm:$0xff]
          %v1345 = vld [vmem:[#allocation3 + $0x10] sm:$0xff]
          %v1346 = vld [vmem:[#allocation3 + $0x18] sm:$0xff]
          %v1347 = vld [vmem:[#allocation3 + $0x20] sm:$0xff]
          %v1348 = vld [vmem:[#allocation3 + $0x28] sm:$0xff]
          %v1349 = vld [vmem:[#allocation3 + $0x30] sm:$0xff]
          %v1350 = vld [vmem:[#allocation3 + $0x38] sm:$0xff]
          %v1351 = vld [vmem:[#allocation3 + $0x40] sm:$0xff]
          %v1352 = vld [vmem:[#allocation3 + $0x48] sm:$0xff]
          %v1353 = vld [vmem:[#allocation3 + $0x50] sm:$0xff]
          %v1354 = vld [vmem:[#allocation3 + $0x58] sm:$0xff]
          %s1355 = smul.u32 %s788, 12
          %s1356 = smul.addr %s1355, 8
          %s1357 = scalar_lea.vmem [#allocation2], %s1356
          %v1358 = vld [vmem:[%s1357] sm:$0xff]
          %v1359 = vld [vmem:[%s1357 + $0x8] sm:$0xff]
          %v1360 = vld [vmem:[%s1357 + $0x10] sm:$0xff]
          %v1361 = vld [vmem:[%s1357 + $0x18] sm:$0xff]
          %v1362 = vld [vmem:[%s1357 + $0x20] sm:$0xff]
          %v1363 = vld [vmem:[%s1357 + $0x28] sm:$0xff]
          %v1364 = vld [vmem:[%s1357 + $0x30] sm:$0xff]
          %v1365 = vld [vmem:[%s1357 + $0x38] sm:$0xff]
          %v1366 = vld [vmem:[%s1357 + $0x40] sm:$0xff]
          %v1367 = vld [vmem:[%s1357 + $0x48] sm:$0xff]
          %v1368 = vld [vmem:[%s1357 + $0x50] sm:$0xff]
          %v1369 = vld [vmem:[%s1357 + $0x58] sm:$0xff]
          %v1370 = vadd.f32 %v1343, %v1358
          %v1371 = vadd.f32 %v1344, %v1359
          %v1372 = vadd.f32 %v1345, %v1360
          %v1373 = vadd.f32 %v1346, %v1361
          %v1374 = vadd.f32 %v1347, %v1362
          %v1375 = vadd.f32 %v1348, %v1363
          %v1376 = vadd.f32 %v1349, %v1364
          %v1377 = vadd.f32 %v1350, %v1365
          %v1378 = vadd.f32 %v1351, %v1366
          %v1379 = vadd.f32 %v1352, %v1367
          %v1380 = vadd.f32 %v1353, %v1368
          %v1381 = vadd.f32 %v1354, %v1369
          %1382 = vst [vmem:[#allocation3] sm:$0xff] %v1370
          %1383 = vst [vmem:[#allocation3 + $0x8] sm:$0xff] %v1371
          %1384 = vst [vmem:[#allocation3 + $0x10] sm:$0xff] %v1372
          %1385 = vst [vmem:[#allocation3 + $0x18] sm:$0xff] %v1373
          %1386 = vst [vmem:[#allocation3 + $0x20] sm:$0xff] %v1374
          %1387 = vst [vmem:[#allocation3 + $0x28] sm:$0xff] %v1375
          %1388 = vst [vmem:[#allocation3 + $0x30] sm:$0xff] %v1376
          %1389 = vst [vmem:[#allocation3 + $0x38] sm:$0xff] %v1377
          %1390 = vst [vmem:[#allocation3 + $0x40] sm:$0xff] %v1378
          %1391 = vst [vmem:[#allocation3 + $0x48] sm:$0xff] %v1379
          %1392 = vst [vmem:[#allocation3 + $0x50] sm:$0xff] %v1380
          %1393 = vst [vmem:[#allocation3 + $0x58] sm:$0xff] %v1381
        $region69: #{tpu_custom_call.1} parent=47 // loop_footer
          %s787 = sadd.s32 1, %s783
        $region70: #{tpu_custom_call.1} parent=47 // loop_footer_branch
          %782 = sbr.rel target = $region66
        $region71: #{tpu_custom_call.1} parent=47 // loop_exit
          _
        %v1394 = vld [vmem:[#allocation3] sm:$0xff]
        %v1395 = vld [vmem:[#allocation3 + $0x8] sm:$0xff]
        %v1396 = vld [vmem:[#allocation3 + $0x10] sm:$0xff]
        %v1397 = vld [vmem:[#allocation3 + $0x18] sm:$0xff]
        %v1398 = vld [vmem:[#allocation3 + $0x20] sm:$0xff]
        %v1399 = vld [vmem:[#allocation3 + $0x28] sm:$0xff]
        %v1400 = vld [vmem:[#allocation3 + $0x30] sm:$0xff]
        %v1401 = vld [vmem:[#allocation3 + $0x38] sm:$0xff]
        %v1402 = vld [vmem:[#allocation3 + $0x40] sm:$0xff]
        %v1403 = vld [vmem:[#allocation3 + $0x48] sm:$0xff]
        %v1404 = vld [vmem:[#allocation3 + $0x50] sm:$0xff]
        %v1405 = vld [vmem:[#allocation3 + $0x58] sm:$0xff]
        %v1406 = vmul.f32 %v1394, 0.125
        %v1407 = vmul.f32 %v1395, 0.125
        %v1408 = vmul.f32 %v1396, 0.125
        %v1409 = vmul.f32 %v1397, 0.125
        %v1410 = vmul.f32 %v1398, 0.125
        %v1411 = vmul.f32 %v1399, 0.125
        %v1412 = vmul.f32 %v1400, 0.125
        %v1413 = vmul.f32 %v1401, 0.125
        %v1414 = vmul.f32 %v1402, 0.125
        %v1415 = vmul.f32 %v1403, 0.125
        %v1416 = vmul.f32 %v1404, 0.125
        %v1417 = vmul.f32 %v1405, 0.125
        %v1418 = vld [vmem:[#allocation7] sm:$0xff]
        %v1419 = vld [vmem:[#allocation7 + $0x8] sm:$0xff]
        %v1420 = vld [vmem:[#allocation7 + $0x10] sm:$0xff]
        %v1421 = vld [vmem:[#allocation7 + $0x18] sm:$0xff]
        %v1422 = vld [vmem:[#allocation7 + $0x20] sm:$0xff]
        %v1423 = vld [vmem:[#allocation7 + $0x28] sm:$0xff]
        %v1424 = vld [vmem:[#allocation7 + $0x30] sm:$0xff]
        %v1425 = vld [vmem:[#allocation7 + $0x38] sm:$0xff]
        %v1426 = vld [vmem:[#allocation7 + $0x40] sm:$0xff]
        %v1427 = vld [vmem:[#allocation7 + $0x48] sm:$0xff]
        %v1428 = vld [vmem:[#allocation7 + $0x50] sm:$0xff]
        %v1429 = vld [vmem:[#allocation7 + $0x58] sm:$0xff]
        %v1430 = vld [vmem:[#allocation7 + $0x60] sm:$0xff]
        %v1431 = vld [vmem:[#allocation7 + $0x68] sm:$0xff]
        %v1432 = vld [vmem:[#allocation7 + $0x70] sm:$0xff]
        %v1433 = vld [vmem:[#allocation7 + $0x78] sm:$0xff]
        %v1434 = vld [vmem:[#allocation7 + $0x80] sm:$0xff]
        %v1435 = vld [vmem:[#allocation7 + $0x88] sm:$0xff]
        %v1436 = vld [vmem:[#allocation7 + $0x90] sm:$0xff]
        %v1437 = vld [vmem:[#allocation7 + $0x98] sm:$0xff]
        %v1438 = vld [vmem:[#allocation7 + $0xa0] sm:$0xff]
        %v1439 = vld [vmem:[#allocation7 + $0xa8] sm:$0xff]
        %v1440 = vld [vmem:[#allocation7 + $0xb0] sm:$0xff]
        %v1441 = vld [vmem:[#allocation7 + $0xb8] sm:$0xff]
        %v1442 = vld [vmem:[#allocation7 + $0xc0] sm:$0xff]
        %v1443 = vld [vmem:[#allocation7 + $0xc8] sm:$0xff]
        %v1444 = vld [vmem:[#allocation7 + $0xd0] sm:$0xff]
        %v1445 = vld [vmem:[#allocation7 + $0xd8] sm:$0xff]
        %v1446 = vld [vmem:[#allocation7 + $0xe0] sm:$0xff]
        %v1447 = vld [vmem:[#allocation7 + $0xe8] sm:$0xff]
        %v1448 = vld [vmem:[#allocation7 + $0xf0] sm:$0xff]
        %v1449 = vld [vmem:[#allocation7 + $0xf8] sm:$0xff]
        %v1450 = vld [vmem:[#allocation7 + $0x100] sm:$0xff]
        %v1451 = vld [vmem:[#allocation7 + $0x108] sm:$0xff]
        %v1452 = vld [vmem:[#allocation7 + $0x110] sm:$0xff]
        %v1453 = vld [vmem:[#allocation7 + $0x118] sm:$0xff]
        %v1454 = vld [vmem:[#allocation7 + $0x120] sm:$0xff]
        %v1455 = vld [vmem:[#allocation7 + $0x128] sm:$0xff]
        %v1456 = vld [vmem:[#allocation7 + $0x130] sm:$0xff]
        %v1457 = vld [vmem:[#allocation7 + $0x138] sm:$0xff]
        %v1458 = vld [vmem:[#allocation7 + $0x140] sm:$0xff]
        %v1459 = vld [vmem:[#allocation7 + $0x148] sm:$0xff]
        %v1460 = vld [vmem:[#allocation7 + $0x150] sm:$0xff]
        %v1461 = vld [vmem:[#allocation7 + $0x158] sm:$0xff]
        %v1462 = vld [vmem:[#allocation7 + $0x160] sm:$0xff]
        %v1463 = vld [vmem:[#allocation7 + $0x168] sm:$0xff]
        %v1464 = vld [vmem:[#allocation7 + $0x170] sm:$0xff]
        %v1465 = vld [vmem:[#allocation7 + $0x178] sm:$0xff]
        %v1466 = vld [vmem:[#allocation10] sm:$0xff]
        %v1467 = vld [vmem:[#allocation10 + $0x8] sm:$0xff]
        %v1468 = vld [vmem:[#allocation10 + $0x10] sm:$0xff]
        %v1469 = vld [vmem:[#allocation10 + $0x18] sm:$0xff]
        %v1470 = vld [vmem:[#allocation10 + $0x20] sm:$0xff]
        %v1471 = vld [vmem:[#allocation10 + $0x28] sm:$0xff]
        %v1472 = vld [vmem:[#allocation10 + $0x30] sm:$0xff]
        %v1473 = vld [vmem:[#allocation10 + $0x38] sm:$0xff]
        %v1474 = vld [vmem:[#allocation10 + $0x40] sm:$0xff]
        %v1475 = vld [vmem:[#allocation10 + $0x48] sm:$0xff]
        %v1476 = vld [vmem:[#allocation10 + $0x50] sm:$0xff]
        %v1477 = vld [vmem:[#allocation10 + $0x58] sm:$0xff]
        %v1478 = vld [vmem:[#allocation10 + $0x60] sm:$0xff]
        %v1479 = vld [vmem:[#allocation10 + $0x68] sm:$0xff]
        %v1480 = vld [vmem:[#allocation10 + $0x70] sm:$0xff]
        %v1481 = vld [vmem:[#allocation10 + $0x78] sm:$0xff]
        %v1482 = vld [vmem:[#allocation10 + $0x80] sm:$0xff]
        %v1483 = vld [vmem:[#allocation10 + $0x88] sm:$0xff]
        %v1484 = vld [vmem:[#allocation10 + $0x90] sm:$0xff]
        %v1485 = vld [vmem:[#allocation10 + $0x98] sm:$0xff]
        %v1486 = vld [vmem:[#allocation10 + $0xa0] sm:$0xff]
        %v1487 = vld [vmem:[#allocation10 + $0xa8] sm:$0xff]
        %v1488 = vld [vmem:[#allocation10 + $0xb0] sm:$0xff]
        %v1489 = vld [vmem:[#allocation10 + $0xb8] sm:$0xff]
        %v1490 = vld [vmem:[#allocation10 + $0xc0] sm:$0xff]
        %v1491 = vld [vmem:[#allocation10 + $0xc8] sm:$0xff]
        %v1492 = vld [vmem:[#allocation10 + $0xd0] sm:$0xff]
        %v1493 = vld [vmem:[#allocation10 + $0xd8] sm:$0xff]
        %v1494 = vld [vmem:[#allocation10 + $0xe0] sm:$0xff]
        %v1495 = vld [vmem:[#allocation10 + $0xe8] sm:$0xff]
        %v1496 = vld [vmem:[#allocation10 + $0xf0] sm:$0xff]
        %v1497 = vld [vmem:[#allocation10 + $0xf8] sm:$0xff]
        %v1498 = vld [vmem:[#allocation10 + $0x100] sm:$0xff]
        %v1499 = vld [vmem:[#allocation10 + $0x108] sm:$0xff]
        %v1500 = vld [vmem:[#allocation10 + $0x110] sm:$0xff]
        %v1501 = vld [vmem:[#allocation10 + $0x118] sm:$0xff]
        %v1502 = vld [vmem:[#allocation10 + $0x120] sm:$0xff]
        %v1503 = vld [vmem:[#allocation10 + $0x128] sm:$0xff]
        %v1504 = vld [vmem:[#allocation10 + $0x130] sm:$0xff]
        %v1505 = vld [vmem:[#allocation10 + $0x138] sm:$0xff]
        %v1506 = vld [vmem:[#allocation10 + $0x140] sm:$0xff]
        %v1507 = vld [vmem:[#allocation10 + $0x148] sm:$0xff]
        %v1508 = vld [vmem:[#allocation10 + $0x150] sm:$0xff]
        %v1509 = vld [vmem:[#allocation10 + $0x158] sm:$0xff]
        %v1510 = vld [vmem:[#allocation10 + $0x160] sm:$0xff]
        %v1511 = vld [vmem:[#allocation10 + $0x168] sm:$0xff]
        %v1512 = vld [vmem:[#allocation10 + $0x170] sm:$0xff]
        %v1513 = vld [vmem:[#allocation10 + $0x178] sm:$0xff]
        %1514 = vmatprep.subr.mxu0 0.0
        %1515 = vmatpush1.msra.mxu0 %v1481
        %1516 = vmatprep.subr.mxu0 0.0
        %1517 = vmatpush1.msra.mxu0 %v1480
        %1518 = vmatprep.subr.mxu0 0.0
        %1519 = vmatpush1.msra.mxu0 %v1479
        %1520 = vmatprep.subr.mxu0 0.0
        %1521 = vmatpush1.msra.mxu0 %v1478
        %1522 = vmatprep.subr.mxu0 0.0
        %1523 = vmatpush1.msra.mxu0 %v1477
        %1524 = vmatprep.subr.mxu0 0.0
        %1525 = vmatpush1.msra.mxu0 %v1476
        %1526 = vmatprep.subr.mxu0 0.0
        %1527 = vmatpush1.msra.mxu0 %v1475
        %1528 = vmatprep.subr.mxu0 0.0
        %1529 = vmatpush1.msra.mxu0 %v1474
        %1530 = vmatprep.subr.mxu0 0.0
        %1531 = vmatpush1.msra.mxu0 %v1473
        %1532 = vmatprep.subr.mxu0 0.0
        %1533 = vmatpush1.msra.mxu0 %v1472
        %1534 = vmatprep.subr.mxu0 0.0
        %1535 = vmatpush1.msra.mxu0 %v1471
        %1536 = vmatprep.subr.mxu0 0.0
        %1537 = vmatpush1.msra.mxu0 %v1470
        %1538 = vmatprep.subr.mxu0 0.0
        %1539 = vmatpush1.msra.mxu0 %v1469
        %1540 = vmatprep.subr.mxu0 0.0
        %1541 = vmatpush1.msra.mxu0 %v1468
        %1542 = vmatprep.subr.mxu0 0.0
        %1543 = vmatpush1.msra.mxu0 %v1467
        %1544 = vmatprep.subr.mxu0 0.0
        %1545 = vmatpush1.msra.mxu0 %v1466
        %1546 = vmatprep.subr.mxu0 0.0
        %1547 = vmatpush2.msra.mxu0 %v1497
        %1548 = vmatprep.subr.mxu0 0.0
        %1549 = vmatpush2.msra.mxu0 %v1496
        %1550 = vmatprep.subr.mxu0 0.0
        %1551 = vmatpush2.msra.mxu0 %v1495
        %1552 = vmatprep.subr.mxu0 0.0
        %1553 = vmatpush2.msra.mxu0 %v1494
        %1554 = vmatprep.subr.mxu0 0.0
        %1555 = vmatpush2.msra.mxu0 %v1493
        %1556 = vmatprep.subr.mxu0 0.0
        %1557 = vmatpush2.msra.mxu0 %v1492
        %1558 = vmatprep.subr.mxu0 0.0
        %1559 = vmatpush2.msra.mxu0 %v1491
        %1560 = vmatprep.subr.mxu0 0.0
        %1561 = vmatpush2.msra.mxu0 %v1490
        %1562 = vmatprep.subr.mxu0 0.0
        %1563 = vmatpush2.msra.mxu0 %v1489
        %1564 = vmatprep.subr.mxu0 0.0
        %1565 = vmatpush2.msra.mxu0 %v1488
        %1566 = vmatprep.subr.mxu0 0.0
        %1567 = vmatpush2.msra.mxu0 %v1487
        %1568 = vmatprep.subr.mxu0 0.0
        %1569 = vmatpush2.msra.mxu0 %v1486
        %1570 = vmatprep.subr.mxu0 0.0
        %1571 = vmatpush2.msra.mxu0 %v1485
        %1572 = vmatprep.subr.mxu0 0.0
        %1573 = vmatpush2.msra.mxu0 %v1484
        %1574 = vmatprep.subr.mxu0 0.0
        %1575 = vmatpush2.msra.mxu0 %v1483
        %1576 = vmatprep.subr.mxu0 0.0
        %1577 = vmatpush2.msra.mxu0 %v1482
        %1578 = vmatprep.mubr.f32.mxu0 %v1413
        %1579 = vmatmul.mubr.f32.gmra.mxu0 %v1412
        %v1580 = vpop.f32.mrf.mxu0
        %v1581 = vadd.f32 0.0, %v1580
        %v1582 = vpop.f32.mrf.mxu0
        %1583 = vmatprep.mubr.f32.mxu0 %v1416
        %1584 = vmatmul.mubr.f32.gmra.mxu0 %v1415
        %v1585 = vpop.f32.mrf.mxu0
        %v1586 = vadd.f32 0.0, %v1585
        %v1587 = vpop.f32.mrf.mxu0
        %1588 = vdwg.mxu0
        %1589 = vmatprep.subr.mxu0 0.0
        %1590 = vmatpush1.msra.mxu0 %v1513
        %1591 = vmatprep.subr.mxu0 0.0
        %1592 = vmatpush1.msra.mxu0 %v1512
        %1593 = vmatprep.subr.mxu0 0.0
        %1594 = vmatpush1.msra.mxu0 %v1511
        %1595 = vmatprep.subr.mxu0 0.0
        %1596 = vmatpush1.msra.mxu0 %v1510
        %1597 = vmatprep.subr.mxu0 0.0
        %1598 = vmatpush1.msra.mxu0 %v1509
        %1599 = vmatprep.subr.mxu0 0.0
        %1600 = vmatpush1.msra.mxu0 %v1508
        %1601 = vmatprep.subr.mxu0 0.0
        %1602 = vmatpush1.msra.mxu0 %v1507
        %1603 = vmatprep.subr.mxu0 0.0
        %1604 = vmatpush1.msra.mxu0 %v1506
        %1605 = vmatprep.subr.mxu0 0.0
        %1606 = vmatpush1.msra.mxu0 %v1505
        %1607 = vmatprep.subr.mxu0 0.0
        %1608 = vmatpush1.msra.mxu0 %v1504
        %1609 = vmatprep.subr.mxu0 0.0
        %1610 = vmatpush1.msra.mxu0 %v1503
        %1611 = vmatprep.subr.mxu0 0.0
        %1612 = vmatpush1.msra.mxu0 %v1502
        %1613 = vmatprep.subr.mxu0 0.0
        %1614 = vmatpush1.msra.mxu0 %v1501
        %1615 = vmatprep.subr.mxu0 0.0
        %1616 = vmatpush1.msra.mxu0 %v1500
        %1617 = vmatprep.subr.mxu0 0.0
        %1618 = vmatpush1.msra.mxu0 %v1499
        %1619 = vmatprep.subr.mxu0 0.0
        %1620 = vmatpush1.msra.mxu0 %v1498
        %1621 = vmatprep.subr.mxu0 0.0
        %1622 = vmatpush2.msra.mxu0 0.0
        %1623 = vmatprep.subr.mxu0 0.0
        %1624 = vmatpush2.msra.mxu0 0.0
        %1625 = vmatprep.subr.mxu0 0.0
        %1626 = vmatpush2.msra.mxu0 0.0
        %1627 = vmatprep.subr.mxu0 0.0
        %1628 = vmatpush2.msra.mxu0 0.0
        %1629 = vmatprep.subr.mxu0 0.0
        %1630 = vmatpush2.msra.mxu0 0.0
        %1631 = vmatprep.subr.mxu0 0.0
        %1632 = vmatpush2.msra.mxu0 0.0
        %1633 = vmatprep.subr.mxu0 0.0
        %1634 = vmatpush2.msra.mxu0 0.0
        %1635 = vmatprep.subr.mxu0 0.0
        %1636 = vmatpush2.msra.mxu0 0.0
        %1637 = vmatprep.subr.mxu0 0.0
        %1638 = vmatpush2.msra.mxu0 0.0
        %1639 = vmatprep.subr.mxu0 0.0
        %1640 = vmatpush2.msra.mxu0 0.0
        %1641 = vmatprep.subr.mxu0 0.0
        %1642 = vmatpush2.msra.mxu0 0.0
        %1643 = vmatprep.subr.mxu0 0.0
        %1644 = vmatpush2.msra.mxu0 0.0
        %1645 = vmatprep.subr.mxu0 0.0
        %1646 = vmatpush2.msra.mxu0 0.0
        %1647 = vmatprep.subr.mxu0 0.0
        %1648 = vmatpush2.msra.mxu0 0.0
        %1649 = vmatprep.subr.mxu0 0.0
        %1650 = vmatpush2.msra.mxu0 0.0
        %1651 = vmatprep.subr.mxu0 0.0
        %1652 = vmatpush2.msra.mxu0 0.0
        %1653 = vmatprep.mubr.f32.mxu0 0.0
        %1654 = vmatmul.mubr.f32.gmra.mxu0 %v1414
        %v1655 = vpop.f32.mrf.mxu0
        %v1656 = vadd.f32 %v1581, %v1655
        %v1657 = vpop.f32.mrf.mxu0
        %1658 = vmatprep.mubr.f32.mxu0 0.0
        %1659 = vmatmul.mubr.f32.gmra.mxu0 %v1417
        %v1660 = vpop.f32.mrf.mxu0
        %v1661 = vadd.f32 %v1586, %v1660
        %v1662 = vpop.f32.mrf.mxu0
        %1663 = vdwg.mxu0
        %1664 = vmatprep.subr.mxu0 0.0
        %1665 = vmatpush1.msra.mxu0 %v1433
        %1666 = vmatprep.subr.mxu0 0.0
        %1667 = vmatpush1.msra.mxu0 %v1432
        %1668 = vmatprep.subr.mxu0 0.0
        %1669 = vmatpush1.msra.mxu0 %v1431
        %1670 = vmatprep.subr.mxu0 0.0
        %1671 = vmatpush1.msra.mxu0 %v1430
        %1672 = vmatprep.subr.mxu0 0.0
        %1673 = vmatpush1.msra.mxu0 %v1429
        %1674 = vmatprep.subr.mxu0 0.0
        %1675 = vmatpush1.msra.mxu0 %v1428
        %1676 = vmatprep.subr.mxu0 0.0
        %1677 = vmatpush1.msra.mxu0 %v1427
        %1678 = vmatprep.subr.mxu0 0.0
        %1679 = vmatpush1.msra.mxu0 %v1426
        %1680 = vmatprep.subr.mxu0 0.0
        %1681 = vmatpush1.msra.mxu0 %v1425
        %1682 = vmatprep.subr.mxu0 0.0
        %1683 = vmatpush1.msra.mxu0 %v1424
        %1684 = vmatprep.subr.mxu0 0.0
        %1685 = vmatpush1.msra.mxu0 %v1423
        %1686 = vmatprep.subr.mxu0 0.0
        %1687 = vmatpush1.msra.mxu0 %v1422
        %1688 = vmatprep.subr.mxu0 0.0
        %1689 = vmatpush1.msra.mxu0 %v1421
        %1690 = vmatprep.subr.mxu0 0.0
        %1691 = vmatpush1.msra.mxu0 %v1420
        %1692 = vmatprep.subr.mxu0 0.0
        %1693 = vmatpush1.msra.mxu0 %v1419
        %1694 = vmatprep.subr.mxu0 0.0
        %1695 = vmatpush1.msra.mxu0 %v1418
        %1696 = vmatprep.subr.mxu0 0.0
        %1697 = vmatpush2.msra.mxu0 %v1449
        %1698 = vmatprep.subr.mxu0 0.0
        %1699 = vmatpush2.msra.mxu0 %v1448
        %1700 = vmatprep.subr.mxu0 0.0
        %1701 = vmatpush2.msra.mxu0 %v1447
        %1702 = vmatprep.subr.mxu0 0.0
        %1703 = vmatpush2.msra.mxu0 %v1446
        %1704 = vmatprep.subr.mxu0 0.0
        %1705 = vmatpush2.msra.mxu0 %v1445
        %1706 = vmatprep.subr.mxu0 0.0
        %1707 = vmatpush2.msra.mxu0 %v1444
        %1708 = vmatprep.subr.mxu0 0.0
        %1709 = vmatpush2.msra.mxu0 %v1443
        %1710 = vmatprep.subr.mxu0 0.0
        %1711 = vmatpush2.msra.mxu0 %v1442
        %1712 = vmatprep.subr.mxu0 0.0
        %1713 = vmatpush2.msra.mxu0 %v1441
        %1714 = vmatprep.subr.mxu0 0.0
        %1715 = vmatpush2.msra.mxu0 %v1440
        %1716 = vmatprep.subr.mxu0 0.0
        %1717 = vmatpush2.msra.mxu0 %v1439
        %1718 = vmatprep.subr.mxu0 0.0
        %1719 = vmatpush2.msra.mxu0 %v1438
        %1720 = vmatprep.subr.mxu0 0.0
        %1721 = vmatpush2.msra.mxu0 %v1437
        %1722 = vmatprep.subr.mxu0 0.0
        %1723 = vmatpush2.msra.mxu0 %v1436
        %1724 = vmatprep.subr.mxu0 0.0
        %1725 = vmatpush2.msra.mxu0 %v1435
        %1726 = vmatprep.subr.mxu0 0.0
        %1727 = vmatpush2.msra.mxu0 %v1434
        %1728 = vmatprep.mubr.f32.mxu0 %v1407
        %1729 = vmatmul.mubr.f32.gmra.mxu0 %v1406
        %v1730 = vpop.f32.mrf.mxu0
        %v1731 = vadd.f32 %v1656, %v1730
        %v1732 = vpop.f32.mrf.mxu0
        %1733 = vmatprep.mubr.f32.mxu0 %v1410
        %1734 = vmatmul.mubr.f32.gmra.mxu0 %v1409
        %v1735 = vpop.f32.mrf.mxu0
        %v1736 = vadd.f32 %v1661, %v1735
        %v1737 = vpop.f32.mrf.mxu0
        %1738 = vdwg.mxu0
        %1739 = vmatprep.subr.mxu0 0.0
        %1740 = vmatpush1.msra.mxu0 %v1465
        %1741 = vmatprep.subr.mxu0 0.0
        %1742 = vmatpush1.msra.mxu0 %v1464
        %1743 = vmatprep.subr.mxu0 0.0
        %1744 = vmatpush1.msra.mxu0 %v1463
        %1745 = vmatprep.subr.mxu0 0.0
        %1746 = vmatpush1.msra.mxu0 %v1462
        %1747 = vmatprep.subr.mxu0 0.0
        %1748 = vmatpush1.msra.mxu0 %v1461
        %1749 = vmatprep.subr.mxu0 0.0
        %1750 = vmatpush1.msra.mxu0 %v1460
        %1751 = vmatprep.subr.mxu0 0.0
        %1752 = vmatpush1.msra.mxu0 %v1459
        %1753 = vmatprep.subr.mxu0 0.0
        %1754 = vmatpush1.msra.mxu0 %v1458
        %1755 = vmatprep.subr.mxu0 0.0
        %1756 = vmatpush1.msra.mxu0 %v1457
        %1757 = vmatprep.subr.mxu0 0.0
        %1758 = vmatpush1.msra.mxu0 %v1456
        %1759 = vmatprep.subr.mxu0 0.0
        %1760 = vmatpush1.msra.mxu0 %v1455
        %1761 = vmatprep.subr.mxu0 0.0
        %1762 = vmatpush1.msra.mxu0 %v1454
        %1763 = vmatprep.subr.mxu0 0.0
        %1764 = vmatpush1.msra.mxu0 %v1453
        %1765 = vmatprep.subr.mxu0 0.0
        %1766 = vmatpush1.msra.mxu0 %v1452
        %1767 = vmatprep.subr.mxu0 0.0
        %1768 = vmatpush1.msra.mxu0 %v1451
        %1769 = vmatprep.subr.mxu0 0.0
        %1770 = vmatpush1.msra.mxu0 %v1450
        %1771 = vmatprep.subr.mxu0 0.0
        %1772 = vmatpush2.msra.mxu0 0.0
        %1773 = vmatprep.subr.mxu0 0.0
        %1774 = vmatpush2.msra.mxu0 0.0
        %1775 = vmatprep.subr.mxu0 0.0
        %1776 = vmatpush2.msra.mxu0 0.0
        %1777 = vmatprep.subr.mxu0 0.0
        %1778 = vmatpush2.msra.mxu0 0.0
        %1779 = vmatprep.subr.mxu0 0.0
        %1780 = vmatpush2.msra.mxu0 0.0
        %1781 = vmatprep.subr.mxu0 0.0
        %1782 = vmatpush2.msra.mxu0 0.0
        %1783 = vmatprep.subr.mxu0 0.0
        %1784 = vmatpush2.msra.mxu0 0.0
        %1785 = vmatprep.subr.mxu0 0.0
        %1786 = vmatpush2.msra.mxu0 0.0
        %1787 = vmatprep.subr.mxu0 0.0
        %1788 = vmatpush2.msra.mxu0 0.0
        %1789 = vmatprep.subr.mxu0 0.0
        %1790 = vmatpush2.msra.mxu0 0.0
        %1791 = vmatprep.subr.mxu0 0.0
        %1792 = vmatpush2.msra.mxu0 0.0
        %1793 = vmatprep.subr.mxu0 0.0
        %1794 = vmatpush2.msra.mxu0 0.0
        %1795 = vmatprep.subr.mxu0 0.0
        %1796 = vmatpush2.msra.mxu0 0.0
        %1797 = vmatprep.subr.mxu0 0.0
        %1798 = vmatpush2.msra.mxu0 0.0
        %1799 = vmatprep.subr.mxu0 0.0
        %1800 = vmatpush2.msra.mxu0 0.0
        %1801 = vmatprep.subr.mxu0 0.0
        %1802 = vmatpush2.msra.mxu0 0.0
        %1803 = vmatprep.mubr.f32.mxu0 0.0
        %1804 = vmatmul.mubr.f32.gmra.mxu0 %v1408
        %v1805 = vpop.f32.mrf.mxu0
        %v1806 = vadd.f32 %v1731, %v1805
        %v1807 = vpop.f32.mrf.mxu0
        %1808 = vmatprep.mubr.f32.mxu0 0.0
        %1809 = vmatmul.mubr.f32.gmra.mxu0 %v1411
        %v1810 = vpop.f32.mrf.mxu0
        %v1811 = vadd.f32 %v1736, %v1810
        %v1812 = vpop.f32.mrf.mxu0
        %1813 = vdwg.mxu0
        %v1814 = vld [vmem:[%s4] sm:$0x1]
        %v1816 = vlaneseq
        %v1817 = vshrl.u32 %v1816, 7
        %v1818 = vsub.s32 0, %v1817
        %v1819 = vrot.slane %v1814, %v1818
        %v1821 = vadd.f32 %v1806, %v1819
        %v1822 = vadd.f32 %v1811, %v1819
        %v1823 = vmax.f32 %v1821, 0.0
        %v1824 = vmax.f32 %v1822, 0.0
        %v1825 = vld [vmem:[#allocation12] sm:$0xff]
        %v1826 = vld [vmem:[#allocation12 + $0x8] sm:$0xff]
        %v1827 = vld [vmem:[#allocation12 + $0x10] sm:$0xff]
        %v1828 = vld [vmem:[#allocation12 + $0x18] sm:$0xff]
        %v1829 = vld [vmem:[#allocation12 + $0x20] sm:$0xff]
        %v1830 = vld [vmem:[#allocation12 + $0x28] sm:$0xff]
        %v1831 = vld [vmem:[#allocation12 + $0x30] sm:$0xff]
        %v1832 = vld [vmem:[#allocation12 + $0x38] sm:$0xff]
        %v1833 = vld [vmem:[#allocation12 + $0x40] sm:$0xff]
        %v1834 = vld [vmem:[#allocation12 + $0x48] sm:$0xff]
        %v1835 = vld [vmem:[#allocation12 + $0x50] sm:$0xff]
        %v1836 = vld [vmem:[#allocation12 + $0x58] sm:$0xff]
        %v1837 = vld [vmem:[#allocation12 + $0x60] sm:$0xff]
        %v1838 = vld [vmem:[#allocation12 + $0x68] sm:$0xff]
        %v1839 = vld [vmem:[#allocation12 + $0x70] sm:$0xff]
        %v1840 = vld [vmem:[#allocation12 + $0x78] sm:$0xff]
        %v1841 = vld [vmem:[%s6] sm:$0x1]
        %v1843 = vlaneseq
        %v1844 = vshrl.u32 %v1843, 7
        %v1845 = vsub.s32 0, %v1844
        %v1846 = vrot.slane %v1841, %v1845
        %1848 = vmatprep.subr.mxu0 0.0
        %1849 = vmatpush1.msra.mxu0 %v1840
        %1850 = vmatprep.subr.mxu0 0.0
        %1851 = vmatpush1.msra.mxu0 %v1839
        %1852 = vmatprep.subr.mxu0 0.0
        %1853 = vmatpush1.msra.mxu0 %v1838
        %1854 = vmatprep.subr.mxu0 0.0
        %1855 = vmatpush1.msra.mxu0 %v1837
        %1856 = vmatprep.subr.mxu0 0.0
        %1857 = vmatpush1.msra.mxu0 %v1836
        %1858 = vmatprep.subr.mxu0 0.0
        %1859 = vmatpush1.msra.mxu0 %v1835
        %1860 = vmatprep.subr.mxu0 0.0
        %1861 = vmatpush1.msra.mxu0 %v1834
        %1862 = vmatprep.subr.mxu0 0.0
        %1863 = vmatpush1.msra.mxu0 %v1833
        %1864 = vmatprep.subr.mxu0 0.0
        %1865 = vmatpush1.msra.mxu0 %v1832
        %1866 = vmatprep.subr.mxu0 0.0
        %1867 = vmatpush1.msra.mxu0 %v1831
        %1868 = vmatprep.subr.mxu0 0.0
        %1869 = vmatpush1.msra.mxu0 %v1830
        %1870 = vmatprep.subr.mxu0 0.0
        %1871 = vmatpush1.msra.mxu0 %v1829
        %1872 = vmatprep.subr.mxu0 0.0
        %1873 = vmatpush1.msra.mxu0 %v1828
        %1874 = vmatprep.subr.mxu0 0.0
        %1875 = vmatpush1.msra.mxu0 %v1827
        %1876 = vmatprep.subr.mxu0 0.0
        %1877 = vmatpush1.msra.mxu0 %v1826
        %1878 = vmatprep.subr.mxu0 0.0
        %1879 = vmatpush1.msra.mxu0 %v1825
        %1880 = vmatprep.subr.mxu0 0.0
        %1881 = vmatpush2.msra.mxu0 0.0
        %1882 = vmatprep.subr.mxu0 0.0
        %1883 = vmatpush2.msra.mxu0 0.0
        %1884 = vmatprep.subr.mxu0 0.0
        %1885 = vmatpush2.msra.mxu0 0.0
        %1886 = vmatprep.subr.mxu0 0.0
        %1887 = vmatpush2.msra.mxu0 0.0
        %1888 = vmatprep.subr.mxu0 0.0
        %1889 = vmatpush2.msra.mxu0 0.0
        %1890 = vmatprep.subr.mxu0 0.0
        %1891 = vmatpush2.msra.mxu0 0.0
        %1892 = vmatprep.subr.mxu0 0.0
        %1893 = vmatpush2.msra.mxu0 0.0
        %1894 = vmatprep.subr.mxu0 0.0
        %1895 = vmatpush2.msra.mxu0 0.0
        %1896 = vmatprep.subr.mxu0 0.0
        %1897 = vmatpush2.msra.mxu0 0.0
        %1898 = vmatprep.subr.mxu0 0.0
        %1899 = vmatpush2.msra.mxu0 0.0
        %1900 = vmatprep.subr.mxu0 0.0
        %1901 = vmatpush2.msra.mxu0 0.0
        %1902 = vmatprep.subr.mxu0 0.0
        %1903 = vmatpush2.msra.mxu0 0.0
        %1904 = vmatprep.subr.mxu0 0.0
        %1905 = vmatpush2.msra.mxu0 0.0
        %1906 = vmatprep.subr.mxu0 0.0
        %1907 = vmatpush2.msra.mxu0 0.0
        %1908 = vmatprep.subr.mxu0 0.0
        %1909 = vmatpush2.msra.mxu0 0.0
        %1910 = vmatprep.subr.mxu0 0.0
        %1911 = vmatpush2.msra.mxu0 0.0
        %1912 = vmatprep.mubr.f32.mxu0 0.0
        %1913 = vmatmul.mubr.f32.gmra.mxu0 %v1823
        %v1914 = vpop.f32.mrf.mxu0
        %v1915 = vadd.f32 %v1846, %v1914
        %v1916 = vpop.f32.mrf.mxu0
        %1917 = vmatprep.mubr.f32.mxu0 0.0
        %1918 = vmatmul.mubr.f32.gmra.mxu0 %v1824
        %v1919 = vpop.f32.mrf.mxu0
        %v1920 = vadd.f32 %v1846, %v1919
        %v1921 = vpop.f32.mrf.mxu0
        %1922 = vdwg.mxu0
        %v1923 = vmax.f32 %v1915, 0.0
        %v1924 = vmax.f32 %v1920, 0.0
        %v1925 = vld [vmem:[#allocation13] sm:$0xff]
        %v1926 = vld [vmem:[#allocation13 + $0x8] sm:$0xff]
        %v1927 = vld [vmem:[#allocation13 + $0x10] sm:$0xff]
        %v1928 = vld [vmem:[#allocation13 + $0x18] sm:$0xff]
        %v1929 = vld [vmem:[#allocation13 + $0x20] sm:$0xff]
        %v1930 = vld [vmem:[#allocation13 + $0x28] sm:$0xff]
        %v1931 = vld [vmem:[#allocation13 + $0x30] sm:$0xff]
        %v1932 = vld [vmem:[#allocation13 + $0x38] sm:$0xff]
        %v1933 = vld [vmem:[#allocation13 + $0x40] sm:$0xff]
        %v1934 = vld [vmem:[#allocation13 + $0x48] sm:$0xff]
        %v1935 = vld [vmem:[#allocation13 + $0x50] sm:$0xff]
        %v1936 = vld [vmem:[#allocation13 + $0x58] sm:$0xff]
        %v1937 = vld [vmem:[#allocation13 + $0x60] sm:$0xff]
        %v1938 = vld [vmem:[#allocation13 + $0x68] sm:$0xff]
        %v1939 = vld [vmem:[#allocation13 + $0x70] sm:$0xff]
        %v1940 = vld [vmem:[#allocation13 + $0x78] sm:$0xff]
        %v1941 = vld [vmem:[%s8] sm:$0x1]
        %v1943 = vlaneseq
        %v1944 = vshrl.u32 %v1943, 7
        %v1945 = vsub.s32 0, %v1944
        %v1946 = vrot.slane %v1941, %v1945
        %1948 = vmatprep.subr.mxu0 0.0
        %1949 = vmatpush1.msra.mxu0 %v1940
        %1950 = vmatprep.subr.mxu0 0.0
        %1951 = vmatpush1.msra.mxu0 %v1939
        %1952 = vmatprep.subr.mxu0 0.0
        %1953 = vmatpush1.msra.mxu0 %v1938
        %1954 = vmatprep.subr.mxu0 0.0
        %1955 = vmatpush1.msra.mxu0 %v1937
        %1956 = vmatprep.subr.mxu0 0.0
        %1957 = vmatpush1.msra.mxu0 %v1936
        %1958 = vmatprep.subr.mxu0 0.0
        %1959 = vmatpush1.msra.mxu0 %v1935
        %1960 = vmatprep.subr.mxu0 0.0
        %1961 = vmatpush1.msra.mxu0 %v1934
        %1962 = vmatprep.subr.mxu0 0.0
        %1963 = vmatpush1.msra.mxu0 %v1933
        %1964 = vmatprep.subr.mxu0 0.0
        %1965 = vmatpush1.msra.mxu0 %v1932
        %1966 = vmatprep.subr.mxu0 0.0
        %1967 = vmatpush1.msra.mxu0 %v1931
        %1968 = vmatprep.subr.mxu0 0.0
        %1969 = vmatpush1.msra.mxu0 %v1930
        %1970 = vmatprep.subr.mxu0 0.0
        %1971 = vmatpush1.msra.mxu0 %v1929
        %1972 = vmatprep.subr.mxu0 0.0
        %1973 = vmatpush1.msra.mxu0 %v1928
        %1974 = vmatprep.subr.mxu0 0.0
        %1975 = vmatpush1.msra.mxu0 %v1927
        %1976 = vmatprep.subr.mxu0 0.0
        %1977 = vmatpush1.msra.mxu0 %v1926
        %1978 = vmatprep.subr.mxu0 0.0
        %1979 = vmatpush1.msra.mxu0 %v1925
        %1980 = vmatprep.subr.mxu0 0.0
        %1981 = vmatpush2.msra.mxu0 0.0
        %1982 = vmatprep.subr.mxu0 0.0
        %1983 = vmatpush2.msra.mxu0 0.0
        %1984 = vmatprep.subr.mxu0 0.0
        %1985 = vmatpush2.msra.mxu0 0.0
        %1986 = vmatprep.subr.mxu0 0.0
        %1987 = vmatpush2.msra.mxu0 0.0
        %1988 = vmatprep.subr.mxu0 0.0
        %1989 = vmatpush2.msra.mxu0 0.0
        %1990 = vmatprep.subr.mxu0 0.0
        %1991 = vmatpush2.msra.mxu0 0.0
        %1992 = vmatprep.subr.mxu0 0.0
        %1993 = vmatpush2.msra.mxu0 0.0
        %1994 = vmatprep.subr.mxu0 0.0
        %1995 = vmatpush2.msra.mxu0 0.0
        %1996 = vmatprep.subr.mxu0 0.0
        %1997 = vmatpush2.msra.mxu0 0.0
        %1998 = vmatprep.subr.mxu0 0.0
        %1999 = vmatpush2.msra.mxu0 0.0
        %2000 = vmatprep.subr.mxu0 0.0
        %2001 = vmatpush2.msra.mxu0 0.0
        %2002 = vmatprep.subr.mxu0 0.0
        %2003 = vmatpush2.msra.mxu0 0.0
        %2004 = vmatprep.subr.mxu0 0.0
        %2005 = vmatpush2.msra.mxu0 0.0
        %2006 = vmatprep.subr.mxu0 0.0
        %2007 = vmatpush2.msra.mxu0 0.0
        %2008 = vmatprep.subr.mxu0 0.0
        %2009 = vmatpush2.msra.mxu0 0.0
        %2010 = vmatprep.subr.mxu0 0.0
        %2011 = vmatpush2.msra.mxu0 0.0
        %2012 = vmatprep.mubr.f32.mxu0 0.0
        %2013 = vmatmul.mubr.f32.gmra.mxu0 %v1923
        %v2014 = vpop.f32.mrf.mxu0
        %v2015 = vadd.f32 %v1946, %v2014
        %v2016 = vpop.f32.mrf.mxu0
        %2017 = vmatprep.mubr.f32.mxu0 0.0
        %2018 = vmatmul.mubr.f32.gmra.mxu0 %v1924
        %v2019 = vpop.f32.mrf.mxu0
        %v2020 = vadd.f32 %v1946, %v2019
        %v2021 = vpop.f32.mrf.mxu0
        %2022 = vdwg.mxu0
        %2023 = vst [vmem:[%s321] sm:$0xff] %v2015
        %2024 = vst [vmem:[%s321 + $0x8] sm:$0xff] %v2020
        %s2025 = sand.u32 %s185, 1
        %s2026 = scalar_lea.sflag [#allocation9], %s2025
        %s2027 = sand.u32 %s185, 1
        %s2028 = smul.addr %s2027, 16
        %s2029 = scalar_lea.vmem [#allocation15], %s2028
        // Predicated region
        $region76: #{tpu_custom_call.1} parent=47 // pred_check
          %p2030 = pneg %p195
        $region77: #{tpu_custom_call.1} parent=47 // pred_check_branch
          %2032 = sbr.rel (%p2030) target = $region79
        $region78: #{tpu_custom_call.1} parent=47 // pred_region
          %s2033 = smul.u32 2, %s30
          %s2035 = ssub.s32 256, 256
          %2036 = vsyncadd %s2026, %s2035
          %s2037 = smul.addr %s2033, 128
          %s2038 = scalar_lea.hbm %s9, %s2037
          %s2039 = sshll.u32 %s2029, 4
          %s2040 = int_to_ptr.vmem [resolvable:$true] %s2039
          %2045 = dma.vmem_to_hbm [thread:$0]  %s2040, 256, %s2038, %s2026, 128, 128, 8
        $region79: #{tpu_custom_call.1} parent=47 // pred_fallthru
          _
      $region48: #{tpu_custom_call.1} parent=5 // pred_fallthru
        _
      %p2046 = scmp.le.s32.totalorder 2, %s25
      // Predicated region
      $region80: #{tpu_custom_call.1} parent=5 // pred_check
        %p2047 = pneg %p2046
      $region81: #{tpu_custom_call.1} parent=5 // pred_check_branch
        %2049 = sbr.rel (%p2047) target = $region83
      $region82: #{tpu_custom_call.1} parent=5 // pred_region
        %s2050 = ssub.s32 %s25, 2
        // Predicated region
        $region84: #{tpu_custom_call.1} parent=82 // pred_check
          %p2051 = pneg %p201
        $region85: #{tpu_custom_call.1} parent=82 // pred_check_branch
          %2053 = sbr.rel (%p2051) target = $region87
        $region86: #{tpu_custom_call.1} parent=82 // pred_region
          %s2054 = sand.u32 %s186, 1
          %s2055 = scalar_lea.sflag [#allocation9], %s2054
          %s2056 = sand.u32 %s186, 1
          %s2057 = smul.addr %s2056, 16
          %s2058 = scalar_lea.vmem [#allocation15], %s2057
          %2059 = dma.done %s2055, 256
        $region87: #{tpu_custom_call.1} parent=82 // pred_fallthru
          _
      $region83: #{tpu_custom_call.1} parent=5 // pred_fallthru
        _
    $region6: #{tpu_custom_call.1} parent=1 // loop_footer
      %s29 = sadd.s32 1, %s25
    $region7: #{tpu_custom_call.1} parent=1 // loop_footer_branch
      %24 = sbr.rel target = $region3
    $region8: #{tpu_custom_call.1} parent=1 // loop_exit
      _
    %2060 = vsyncpa [#allocation8], 1
    %s2061 = scalar_lea.sflag [#allocation8], 1
    %2062 = vsyncpa %s2061, 1
    %2063 = vsyncpa [#allocation11], 1
    %2064 = vsyncpa [#allocation14], 1
    %2065 = vsyncpa [#allocation9], 1
    %s2066 = scalar_lea.sflag [#allocation9], 1
    %2067 = vsyncpa %s2066, 1
  %2068 = vsyncmov [#allocation4]
  %s2069 = vpop.sfrf %2068
  %p2070 = scmp.eq.s32.totalorder %s2069, 0
  %p2071 = pneg %p2070
  %2073 = shalt.err (%p2071)
  %s2074 = scalar_lea.sflag [#allocation4], 1
  %2075 = vsyncmov %s2074
  %s2076 = vpop.sfrf %2075
  %p2077 = scmp.eq.s32.totalorder %s2076, 0
  %p2078 = pneg %p2077
  %2080 = shalt.err (%p2078)

</llo_original>
